<compile_context>
chip_gen: v5e
topology: v5e:2x2
jax: 0.10.0
libtpu: 0.0.40
codegen_flags: <defaults>
</compile_context>

<pallas_src>
from functools import partial

import jax
import jax.numpy as jnp
from jax.experimental import pallas as pl
from jax.experimental.pallas import tpu as pltpu

EPS = 1e-6


def _pick_row_block(B, N, D, HFp):
    """Rows folded per grid step: target M = bblk*N ~ 512 to amortize the
    ~0.35us/step pipeline overhead and fill MXU sublanes, bounded by a modest
    per-step activation footprint; must divide B."""
    target = max(1, 512 // max(N, 1))
    bblk = max(1, min(B, target))
    bytes_per_row = 4 * N * (6 * D + 3 * D + 3 * HFp)   # rough f32 intermediates
    cap = 8 << 20
    while bblk > 1 and (B % bblk or bblk * bytes_per_row > cap):
        bblk -= 1
    return bblk


def _make_kernel(bblk, N, D, HFp, num_heads, eps=EPS):
    head_dim = D // num_heads
    scale = head_dim ** -0.5
    M = bblk * N

    def kernel(xpos_ref, xneg_ref, anw_ref, wqkv_ref, wout_ref,
               fnw_ref, w1_ref, w3_ref, w2_ref, out_ref, gsum_ref):
        is_pos = pl.program_id(0) == 0
        # Select this step's activation tile (pos vs neg phase). Both tiles are
        # VMEM resident; the parked one is fetched once per phase, the select
        # is a cheap VPU op.
        x = jnp.where(is_pos, xpos_ref[...], xneg_ref[...])        # (bblk,N,D) f32
        x2 = x.reshape(M, D)                                       # fold rows -> M

        # ---- attention sub-block -------------------------------------------
        inv = jax.lax.rsqrt(jnp.mean(x2 * x2, axis=-1, keepdims=True) + eps)
        xn = (x2 * inv * anw_ref[...]).astype(jnp.bfloat16)        # RMSNorm, bf16 MXU input
        qkv = jnp.dot(xn, wqkv_ref[...],
                      preferred_element_type=jnp.float32)          # (M, 3D) f32
        qkv = qkv.reshape(bblk, N, 3 * D)
        wout = wout_ref[...]                                       # (D, D) bf16

        attn = jnp.zeros((M, D), jnp.float32)
        # Static unroll is fine at small head counts; for large num_heads use
        # lax.fori_loop + a VMEM accumulator to bound live ranges.  At
        # production head_dim (>=128) the per-head lane slices below are
        # lane-aligned and effectively free.
        for h in range(num_heads):
            lo = h * head_dim
            qh = qkv[:, :, lo:lo + head_dim].astype(jnp.bfloat16)          # (bblk,N,hd)
            kh = qkv[:, :, D + lo:D + lo + head_dim].astype(jnp.bfloat16)
            vh = qkv[:, :, 2 * D + lo:2 * D + lo + head_dim].astype(jnp.bfloat16)
            # Batched contraction over rows; no explicit transpose (the MXU
            # handles the contraction layout via dot_general).
            s = jnp.einsum('bqd,bkd->bqk', qh, kh,
                           preferred_element_type=jnp.float32) * scale
            s = s - jnp.max(s, axis=-1, keepdims=True)
            e = jnp.exp(s)
            p = e * pl.reciprocal(jnp.sum(e, axis=-1, keepdims=True),
                                  approx=True)                     # EUP reciprocal
            oh = jnp.einsum('bqk,bkd->bqd', p.astype(jnp.bfloat16), vh,
                            preferred_element_type=jnp.float32)    # (bblk,N,hd)
            # Out-projection accumulated per head: o @ Wout == sum_h oh @ Wout[rows]
            attn = attn + jnp.dot(
                oh.reshape(M, head_dim).astype(jnp.bfloat16),
                wout[lo:lo + head_dim, :],
                preferred_element_type=jnp.float32)

        x_res = x2 + attn                                          # (M, D) f32

        # ---- feed-forward sub-block (SwiGLU), HF zero-padded to lane-dense --
        inv2 = jax.lax.rsqrt(jnp.mean(x_res * x_res, axis=-1, keepdims=True) + eps)
        xn2 = (x_res * inv2 * fnw_ref[...]).astype(jnp.bfloat16)
        h1 = jnp.dot(xn2, w1_ref[...], preferred_element_type=jnp.float32)  # (M, HFp)
        h3 = jnp.dot(xn2, w3_ref[...], preferred_element_type=jnp.float32)
        gate = (h1 * jax.nn.sigmoid(h1) * h3).astype(jnp.bfloat16)          # silu(h1)*h3
        y = jnp.dot(gate, w2_ref[...], preferred_element_type=jnp.float32)  # (M, D)

        # TODO(synk): train-mode dropout (RNG masking) not implemented; eval identity.
        xo = (x_res + y).reshape(bblk, N, D)
        out_ref[...] = xo

        # Fused Forward-Forward goodness: per-row sum of squares, so the loss
        # never re-reads the (2B,N,D) output from HBM.
        sq = jnp.sum(xo * xo, axis=-1, keepdims=True)              # (bblk, N, 1)
        gsum_ref[...] = jnp.sum(sq, axis=1, keepdims=True)         # (bblk, 1, 1)

    return kernel


@partial(jax.jit, static_argnames=("num_heads", "single_buffer_weights"))
def _forward(x_pos, x_neg, attn_norm_w, wqkv, wout, ffn_norm_w,
             w1, w3, w2, threshold, *, num_heads, single_buffer_weights):
    B, N, D = x_pos.shape
    HF = w1.shape[1]
    HFp = ((HF + 127) // 128) * 128          # lane-dense FFN hidden

    # ---- parameter prep (zero-pad HF, cast MXU operands to bf16) ----------
    # TODO(synk): in a real model, pad/cast the parameters once up front
    #             instead of per call.
    if HFp != HF:
        w1 = jnp.pad(w1, ((0, 0), (0, HFp - HF)))
        w3 = jnp.pad(w3, ((0, 0), (0, HFp - HF)))
        w2 = jnp.pad(w2, ((0, HFp - HF), (0, 0)))
    wqkv_b = wqkv.astype(jnp.bfloat16)
    wout_b = wout.astype(jnp.bfloat16)
    w1_b = w1.astype(jnp.bfloat16)
    w3_b = w3.astype(jnp.bfloat16)
    w2_b = w2.astype(jnp.bfloat16)
    anw = attn_norm_w.reshape(1, D).astype(jnp.float32)
    fnw = ffn_norm_w.reshape(1, D).astype(jnp.float32)

    bblk = _pick_row_block(B, N, D, HFp)
    npb = B // bblk                           # row-blocks per (pos|neg) phase
    kernel = _make_kernel(bblk, N, D, HFp, num_heads)

    def wspec(shape):
        idx = lambda p, b: tuple(0 for _ in shape)     # constant: VMEM-resident
        if single_buffer_weights:
            # Constant-index weights don't need double buffers (halves the
            # resident-weight VMEM footprint; matters on v7x's 64 MiB VMEM).
            return pl.BlockSpec(shape, idx, pipeline_mode=pl.Buffered(1))
        return pl.BlockSpec(shape, idx)

    out, gsum = pl.pallas_call(
        kernel,
        out_shape=(jax.ShapeDtypeStruct((2 * B, N, D), jnp.float32),
                   jax.ShapeDtypeStruct((2 * B, 1, 1), jnp.float32)),
        grid=(2, npb),                       # (pos|neg phase, row-blocks)
        in_specs=[
            # x_pos / x_neg: active during their own phase, "parked" on block 0
            # during the other phase (no re-fetch, no host-side concat).
            pl.BlockSpec((bblk, N, D), lambda p, b: (b * (1 - p), 0, 0)),
            pl.BlockSpec((bblk, N, D), lambda p, b: (b * p, 0, 0)),
            wspec((1, D)),                   # attn RMSNorm weight
            wspec((D, 3 * D)),               # Wqkv
            wspec((D, D)),                   # Wout
            wspec((1, D)),                   # ffn RMSNorm weight
            wspec((D, HFp)),                 # W1 (padded)
            wspec((D, HFp)),                 # W3 (padded)
            wspec((HFp, D)),                 # W2 (padded)
        ],
        out_specs=(
            pl.BlockSpec((bblk, N, D), lambda p, b: (p * npb + b, 0, 0)),
            pl.BlockSpec((bblk, 1, 1), lambda p, b: (p * npb + b, 0, 0)),
        ),
        compiler_params=pltpu.CompilerParams(
            dimension_semantics=("parallel", "parallel"),
            vmem_limit_bytes=64 * 1024 * 1024),
    )(x_pos, x_neg, anw, wqkv_b, wout_b, fnw, w1_b, w3_b, w2_b)

    x_out = out[:B]
    g = gsum.reshape(2 * B) / (N * D)        # mean of squares per row
    g_pos, g_neg = g[:B], g[B:]
    ff_loss = jnp.mean(jax.nn.softplus(
        jnp.concatenate([threshold - g_pos, g_neg - threshold])))
    return x_out, ff_loss


def hybrid_forward_block(x_pos, x_neg, attn_norm_w, wqkv, wout,
                         ffn_norm_w, w1, w3, w2, threshold, *, num_heads):
    try:
        res = _forward(x_pos, x_neg, attn_norm_w, wqkv, wout, ffn_norm_w,
                       w1, w3, w2, threshold, num_heads=num_heads,
                       single_buffer_weights=True)
        jax.block_until_ready(res)
        return res
    except Exception:
        # Fallback for JAX builds where pipeline_mode=pl.Buffered(1) on a
        # pallas_call BlockSpec is unsupported: identical kernel, default
        # (double-buffered) weight specs.
        return _forward(x_pos, x_neg, attn_norm_w, wqkv, wout, ffn_norm_w,
                        w1, w3, w2, threshold, num_heads=num_heads,
                        single_buffer_weights=False)


# ---------------- pure-JAX reference (matches the PyTorch module) ----------
def _rmsnorm(x, w, eps=EPS):
    return x * jax.lax.rsqrt(jnp.mean(x * x, axis=-1, keepdims=True) + eps) * w


def reference_block(x, attn_norm_w, wqkv, wout, ffn_norm_w, w1, w3, w2, num_heads):
    B, N, D = x.shape
    hd = D // num_heads
    hp = jax.lax.Precision.HIGHEST

    xn = _rmsnorm(x, attn_norm_w)
    qkv = jnp.einsum("bnd,de->bne", xn, wqkv, precision=hp)
    q, k, v = jnp.split(qkv, 3, axis=-1)

    def to_heads(t):
        return t.reshape(B, N, num_heads, hd).transpose(0, 2, 1, 3)

    q, k, v = to_heads(q), to_heads(k), to_heads(v)
    s = jnp.einsum("bhqd,bhkd->bhqk", q, k, precision=hp) * (hd ** -0.5)
    p = jax.nn.softmax(s, axis=-1)
    o = jnp.einsum("bhqk,bhkd->bhqd", p, v, precision=hp)
    o = o.transpose(0, 2, 1, 3).reshape(B, N, D)
    x_res = x + jnp.einsum("bnd,de->bne", o, wout, precision=hp)

    xn2 = _rmsnorm(x_res, ffn_norm_w)
    h1 = jnp.einsum("bnd,dh->bnh", xn2, w1, precision=hp)
    h3 = jnp.einsum("bnd,dh->bnh", xn2, w3, precision=hp)
    y = jnp.einsum("bnh,hd->bnd", jax.nn.silu(h1) * h3, w2, precision=hp)
    return x_res + y


def reference_forward(x_pos, x_neg, attn_norm_w, wqkv, wout,
                      ffn_norm_w, w1, w3, w2, threshold, num_heads):
    x_out = reference_block(x_pos, attn_norm_w, wqkv, wout,
                            ffn_norm_w, w1, w3, w2, num_heads)
    x_neg_out = reference_block(x_neg, attn_norm_w, wqkv, wout,
                                ffn_norm_w, w1, w3, w2, num_heads)
    g_pos = jnp.mean(jnp.square(x_out), axis=(1, 2))
    g_neg = jnp.mean(jnp.square(x_neg_out), axis=(1, 2))
    ff_loss = jnp.mean(jax.nn.softplus(
        jnp.concatenate([threshold - g_pos, g_neg - threshold])))
    return x_out, ff_loss


if __name__ == "__main__":
    B, N, D, H = 2, 16, 32, 4          # batch, seq, embedding_dim, num_attn_heads
    HF = int(D * 2.66)                 # ffn_hidden_dim = int(dim * 2.66) = 85
    threshold = 2.0                    # ff_goodness_threshold default

    key = jax.random.PRNGKey(0)
    ks = jax.random.split(key, 8)
    x_pos = jax.random.normal(ks[0], (B, N, D), dtype=jnp.float32)
    x_neg = jax.random.normal(ks[1], (B, N, D), dtype=jnp.float32)

    wscale = 0.08
    wqkv = jax.random.normal(ks[2], (D, 3 * D), dtype=jnp.float32) * wscale
    wout = jax.random.normal(ks[3], (D, D), dtype=jnp.float32) * wscale
    w1 = jax.random.normal(ks[4], (D, HF), dtype=jnp.float32) * wscale
    w3 = jax.random.normal(ks[5], (D, HF), dtype=jnp.float32) * wscale
    w2 = jax.random.normal(ks[6], (HF, D), dtype=jnp.float32) * wscale
    attn_norm_w = jnp.ones((D,), dtype=jnp.float32)
    ffn_norm_w = jnp.ones((D,), dtype=jnp.float32)

    x_out, ff_loss = hybrid_forward_block(
        x_pos, x_neg, attn_norm_w, wqkv, wout, ffn_norm_w, w1, w3, w2,
        threshold, num_heads=H)
    jax.block_until_ready((x_out, ff_loss))

    ref_out, ref_loss = reference_forward(
        x_pos, x_neg, attn_norm_w, wqkv, wout, ffn_norm_w, w1, w3, w2,
        threshold, H)

    assert x_out.shape == (B, N, D)
    # bf16 MXU operands vs the f32 HIGHEST-precision reference: loosen tolerance.
    assert jnp.allclose(x_out, ref_out, atol=2e-2, rtol=2e-2), "x_out mismatch"
    assert jnp.allclose(ff_loss, ref_loss, atol=2e-2, rtol=2e-2), "ff_loss mismatch"

    print("KERNEL_OK")
</pallas_src>

<mosaic_0001>
module attributes {stable_mosaic.version = 11 : i64} {
  func.func @kernel(%arg0: i32, %arg1: i32, %arg2: memref<2x16x32xf32, #tpu.memory_space<vmem>>, %arg3: memref<2x16x32xf32, #tpu.memory_space<vmem>>, %arg4: memref<1x32xf32, #tpu.memory_space<vmem>>, %arg5: memref<32x96xbf16, #tpu.memory_space<vmem>>, %arg6: memref<32x32xbf16, #tpu.memory_space<vmem>>, %arg7: memref<1x32xf32, #tpu.memory_space<vmem>>, %arg8: memref<32x128xbf16, #tpu.memory_space<vmem>>, %arg9: memref<32x128xbf16, #tpu.memory_space<vmem>>, %arg10: memref<128x32xbf16, #tpu.memory_space<vmem>>, %arg11: memref<2x16x32xf32, #tpu.memory_space<vmem>>, %arg12: memref<2x1x1xf32, #tpu.memory_space<vmem>>) attributes {dimension_semantics = [#tpu.dimension_semantics<parallel>, #tpu.dimension_semantics<parallel>], iteration_bounds = array<i64: 2, 1>, scalar_prefetch = 0 : i64, scratch_operands = 0 : i64, tpu.core_type = #tpu.core_type<tc>, window_params = [{transform_indices = @transform_0, window_bounds = array<i64: 2, 16, 32>}, {transform_indices = @transform_1, window_bounds = array<i64: 2, 16, 32>}, {pipeline_mode = #tpu.pipeline_mode<synchronous>, transform_indices = @transform_2, window_bounds = array<i64: 1, 32>}, {pipeline_mode = #tpu.pipeline_mode<synchronous>, transform_indices = @transform_3, window_bounds = array<i64: 32, 96>}, {pipeline_mode = #tpu.pipeline_mode<synchronous>, transform_indices = @transform_4, window_bounds = array<i64: 32, 32>}, {pipeline_mode = #tpu.pipeline_mode<synchronous>, transform_indices = @transform_5, window_bounds = array<i64: 1, 32>}, {pipeline_mode = #tpu.pipeline_mode<synchronous>, transform_indices = @transform_6, window_bounds = array<i64: 32, 128>}, {pipeline_mode = #tpu.pipeline_mode<synchronous>, transform_indices = @transform_7, window_bounds = array<i64: 32, 128>}, {pipeline_mode = #tpu.pipeline_mode<synchronous>, transform_indices = @transform_8, window_bounds = array<i64: 128, 32>}, {transform_indices = @transform_9, window_bounds = array<i64: 2, 16, 32>}, {transform_indices = @transform_10, window_bounds = array<i64: 2, 1, 1>}]} {
    %c0_i32 = arith.constant 0 : i32
    %0 = arith.cmpi eq, %arg0, %c0_i32 : i32
    %c0 = arith.constant 0 : index
    %c0_0 = arith.constant 0 : index
    %c0_1 = arith.constant 0 : index
    %1 = vector.load %arg2[%c0, %c0_0, %c0_1] : memref<2x16x32xf32, #tpu.memory_space<vmem>>, vector<2x16x32xf32>
    %c0_2 = arith.constant 0 : index
    %c0_3 = arith.constant 0 : index
    %c0_4 = arith.constant 0 : index
    %2 = vector.load %arg3[%c0_2, %c0_3, %c0_4] : memref<2x16x32xf32, #tpu.memory_space<vmem>>, vector<2x16x32xf32>
    %3 = arith.select %0, %1, %2 : vector<2x16x32xf32>
    %4 = vector.shape_cast %3 : vector<2x16x32xf32> to vector<32x32xf32>
    %5 = arith.mulf %4, %4 : vector<32x32xf32>
    %cst = arith.constant dense<0.000000e+00> : vector<32xf32>
    %6 = vector.multi_reduction <add>, %5, %cst [1] : vector<32x32xf32> to vector<32xf32>
    %7 = vector.shape_cast %6 : vector<32xf32> to vector<32x1xf32>
    %cst_5 = arith.constant 3.200000e+01 : f32
    %8 = vector.broadcast %cst_5 : f32 to vector<32x1xf32>
    %9 = arith.divf %7, %8 : vector<32x1xf32>
    %cst_6 = arith.constant 9.99999997E-7 : f32
    %10 = vector.broadcast %cst_6 : f32 to vector<32x1xf32>
    %11 = arith.addf %9, %10 : vector<32x1xf32>
    %12 = math.rsqrt %11 : vector<32x1xf32>
    %13 = vector.broadcast %12 : vector<32x1xf32> to vector<32x32xf32>
    %14 = arith.mulf %4, %13 : vector<32x32xf32>
    %c0_7 = arith.constant 0 : index
    %c0_8 = arith.constant 0 : index
    %15 = vector.load %arg4[%c0_7, %c0_8] : memref<1x32xf32, #tpu.memory_space<vmem>>, vector<1x32xf32>
    %16 = vector.broadcast %15 : vector<1x32xf32> to vector<32x32xf32>
    %17 = arith.mulf %14, %16 : vector<32x32xf32>
    %18 = arith.truncf %17 : vector<32x32xf32> to vector<32x32xbf16>
    %c0_9 = arith.constant 0 : index
    %c0_10 = arith.constant 0 : index
    %19 = vector.load %arg5[%c0_9, %c0_10] : memref<32x96xbf16, #tpu.memory_space<vmem>>, vector<32x96xbf16>
    %cst_11 = arith.constant dense<0.000000e+00> : vector<32x96xf32>
    %20 = tpu.matmul %18, %19, %cst_11 {dimension_numbers = #tpu.dot_dimension_numbers<[1], [0], [0], [1], [0, 0, 1, 1], [], []>} : vector<32x32xbf16>, vector<32x96xbf16>, vector<32x96xf32> -> vector<32x96xf32>
    %21 = vector.shape_cast %20 : vector<32x96xf32> to vector<2x16x96xf32>
    %c0_12 = arith.constant 0 : index
    %c0_13 = arith.constant 0 : index
    %22 = vector.load %arg6[%c0_12, %c0_13] : memref<32x32xbf16, #tpu.memory_space<vmem>>, vector<32x32xbf16>
    %cst_14 = arith.constant 0.000000e+00 : f32
    %23 = vector.broadcast %cst_14 : f32 to vector<32x32xf32>
    %24 = vector.extract_strided_slice %21 {offsets = [0, 0, 0], sizes = [2, 16, 8], strides = [1, 1, 1]} : vector<2x16x96xf32> to vector<2x16x8xf32>
    %25 = arith.truncf %24 : vector<2x16x8xf32> to vector<2x16x8xbf16>
    %26 = vector.extract_strided_slice %21 {offsets = [0, 0, 32], sizes = [2, 16, 8], strides = [1, 1, 1]} : vector<2x16x96xf32> to vector<2x16x8xf32>
    %27 = arith.truncf %26 : vector<2x16x8xf32> to vector<2x16x8xbf16>
    %28 = vector.extract_strided_slice %21 {offsets = [0, 0, 64], sizes = [2, 16, 8], strides = [1, 1, 1]} : vector<2x16x96xf32> to vector<2x16x8xf32>
    %29 = arith.truncf %28 : vector<2x16x8xf32> to vector<2x16x8xbf16>
    "tpu.trace_start"() <{level = 10 : i32, message = "bqd,bkd->bqk"}> : () -> ()
    %cst_15 = arith.constant dense<0.000000e+00> : vector<2x16x16xf32>
    %30 = tpu.matmul %25, %27, %cst_15 {dimension_numbers = #tpu.dot_dimension_numbers<[2], [2], [1], [1], [0, 0, 0, 1, 1, 1], [0], [0]>} : vector<2x16x8xbf16>, vector<2x16x8xbf16>, vector<2x16x16xf32> -> vector<2x16x16xf32>
    "tpu.trace_stop"() : () -> ()
    %cst_16 = arith.constant 0.353553385 : f32
    %31 = vector.broadcast %cst_16 : f32 to vector<2x16x16xf32>
    %32 = arith.mulf %30, %31 : vector<2x16x16xf32>
    %cst_17 = arith.constant dense<0xFF800000> : vector<2x16xf32>
    %33 = vector.multi_reduction <maximumf>, %32, %cst_17 [2] : vector<2x16x16xf32> to vector<2x16xf32>
    %34 = vector.shape_cast %33 : vector<2x16xf32> to vector<2x16x1xf32>
    %35 = vector.broadcast %34 : vector<2x16x1xf32> to vector<2x16x16xf32>
    %36 = arith.subf %32, %35 : vector<2x16x16xf32>
    %37 = math.exp %36 : vector<2x16x16xf32>
    %cst_18 = arith.constant dense<0.000000e+00> : vector<2x16xf32>
    %38 = vector.multi_reduction <add>, %37, %cst_18 [2] : vector<2x16x16xf32> to vector<2x16xf32>
    %39 = vector.shape_cast %38 : vector<2x16xf32> to vector<2x16x1xf32>
    %40 = tpu.reciprocal %39 {approx = true} : vector<2x16x1xf32> -> vector<2x16x1xf32>
    %41 = vector.broadcast %40 : vector<2x16x1xf32> to vector<2x16x16xf32>
    %42 = arith.mulf %37, %41 : vector<2x16x16xf32>
    %43 = arith.truncf %42 : vector<2x16x16xf32> to vector<2x16x16xbf16>
    "tpu.trace_start"() <{level = 10 : i32, message = "bqk,bkd->bqd"}> : () -> ()
    %cst_19 = arith.constant dense<0.000000e+00> : vector<2x16x8xf32>
    %44 = tpu.matmul %43, %29, %cst_19 {dimension_numbers = #tpu.dot_dimension_numbers<[2], [1], [1], [2], [0, 0, 0, 1, 1, 2], [0], [0]>} : vector<2x16x16xbf16>, vector<2x16x8xbf16>, vector<2x16x8xf32> -> vector<2x16x8xf32>
    "tpu.trace_stop"() : () -> ()
    %45 = vector.shape_cast %44 : vector<2x16x8xf32> to vector<32x8xf32>
    %46 = arith.truncf %45 : vector<32x8xf32> to vector<32x8xbf16>
    %47 = vector.extract_strided_slice %22 {offsets = [0, 0], sizes = [8, 32], strides = [1, 1]} : vector<32x32xbf16> to vector<8x32xbf16>
    %cst_20 = arith.constant dense<0.000000e+00> : vector<32x32xf32>
    %48 = tpu.matmul %46, %47, %cst_20 {dimension_numbers = #tpu.dot_dimension_numbers<[1], [0], [0], [1], [0, 0, 1, 1], [], []>} : vector<32x8xbf16>, vector<8x32xbf16>, vector<32x32xf32> -> vector<32x32xf32>
    %49 = arith.addf %23, %48 : vector<32x32xf32>
    %50 = vector.extract_strided_slice %21 {offsets = [0, 0, 8], sizes = [2, 16, 8], strides = [1, 1, 1]} : vector<2x16x96xf32> to vector<2x16x8xf32>
    %51 = arith.truncf %50 : vector<2x16x8xf32> to vector<2x16x8xbf16>
    %52 = vector.extract_strided_slice %21 {offsets = [0, 0, 40], sizes = [2, 16, 8], strides = [1, 1, 1]} : vector<2x16x96xf32> to vector<2x16x8xf32>
    %53 = arith.truncf %52 : vector<2x16x8xf32> to vector<2x16x8xbf16>
    %54 = vector.extract_strided_slice %21 {offsets = [0, 0, 72], sizes = [2, 16, 8], strides = [1, 1, 1]} : vector<2x16x96xf32> to vector<2x16x8xf32>
    %55 = arith.truncf %54 : vector<2x16x8xf32> to vector<2x16x8xbf16>
    "tpu.trace_start"() <{level = 10 : i32, message = "bqd,bkd->bqk"}> : () -> ()
    %cst_21 = arith.constant dense<0.000000e+00> : vector<2x16x16xf32>
    %56 = tpu.matmul %51, %53, %cst_21 {dimension_numbers = #tpu.dot_dimension_numbers<[2], [2], [1], [1], [0, 0, 0, 1, 1, 1], [0], [0]>} : vector<2x16x8xbf16>, vector<2x16x8xbf16>, vector<2x16x16xf32> -> vector<2x16x16xf32>
    "tpu.trace_stop"() : () -> ()
    %cst_22 = arith.constant 0.353553385 : f32
    %57 = vector.broadcast %cst_22 : f32 to vector<2x16x16xf32>
    %58 = arith.mulf %56, %57 : vector<2x16x16xf32>
    %cst_23 = arith.constant dense<0xFF800000> : vector<2x16xf32>
    %59 = vector.multi_reduction <maximumf>, %58, %cst_23 [2] : vector<2x16x16xf32> to vector<2x16xf32>
    %60 = vector.shape_cast %59 : vector<2x16xf32> to vector<2x16x1xf32>
    %61 = vector.broadcast %60 : vector<2x16x1xf32> to vector<2x16x16xf32>
    %62 = arith.subf %58, %61 : vector<2x16x16xf32>
    %63 = math.exp %62 : vector<2x16x16xf32>
    %cst_24 = arith.constant dense<0.000000e+00> : vector<2x16xf32>
    %64 = vector.multi_reduction <add>, %63, %cst_24 [2] : vector<2x16x16xf32> to vector<2x16xf32>
    %65 = vector.shape_cast %64 : vector<2x16xf32> to vector<2x16x1xf32>
    %66 = tpu.reciprocal %65 {approx = true} : vector<2x16x1xf32> -> vector<2x16x1xf32>
    %67 = vector.broadcast %66 : vector<2x16x1xf32> to vector<2x16x16xf32>
    %68 = arith.mulf %63, %67 : vector<2x16x16xf32>
    %69 = arith.truncf %68 : vector<2x16x16xf32> to vector<2x16x16xbf16>
    "tpu.trace_start"() <{level = 10 : i32, message = "bqk,bkd->bqd"}> : () -> ()
    %cst_25 = arith.constant dense<0.000000e+00> : vector<2x16x8xf32>
    %70 = tpu.matmul %69, %55, %cst_25 {dimension_numbers = #tpu.dot_dimension_numbers<[2], [1], [1], [2], [0, 0, 0, 1, 1, 2], [0], [0]>} : vector<2x16x16xbf16>, vector<2x16x8xbf16>, vector<2x16x8xf32> -> vector<2x16x8xf32>
    "tpu.trace_stop"() : () -> ()
    %71 = vector.shape_cast %70 : vector<2x16x8xf32> to vector<32x8xf32>
    %72 = arith.truncf %71 : vector<32x8xf32> to vector<32x8xbf16>
    %73 = vector.extract_strided_slice %22 {offsets = [8, 0], sizes = [8, 32], strides = [1, 1]} : vector<32x32xbf16> to vector<8x32xbf16>
    %cst_26 = arith.constant dense<0.000000e+00> : vector<32x32xf32>
    %74 = tpu.matmul %72, %73, %cst_26 {dimension_numbers = #tpu.dot_dimension_numbers<[1], [0], [0], [1], [0, 0, 1, 1], [], []>} : vector<32x8xbf16>, vector<8x32xbf16>, vector<32x32xf32> -> vector<32x32xf32>
    %75 = arith.addf %49, %74 : vector<32x32xf32>
    %76 = vector.extract_strided_slice %21 {offsets = [0, 0, 16], sizes = [2, 16, 8], strides = [1, 1, 1]} : vector<2x16x96xf32> to vector<2x16x8xf32>
    %77 = arith.truncf %76 : vector<2x16x8xf32> to vector<2x16x8xbf16>
    %78 = vector.extract_strided_slice %21 {offsets = [0, 0, 48], sizes = [2, 16, 8], strides = [1, 1, 1]} : vector<2x16x96xf32> to vector<2x16x8xf32>
    %79 = arith.truncf %78 : vector<2x16x8xf32> to vector<2x16x8xbf16>
    %80 = vector.extract_strided_slice %21 {offsets = [0, 0, 80], sizes = [2, 16, 8], strides = [1, 1, 1]} : vector<2x16x96xf32> to vector<2x16x8xf32>
    %81 = arith.truncf %80 : vector<2x16x8xf32> to vector<2x16x8xbf16>
    "tpu.trace_start"() <{level = 10 : i32, message = "bqd,bkd->bqk"}> : () -> ()
    %cst_27 = arith.constant dense<0.000000e+00> : vector<2x16x16xf32>
    %82 = tpu.matmul %77, %79, %cst_27 {dimension_numbers = #tpu.dot_dimension_numbers<[2], [2], [1], [1], [0, 0, 0, 1, 1, 1], [0], [0]>} : vector<2x16x8xbf16>, vector<2x16x8xbf16>, vector<2x16x16xf32> -> vector<2x16x16xf32>
    "tpu.trace_stop"() : () -> ()
    %cst_28 = arith.constant 0.353553385 : f32
    %83 = vector.broadcast %cst_28 : f32 to vector<2x16x16xf32>
    %84 = arith.mulf %82, %83 : vector<2x16x16xf32>
    %cst_29 = arith.constant dense<0xFF800000> : vector<2x16xf32>
    %85 = vector.multi_reduction <maximumf>, %84, %cst_29 [2] : vector<2x16x16xf32> to vector<2x16xf32>
    %86 = vector.shape_cast %85 : vector<2x16xf32> to vector<2x16x1xf32>
    %87 = vector.broadcast %86 : vector<2x16x1xf32> to vector<2x16x16xf32>
    %88 = arith.subf %84, %87 : vector<2x16x16xf32>
    %89 = math.exp %88 : vector<2x16x16xf32>
    %cst_30 = arith.constant dense<0.000000e+00> : vector<2x16xf32>
    %90 = vector.multi_reduction <add>, %89, %cst_30 [2] : vector<2x16x16xf32> to vector<2x16xf32>
    %91 = vector.shape_cast %90 : vector<2x16xf32> to vector<2x16x1xf32>
    %92 = tpu.reciprocal %91 {approx = true} : vector<2x16x1xf32> -> vector<2x16x1xf32>
    %93 = vector.broadcast %92 : vector<2x16x1xf32> to vector<2x16x16xf32>
    %94 = arith.mulf %89, %93 : vector<2x16x16xf32>
    %95 = arith.truncf %94 : vector<2x16x16xf32> to vector<2x16x16xbf16>
    "tpu.trace_start"() <{level = 10 : i32, message = "bqk,bkd->bqd"}> : () -> ()
    %cst_31 = arith.constant dense<0.000000e+00> : vector<2x16x8xf32>
    %96 = tpu.matmul %95, %81, %cst_31 {dimension_numbers = #tpu.dot_dimension_numbers<[2], [1], [1], [2], [0, 0, 0, 1, 1, 2], [0], [0]>} : vector<2x16x16xbf16>, vector<2x16x8xbf16>, vector<2x16x8xf32> -> vector<2x16x8xf32>
    "tpu.trace_stop"() : () -> ()
    %97 = vector.shape_cast %96 : vector<2x16x8xf32> to vector<32x8xf32>
    %98 = arith.truncf %97 : vector<32x8xf32> to vector<32x8xbf16>
    %99 = vector.extract_strided_slice %22 {offsets = [16, 0], sizes = [8, 32], strides = [1, 1]} : vector<32x32xbf16> to vector<8x32xbf16>
    %cst_32 = arith.constant dense<0.000000e+00> : vector<32x32xf32>
    %100 = tpu.matmul %98, %99, %cst_32 {dimension_numbers = #tpu.dot_dimension_numbers<[1], [0], [0], [1], [0, 0, 1, 1], [], []>} : vector<32x8xbf16>, vector<8x32xbf16>, vector<32x32xf32> -> vector<32x32xf32>
    %101 = arith.addf %75, %100 : vector<32x32xf32>
    %102 = vector.extract_strided_slice %21 {offsets = [0, 0, 24], sizes = [2, 16, 8], strides = [1, 1, 1]} : vector<2x16x96xf32> to vector<2x16x8xf32>
    %103 = arith.truncf %102 : vector<2x16x8xf32> to vector<2x16x8xbf16>
    %104 = vector.extract_strided_slice %21 {offsets = [0, 0, 56], sizes = [2, 16, 8], strides = [1, 1, 1]} : vector<2x16x96xf32> to vector<2x16x8xf32>
    %105 = arith.truncf %104 : vector<2x16x8xf32> to vector<2x16x8xbf16>
    %106 = vector.extract_strided_slice %21 {offsets = [0, 0, 88], sizes = [2, 16, 8], strides = [1, 1, 1]} : vector<2x16x96xf32> to vector<2x16x8xf32>
    %107 = arith.truncf %106 : vector<2x16x8xf32> to vector<2x16x8xbf16>
    "tpu.trace_start"() <{level = 10 : i32, message = "bqd,bkd->bqk"}> : () -> ()
    %cst_33 = arith.constant dense<0.000000e+00> : vector<2x16x16xf32>
    %108 = tpu.matmul %103, %105, %cst_33 {dimension_numbers = #tpu.dot_dimension_numbers<[2], [2], [1], [1], [0, 0, 0, 1, 1, 1], [0], [0]>} : vector<2x16x8xbf16>, vector<2x16x8xbf16>, vector<2x16x16xf32> -> vector<2x16x16xf32>
    "tpu.trace_stop"() : () -> ()
    %cst_34 = arith.constant 0.353553385 : f32
    %109 = vector.broadcast %cst_34 : f32 to vector<2x16x16xf32>
    %110 = arith.mulf %108, %109 : vector<2x16x16xf32>
    %cst_35 = arith.constant dense<0xFF800000> : vector<2x16xf32>
    %111 = vector.multi_reduction <maximumf>, %110, %cst_35 [2] : vector<2x16x16xf32> to vector<2x16xf32>
    %112 = vector.shape_cast %111 : vector<2x16xf32> to vector<2x16x1xf32>
    %113 = vector.broadcast %112 : vector<2x16x1xf32> to vector<2x16x16xf32>
    %114 = arith.subf %110, %113 : vector<2x16x16xf32>
    %115 = math.exp %114 : vector<2x16x16xf32>
    %cst_36 = arith.constant dense<0.000000e+00> : vector<2x16xf32>
    %116 = vector.multi_reduction <add>, %115, %cst_36 [2] : vector<2x16x16xf32> to vector<2x16xf32>
    %117 = vector.shape_cast %116 : vector<2x16xf32> to vector<2x16x1xf32>
    %118 = tpu.reciprocal %117 {approx = true} : vector<2x16x1xf32> -> vector<2x16x1xf32>
    %119 = vector.broadcast %118 : vector<2x16x1xf32> to vector<2x16x16xf32>
    %120 = arith.mulf %115, %119 : vector<2x16x16xf32>
    %121 = arith.truncf %120 : vector<2x16x16xf32> to vector<2x16x16xbf16>
    "tpu.trace_start"() <{level = 10 : i32, message = "bqk,bkd->bqd"}> : () -> ()
    %cst_37 = arith.constant dense<0.000000e+00> : vector<2x16x8xf32>
    %122 = tpu.matmul %121, %107, %cst_37 {dimension_numbers = #tpu.dot_dimension_numbers<[2], [1], [1], [2], [0, 0, 0, 1, 1, 2], [0], [0]>} : vector<2x16x16xbf16>, vector<2x16x8xbf16>, vector<2x16x8xf32> -> vector<2x16x8xf32>
    "tpu.trace_stop"() : () -> ()
    %123 = vector.shape_cast %122 : vector<2x16x8xf32> to vector<32x8xf32>
    %124 = arith.truncf %123 : vector<32x8xf32> to vector<32x8xbf16>
    %125 = vector.extract_strided_slice %22 {offsets = [24, 0], sizes = [8, 32], strides = [1, 1]} : vector<32x32xbf16> to vector<8x32xbf16>
    %cst_38 = arith.constant dense<0.000000e+00> : vector<32x32xf32>
    %126 = tpu.matmul %124, %125, %cst_38 {dimension_numbers = #tpu.dot_dimension_numbers<[1], [0], [0], [1], [0, 0, 1, 1], [], []>} : vector<32x8xbf16>, vector<8x32xbf16>, vector<32x32xf32> -> vector<32x32xf32>
    %127 = arith.addf %101, %126 : vector<32x32xf32>
    %128 = arith.addf %4, %127 : vector<32x32xf32>
    %129 = arith.mulf %128, %128 : vector<32x32xf32>
    %cst_39 = arith.constant dense<0.000000e+00> : vector<32xf32>
    %130 = vector.multi_reduction <add>, %129, %cst_39 [1] : vector<32x32xf32> to vector<32xf32>
    %131 = vector.shape_cast %130 : vector<32xf32> to vector<32x1xf32>
    %cst_40 = arith.constant 3.200000e+01 : f32
    %132 = vector.broadcast %cst_40 : f32 to vector<32x1xf32>
    %133 = arith.divf %131, %132 : vector<32x1xf32>
    %cst_41 = arith.constant 9.99999997E-7 : f32
    %134 = vector.broadcast %cst_41 : f32 to vector<32x1xf32>
    %135 = arith.addf %133, %134 : vector<32x1xf32>
    %136 = math.rsqrt %135 : vector<32x1xf32>
    %137 = vector.broadcast %136 : vector<32x1xf32> to vector<32x32xf32>
    %138 = arith.mulf %128, %137 : vector<32x32xf32>
    %c0_42 = arith.constant 0 : index
    %c0_43 = arith.constant 0 : index
    %139 = vector.load %arg7[%c0_42, %c0_43] : memref<1x32xf32, #tpu.memory_space<vmem>>, vector<1x32xf32>
    %140 = vector.broadcast %139 : vector<1x32xf32> to vector<32x32xf32>
    %141 = arith.mulf %138, %140 : vector<32x32xf32>
    %142 = arith.truncf %141 : vector<32x32xf32> to vector<32x32xbf16>
    %c0_44 = arith.constant 0 : index
    %c0_45 = arith.constant 0 : index
    %143 = vector.load %arg8[%c0_44, %c0_45] : memref<32x128xbf16, #tpu.memory_space<vmem>>, vector<32x128xbf16>
    %cst_46 = arith.constant dense<0.000000e+00> : vector<32x128xf32>
    %144 = tpu.matmul %142, %143, %cst_46 {dimension_numbers = #tpu.dot_dimension_numbers<[1], [0], [0], [1], [0, 0, 1, 1], [], []>} : vector<32x32xbf16>, vector<32x128xbf16>, vector<32x128xf32> -> vector<32x128xf32>
    %c0_47 = arith.constant 0 : index
    %c0_48 = arith.constant 0 : index
    %145 = vector.load %arg9[%c0_47, %c0_48] : memref<32x128xbf16, #tpu.memory_space<vmem>>, vector<32x128xbf16>
    %cst_49 = arith.constant dense<0.000000e+00> : vector<32x128xf32>
    %146 = tpu.matmul %142, %145, %cst_49 {dimension_numbers = #tpu.dot_dimension_numbers<[1], [0], [0], [1], [0, 0, 1, 1], [], []>} : vector<32x32xbf16>, vector<32x128xbf16>, vector<32x128xf32> -> vector<32x128xf32>
    %147 = arith.negf %144 : vector<32x128xf32>
    %148 = math.exp %147 : vector<32x128xf32>
    %cst_50 = arith.constant 1.000000e+00 : f32
    %149 = vector.broadcast %cst_50 : f32 to vector<32x128xf32>
    %150 = arith.addf %149, %148 : vector<32x128xf32>
    %151 = arith.divf %149, %150 : vector<32x128xf32>
    %152 = arith.mulf %144, %151 : vector<32x128xf32>
    %153 = arith.mulf %152, %146 : vector<32x128xf32>
    %154 = arith.truncf %153 : vector<32x128xf32> to vector<32x128xbf16>
    %c0_51 = arith.constant 0 : index
    %c0_52 = arith.constant 0 : index
    %155 = vector.load %arg10[%c0_51, %c0_52] : memref<128x32xbf16, #tpu.memory_space<vmem>>, vector<128x32xbf16>
    %cst_53 = arith.constant dense<0.000000e+00> : vector<32x32xf32>
    %156 = tpu.matmul %154, %155, %cst_53 {dimension_numbers = #tpu.dot_dimension_numbers<[1], [0], [0], [1], [0, 0, 1, 1], [], []>} : vector<32x128xbf16>, vector<128x32xbf16>, vector<32x32xf32> -> vector<32x32xf32>
    %157 = arith.addf %128, %156 : vector<32x32xf32>
    %158 = vector.shape_cast %157 : vector<32x32xf32> to vector<2x16x32xf32>
    %c0_54 = arith.constant 0 : index
    %c0_55 = arith.constant 0 : index
    %c0_56 = arith.constant 0 : index
    %159 = vector.load %arg11[%c0_54, %c0_55, %c0_56] : memref<2x16x32xf32, #tpu.memory_space<vmem>>, vector<2x16x32xf32>
    tpu.vector_store %arg11[%c0_54, %c0_55, %c0_56], %158 {strides = array<i32>} : memref<2x16x32xf32, #tpu.memory_space<vmem>>, vector<2x16x32xf32>,
    %160 = arith.mulf %158, %158 : vector<2x16x32xf32>
    %cst_57 = arith.constant dense<0.000000e+00> : vector<2x16xf32>
    %161 = vector.multi_reduction <add>, %160, %cst_57 [2] : vector<2x16x32xf32> to vector<2x16xf32>
    %162 = vector.shape_cast %161 : vector<2x16xf32> to vector<2x16x1xf32>
    %cst_58 = arith.constant dense<0.000000e+00> : vector<2x1xf32>
    %163 = vector.multi_reduction <add>, %162, %cst_58 [1] : vector<2x16x1xf32> to vector<2x1xf32>
    %164 = vector.shape_cast %163 : vector<2x1xf32> to vector<2x1x1xf32>
    %c0_59 = arith.constant 0 : index
    %c0_60 = arith.constant 0 : index
    %c0_61 = arith.constant 0 : index
    %165 = vector.load %arg12[%c0_59, %c0_60, %c0_61] : memref<2x1x1xf32, #tpu.memory_space<vmem>>, vector<2x1x1xf32>
    tpu.vector_store %arg12[%c0_59, %c0_60, %c0_61], %164 {strides = array<i32>} : memref<2x1x1xf32, #tpu.memory_space<vmem>>, vector<2x1x1xf32>,
    return
  }
  func.func @transform_0(%arg0: i32, %arg1: i32) -> (i32, i32, i32) {
    %c1_i32 = arith.constant 1 : i32
    %0 = arith.subi %c1_i32, %arg0 : i32
    %1 = arith.muli %arg1, %0 : i32
    %c0_i32 = arith.constant 0 : i32
    %c0_i32_0 = arith.constant 0 : i32
    %c0_i32_1 = arith.constant 0 : i32
    return %1, %c0_i32, %c0_i32_0 : i32, i32, i32
  }
  func.func @transform_1(%arg0: i32, %arg1: i32) -> (i32, i32, i32) {
    %0 = arith.muli %arg1, %arg0 : i32
    %c0_i32 = arith.constant 0 : i32
    %c0_i32_0 = arith.constant 0 : i32
    %c0_i32_1 = arith.constant 0 : i32
    return %0, %c0_i32, %c0_i32_0 : i32, i32, i32
  }
  func.func @transform_2(%arg0: i32, %arg1: i32) -> (i32, i32) {
    %c0_i32 = arith.constant 0 : i32
    %c0_i32_0 = arith.constant 0 : i32
    %c0_i32_1 = arith.constant 0 : i32
    return %c0_i32, %c0_i32_0 : i32, i32
  }
  func.func @transform_3(%arg0: i32, %arg1: i32) -> (i32, i32) {
    %c0_i32 = arith.constant 0 : i32
    %c0_i32_0 = arith.constant 0 : i32
    %c0_i32_1 = arith.constant 0 : i32
    return %c0_i32, %c0_i32_0 : i32, i32
  }
  func.func @transform_4(%arg0: i32, %arg1: i32) -> (i32, i32) {
    %c0_i32 = arith.constant 0 : i32
    %c0_i32_0 = arith.constant 0 : i32
    %c0_i32_1 = arith.constant 0 : i32
    return %c0_i32, %c0_i32_0 : i32, i32
  }
  func.func @transform_5(%arg0: i32, %arg1: i32) -> (i32, i32) {
    %c0_i32 = arith.constant 0 : i32
    %c0_i32_0 = arith.constant 0 : i32
    %c0_i32_1 = arith.constant 0 : i32
    return %c0_i32, %c0_i32_0 : i32, i32
  }
  func.func @transform_6(%arg0: i32, %arg1: i32) -> (i32, i32) {
    %c0_i32 = arith.constant 0 : i32
    %c0_i32_0 = arith.constant 0 : i32
    %c0_i32_1 = arith.constant 0 : i32
    return %c0_i32, %c0_i32_0 : i32, i32
  }
  func.func @transform_7(%arg0: i32, %arg1: i32) -> (i32, i32) {
    %c0_i32 = arith.constant 0 : i32
    %c0_i32_0 = arith.constant 0 : i32
    %c0_i32_1 = arith.constant 0 : i32
    return %c0_i32, %c0_i32_0 : i32, i32
  }
  func.func @transform_8(%arg0: i32, %arg1: i32) -> (i32, i32) {
    %c0_i32 = arith.constant 0 : i32
    %c0_i32_0 = arith.constant 0 : i32
    %c0_i32_1 = arith.constant 0 : i32
    return %c0_i32, %c0_i32_0 : i32, i32
  }
  func.func @transform_9(%arg0: i32, %arg1: i32) -> (i32, i32, i32) {
    %c1_i32 = arith.constant 1 : i32
    %0 = arith.muli %arg0, %c1_i32 : i32
    %1 = arith.addi %0, %arg1 : i32
    %c0_i32 = arith.constant 0 : i32
    %c0_i32_0 = arith.constant 0 : i32
    %c0_i32_1 = arith.constant 0 : i32
    return %1, %c0_i32, %c0_i32_0 : i32, i32, i32
  }
  func.func @transform_10(%arg0: i32, %arg1: i32) -> (i32, i32, i32) {
    %c1_i32 = arith.constant 1 : i32
    %0 = arith.muli %arg0, %c1_i32 : i32
    %1 = arith.addi %0, %arg1 : i32
    %c0_i32 = arith.constant 0 : i32
    %c0_i32_0 = arith.constant 0 : i32
    %c0_i32_1 = arith.constant 0 : i32
    return %1, %c0_i32, %c0_i32_0 : i32, i32, i32
  }
}

module attributes {stable_mosaic.version = 11 : i64} {
  func.func @kernel(%arg0: i32, %arg1: i32, %arg2: memref<2x16x32xf32, #tpu.memory_space<vmem>>, %arg3: memref<2x16x32xf32, #tpu.memory_space<vmem>>, %arg4: memref<1x32xf32, #tpu.memory_space<vmem>>, %arg5: memref<32x96xbf16, #tpu.memory_space<vmem>>, %arg6: memref<32x32xbf16, #tpu.memory_space<vmem>>, %arg7: memref<1x32xf32, #tpu.memory_space<vmem>>, %arg8: memref<32x128xbf16, #tpu.memory_space<vmem>>, %arg9: memref<32x128xbf16, #tpu.memory_space<vmem>>, %arg10: memref<128x32xbf16, #tpu.memory_space<vmem>>, %arg11: memref<2x16x32xf32, #tpu.memory_space<vmem>>, %arg12: memref<2x1x1xf32, #tpu.memory_space<vmem>>) attributes {dimension_semantics = [#tpu.dimension_semantics<parallel>, #tpu.dimension_semantics<parallel>], iteration_bounds = array<i64: 2, 1>, scalar_prefetch = 0 : i64, scratch_operands = 0 : i64, tpu.core_type = #tpu.core_type<tc>, window_params = [{transform_indices = @transform_0, window_bounds = array<i64: 2, 16, 32>}, {transform_indices = @transform_1, window_bounds = array<i64: 2, 16, 32>}, {pipeline_mode = #tpu.pipeline_mode<synchronous>, transform_indices = @transform_2, window_bounds = array<i64: 1, 32>}, {pipeline_mode = #tpu.pipeline_mode<synchronous>, transform_indices = @transform_3, window_bounds = array<i64: 32, 96>}, {pipeline_mode = #tpu.pipeline_mode<synchronous>, transform_indices = @transform_4, window_bounds = array<i64: 32, 32>}, {pipeline_mode = #tpu.pipeline_mode<synchronous>, transform_indices = @transform_5, window_bounds = array<i64: 1, 32>}, {pipeline_mode = #tpu.pipeline_mode<synchronous>, transform_indices = @transform_6, window_bounds = array<i64: 32, 128>}, {pipeline_mode = #tpu.pipeline_mode<synchronous>, transform_indices = @transform_7, window_bounds = array<i64: 32, 128>}, {pipeline_mode = #tpu.pipeline_mode<synchronous>, transform_indices = @transform_8, window_bounds = array<i64: 128, 32>}, {transform_indices = @transform_9, window_bounds = array<i64: 2, 16, 32>}, {transform_indices = @transform_10, window_bounds = array<i64: 2, 1, 1>}]} {
    %c0_i32 = arith.constant 0 : i32
    %0 = arith.cmpi eq, %arg0, %c0_i32 : i32
    %c0 = arith.constant 0 : index
    %c0_0 = arith.constant 0 : index
    %c0_1 = arith.constant 0 : index
    %1 = vector.load %arg2[%c0, %c0_0, %c0_1] : memref<2x16x32xf32, #tpu.memory_space<vmem>>, vector<2x16x32xf32>
    %c0_2 = arith.constant 0 : index
    %c0_3 = arith.constant 0 : index
    %c0_4 = arith.constant 0 : index
    %2 = vector.load %arg3[%c0_2, %c0_3, %c0_4] : memref<2x16x32xf32, #tpu.memory_space<vmem>>, vector<2x16x32xf32>
    %3 = arith.select %0, %1, %2 : vector<2x16x32xf32>
    %4 = vector.shape_cast %3 : vector<2x16x32xf32> to vector<32x32xf32>
    %5 = arith.mulf %4, %4 : vector<32x32xf32>
    %cst = arith.constant dense<0.000000e+00> : vector<32xf32>
    %6 = vector.multi_reduction <add>, %5, %cst [1] : vector<32x32xf32> to vector<32xf32>
    %7 = vector.shape_cast %6 : vector<32xf32> to vector<32x1xf32>
    %cst_5 = arith.constant 3.200000e+01 : f32
    %8 = vector.broadcast %cst_5 : f32 to vector<32x1xf32>
    %9 = arith.divf %7, %8 : vector<32x1xf32>
    %cst_6 = arith.constant 9.99999997E-7 : f32
    %10 = vector.broadcast %cst_6 : f32 to vector<32x1xf32>
    %11 = arith.addf %9, %10 : vector<32x1xf32>
    %12 = math.rsqrt %11 : vector<32x1xf32>
    %13 = vector.broadcast %12 : vector<32x1xf32> to vector<32x32xf32>
    %14 = arith.mulf %4, %13 : vector<32x32xf32>
    %c0_7 = arith.constant 0 : index
    %c0_8 = arith.constant 0 : index
    %15 = vector.load %arg4[%c0_7, %c0_8] : memref<1x32xf32, #tpu.memory_space<vmem>>, vector<1x32xf32>
    %16 = vector.broadcast %15 : vector<1x32xf32> to vector<32x32xf32>
    %17 = arith.mulf %14, %16 : vector<32x32xf32>
    %18 = arith.truncf %17 : vector<32x32xf32> to vector<32x32xbf16>
    %c0_9 = arith.constant 0 : index
    %c0_10 = arith.constant 0 : index
    %19 = vector.load %arg5[%c0_9, %c0_10] : memref<32x96xbf16, #tpu.memory_space<vmem>>, vector<32x96xbf16>
    %cst_11 = arith.constant dense<0.000000e+00> : vector<32x96xf32>
    %20 = tpu.matmul %18, %19, %cst_11 {dimension_numbers = #tpu.dot_dimension_numbers<[1], [0], [0], [1], [0, 0, 1, 1], [], []>} : vector<32x32xbf16>, vector<32x96xbf16>, vector<32x96xf32> -> vector<32x96xf32>
    %21 = vector.shape_cast %20 : vector<32x96xf32> to vector<2x16x96xf32>
    %c0_12 = arith.constant 0 : index
    %c0_13 = arith.constant 0 : index
    %22 = vector.load %arg6[%c0_12, %c0_13] : memref<32x32xbf16, #tpu.memory_space<vmem>>, vector<32x32xbf16>
    %cst_14 = arith.constant 0.000000e+00 : f32
    %23 = vector.broadcast %cst_14 : f32 to vector<32x32xf32>
    %24 = vector.extract_strided_slice %21 {offsets = [0, 0, 0], sizes = [2, 16, 8], strides = [1, 1, 1]} : vector<2x16x96xf32> to vector<2x16x8xf32>
    %25 = arith.truncf %24 : vector<2x16x8xf32> to vector<2x16x8xbf16>
    %26 = vector.extract_strided_slice %21 {offsets = [0, 0, 32], sizes = [2, 16, 8], strides = [1, 1, 1]} : vector<2x16x96xf32> to vector<2x16x8xf32>
    %27 = arith.truncf %26 : vector<2x16x8xf32> to vector<2x16x8xbf16>
    %28 = vector.extract_strided_slice %21 {offsets = [0, 0, 64], sizes = [2, 16, 8], strides = [1, 1, 1]} : vector<2x16x96xf32> to vector<2x16x8xf32>
    %29 = arith.truncf %28 : vector<2x16x8xf32> to vector<2x16x8xbf16>
    "tpu.trace_start"() <{level = 10 : i32, message = "bqd,bkd->bqk"}> : () -> ()
    %cst_15 = arith.constant dense<0.000000e+00> : vector<2x16x16xf32>
    %30 = tpu.matmul %25, %27, %cst_15 {dimension_numbers = #tpu.dot_dimension_numbers<[2], [2], [1], [1], [0, 0, 0, 1, 1, 1], [0], [0]>} : vector<2x16x8xbf16>, vector<2x16x8xbf16>, vector<2x16x16xf32> -> vector<2x16x16xf32>
    "tpu.trace_stop"() : () -> ()
    %cst_16 = arith.constant 0.353553385 : f32
    %31 = vector.broadcast %cst_16 : f32 to vector<2x16x16xf32>
    %32 = arith.mulf %30, %31 : vector<2x16x16xf32>
    %cst_17 = arith.constant dense<0xFF800000> : vector<2x16xf32>
    %33 = vector.multi_reduction <maximumf>, %32, %cst_17 [2] : vector<2x16x16xf32> to vector<2x16xf32>
    %34 = vector.shape_cast %33 : vector<2x16xf32> to vector<2x16x1xf32>
    %35 = vector.broadcast %34 : vector<2x16x1xf32> to vector<2x16x16xf32>
    %36 = arith.subf %32, %35 : vector<2x16x16xf32>
    %37 = math.exp %36 : vector<2x16x16xf32>
    %cst_18 = arith.constant dense<0.000000e+00> : vector<2x16xf32>
    %38 = vector.multi_reduction <add>, %37, %cst_18 [2] : vector<2x16x16xf32> to vector<2x16xf32>
    %39 = vector.shape_cast %38 : vector<2x16xf32> to vector<2x16x1xf32>
    %40 = tpu.reciprocal %39 {approx = true} : vector<2x16x1xf32> -> vector<2x16x1xf32>
    %41 = vector.broadcast %40 : vector<2x16x1xf32> to vector<2x16x16xf32>
    %42 = arith.mulf %37, %41 : vector<2x16x16xf32>
    %43 = arith.truncf %42 : vector<2x16x16xf32> to vector<2x16x16xbf16>
    "tpu.trace_start"() <{level = 10 : i32, message = "bqk,bkd->bqd"}> : () -> ()
    %cst_19 = arith.constant dense<0.000000e+00> : vector<2x16x8xf32>
    %44 = tpu.matmul %43, %29, %cst_19 {dimension_numbers = #tpu.dot_dimension_numbers<[2], [1], [1], [2], [0, 0, 0, 1, 1, 2], [0], [0]>} : vector<2x16x16xbf16>, vector<2x16x8xbf16>, vector<2x16x8xf32> -> vector<2x16x8xf32>
    "tpu.trace_stop"() : () -> ()
    %45 = vector.shape_cast %44 : vector<2x16x8xf32> to vector<32x8xf32>
    %46 = arith.truncf %45 : vector<32x8xf32> to vector<32x8xbf16>
    %47 = vector.extract_strided_slice %22 {offsets = [0, 0], sizes = [8, 32], strides = [1, 1]} : vector<32x32xbf16> to vector<8x32xbf16>
    %cst_20 = arith.constant dense<0.000000e+00> : vector<32x32xf32>
    %48 = tpu.matmul %46, %47, %cst_20 {dimension_numbers = #tpu.dot_dimension_numbers<[1], [0], [0], [1], [0, 0, 1, 1], [], []>} : vector<32x8xbf16>, vector<8x32xbf16>, vector<32x32xf32> -> vector<32x32xf32>
    %49 = arith.addf %23, %48 : vector<32x32xf32>
    %50 = vector.extract_strided_slice %21 {offsets = [0, 0, 8], sizes = [2, 16, 8], strides = [1, 1, 1]} : vector<2x16x96xf32> to vector<2x16x8xf32>
    %51 = arith.truncf %50 : vector<2x16x8xf32> to vector<2x16x8xbf16>
    %52 = vector.extract_strided_slice %21 {offsets = [0, 0, 40], sizes = [2, 16, 8], strides = [1, 1, 1]} : vector<2x16x96xf32> to vector<2x16x8xf32>
    %53 = arith.truncf %52 : vector<2x16x8xf32> to vector<2x16x8xbf16>
    %54 = vector.extract_strided_slice %21 {offsets = [0, 0, 72], sizes = [2, 16, 8], strides = [1, 1, 1]} : vector<2x16x96xf32> to vector<2x16x8xf32>
    %55 = arith.truncf %54 : vector<2x16x8xf32> to vector<2x16x8xbf16>
    "tpu.trace_start"() <{level = 10 : i32, message = "bqd,bkd->bqk"}> : () -> ()
    %cst_21 = arith.constant dense<0.000000e+00> : vector<2x16x16xf32>
    %56 = tpu.matmul %51, %53, %cst_21 {dimension_numbers = #tpu.dot_dimension_numbers<[2], [2], [1], [1], [0, 0, 0, 1, 1, 1], [0], [0]>} : vector<2x16x8xbf16>, vector<2x16x8xbf16>, vector<2x16x16xf32> -> vector<2x16x16xf32>
    "tpu.trace_stop"() : () -> ()
    %cst_22 = arith.constant 0.353553385 : f32
    %57 = vector.broadcast %cst_22 : f32 to vector<2x16x16xf32>
    %58 = arith.mulf %56, %57 : vector<2x16x16xf32>
    %cst_23 = arith.constant dense<0xFF800000> : vector<2x16xf32>
    %59 = vector.multi_reduction <maximumf>, %58, %cst_23 [2] : vector<2x16x16xf32> to vector<2x16xf32>
    %60 = vector.shape_cast %59 : vector<2x16xf32> to vector<2x16x1xf32>
    %61 = vector.broadcast %60 : vector<2x16x1xf32> to vector<2x16x16xf32>
    %62 = arith.subf %58, %61 : vector<2x16x16xf32>
    %63 = math.exp %62 : vector<2x16x16xf32>
    %cst_24 = arith.constant dense<0.000000e+00> : vector<2x16xf32>
    %64 = vector.multi_reduction <add>, %63, %cst_24 [2] : vector<2x16x16xf32> to vector<2x16xf32>
    %65 = vector.shape_cast %64 : vector<2x16xf32> to vector<2x16x1xf32>
    %66 = tpu.reciprocal %65 {approx = true} : vector<2x16x1xf32> -> vector<2x16x1xf32>
    %67 = vector.broadcast %66 : vector<2x16x1xf32> to vector<2x16x16xf32>
    %68 = arith.mulf %63, %67 : vector<2x16x16xf32>
    %69 = arith.truncf %68 : vector<2x16x16xf32> to vector<2x16x16xbf16>
    "tpu.trace_start"() <{level = 10 : i32, message = "bqk,bkd->bqd"}> : () -> ()
    %cst_25 = arith.constant dense<0.000000e+00> : vector<2x16x8xf32>
    %70 = tpu.matmul %69, %55, %cst_25 {dimension_numbers = #tpu.dot_dimension_numbers<[2], [1], [1], [2], [0, 0, 0, 1, 1, 2], [0], [0]>} : vector<2x16x16xbf16>, vector<2x16x8xbf16>, vector<2x16x8xf32> -> vector<2x16x8xf32>
    "tpu.trace_stop"() : () -> ()
    %71 = vector.shape_cast %70 : vector<2x16x8xf32> to vector<32x8xf32>
    %72 = arith.truncf %71 : vector<32x8xf32> to vector<32x8xbf16>
    %73 = vector.extract_strided_slice %22 {offsets = [8, 0], sizes = [8, 32], strides = [1, 1]} : vector<32x32xbf16> to vector<8x32xbf16>
    %cst_26 = arith.constant dense<0.000000e+00> : vector<32x32xf32>
    %74 = tpu.matmul %72, %73, %cst_26 {dimension_numbers = #tpu.dot_dimension_numbers<[1], [0], [0], [1], [0, 0, 1, 1], [], []>} : vector<32x8xbf16>, vector<8x32xbf16>, vector<32x32xf32> -> vector<32x32xf32>
    %75 = arith.addf %49, %74 : vector<32x32xf32>
    %76 = vector.extract_strided_slice %21 {offsets = [0, 0, 16], sizes = [2, 16, 8], strides = [1, 1, 1]} : vector<2x16x96xf32> to vector<2x16x8xf32>
    %77 = arith.truncf %76 : vector<2x16x8xf32> to vector<2x16x8xbf16>
    %78 = vector.extract_strided_slice %21 {offsets = [0, 0, 48], sizes = [2, 16, 8], strides = [1, 1, 1]} : vector<2x16x96xf32> to vector<2x16x8xf32>
    %79 = arith.truncf %78 : vector<2x16x8xf32> to vector<2x16x8xbf16>
    %80 = vector.extract_strided_slice %21 {offsets = [0, 0, 80], sizes = [2, 16, 8], strides = [1, 1, 1]} : vector<2x16x96xf32> to vector<2x16x8xf32>
    %81 = arith.truncf %80 : vector<2x16x8xf32> to vector<2x16x8xbf16>
    "tpu.trace_start"() <{level = 10 : i32, message = "bqd,bkd->bqk"}> : () -> ()
    %cst_27 = arith.constant dense<0.000000e+00> : vector<2x16x16xf32>
    %82 = tpu.matmul %77, %79, %cst_27 {dimension_numbers = #tpu.dot_dimension_numbers<[2], [2], [1], [1], [0, 0, 0, 1, 1, 1], [0], [0]>} : vector<2x16x8xbf16>, vector<2x16x8xbf16>, vector<2x16x16xf32> -> vector<2x16x16xf32>
    "tpu.trace_stop"() : () -> ()
    %cst_28 = arith.constant 0.353553385 : f32
    %83 = vector.broadcast %cst_28 : f32 to vector<2x16x16xf32>
    %84 = arith.mulf %82, %83 : vector<2x16x16xf32>
    %cst_29 = arith.constant dense<0xFF800000> : vector<2x16xf32>
    %85 = vector.multi_reduction <maximumf>, %84, %cst_29 [2] : vector<2x16x16xf32> to vector<2x16xf32>
    %86 = vector.shape_cast %85 : vector<2x16xf32> to vector<2x16x1xf32>
    %87 = vector.broadcast %86 : vector<2x16x1xf32> to vector<2x16x16xf32>
    %88 = arith.subf %84, %87 : vector<2x16x16xf32>
    %89 = math.exp %88 : vector<2x16x16xf32>
    %cst_30 = arith.constant dense<0.000000e+00> : vector<2x16xf32>
    %90 = vector.multi_reduction <add>, %89, %cst_30 [2] : vector<2x16x16xf32> to vector<2x16xf32>
    %91 = vector.shape_cast %90 : vector<2x16xf32> to vector<2x16x1xf32>
    %92 = tpu.reciprocal %91 {approx = true} : vector<2x16x1xf32> -> vector<2x16x1xf32>
    %93 = vector.broadcast %92 : vector<2x16x1xf32> to vector<2x16x16xf32>
    %94 = arith.mulf %89, %93 : vector<2x16x16xf32>
    %95 = arith.truncf %94 : vector<2x16x16xf32> to vector<2x16x16xbf16>
    "tpu.trace_start"() <{level = 10 : i32, message = "bqk,bkd->bqd"}> : () -> ()
    %cst_31 = arith.constant dense<0.000000e+00> : vector<2x16x8xf32>
    %96 = tpu.matmul %95, %81, %cst_31 {dimension_numbers = #tpu.dot_dimension_numbers<[2], [1], [1], [2], [0, 0, 0, 1, 1, 2], [0], [0]>} : vector<2x16x16xbf16>, vector<2x16x8xbf16>, vector<2x16x8xf32> -> vector<2x16x8xf32>
    "tpu.trace_stop"() : () -> ()
    %97 = vector.shape_cast %96 : vector<2x16x8xf32> to vector<32x8xf32>
    %98 = arith.truncf %97 : vector<32x8xf32> to vector<32x8xbf16>
    %99 = vector.extract_strided_slice %22 {offsets = [16, 0], sizes = [8, 32], strides = [1, 1]} : vector<32x32xbf16> to vector<8x32xbf16>
    %cst_32 = arith.constant dense<0.000000e+00> : vector<32x32xf32>
    %100 = tpu.matmul %98, %99, %cst_32 {dimension_numbers = #tpu.dot_dimension_numbers<[1], [0], [0], [1], [0, 0, 1, 1], [], []>} : vector<32x8xbf16>, vector<8x32xbf16>, vector<32x32xf32> -> vector<32x32xf32>
    %101 = arith.addf %75, %100 : vector<32x32xf32>
    %102 = vector.extract_strided_slice %21 {offsets = [0, 0, 24], sizes = [2, 16, 8], strides = [1, 1, 1]} : vector<2x16x96xf32> to vector<2x16x8xf32>
    %103 = arith.truncf %102 : vector<2x16x8xf32> to vector<2x16x8xbf16>
    %104 = vector.extract_strided_slice %21 {offsets = [0, 0, 56], sizes = [2, 16, 8], strides = [1, 1, 1]} : vector<2x16x96xf32> to vector<2x16x8xf32>
    %105 = arith.truncf %104 : vector<2x16x8xf32> to vector<2x16x8xbf16>
    %106 = vector.extract_strided_slice %21 {offsets = [0, 0, 88], sizes = [2, 16, 8], strides = [1, 1, 1]} : vector<2x16x96xf32> to vector<2x16x8xf32>
    %107 = arith.truncf %106 : vector<2x16x8xf32> to vector<2x16x8xbf16>
    "tpu.trace_start"() <{level = 10 : i32, message = "bqd,bkd->bqk"}> : () -> ()
    %cst_33 = arith.constant dense<0.000000e+00> : vector<2x16x16xf32>
    %108 = tpu.matmul %103, %105, %cst_33 {dimension_numbers = #tpu.dot_dimension_numbers<[2], [2], [1], [1], [0, 0, 0, 1, 1, 1], [0], [0]>} : vector<2x16x8xbf16>, vector<2x16x8xbf16>, vector<2x16x16xf32> -> vector<2x16x16xf32>
    "tpu.trace_stop"() : () -> ()
    %cst_34 = arith.constant 0.353553385 : f32
    %109 = vector.broadcast %cst_34 : f32 to vector<2x16x16xf32>
    %110 = arith.mulf %108, %109 : vector<2x16x16xf32>
    %cst_35 = arith.constant dense<0xFF800000> : vector<2x16xf32>
    %111 = vector.multi_reduction <maximumf>, %110, %cst_35 [2] : vector<2x16x16xf32> to vector<2x16xf32>
    %112 = vector.shape_cast %111 : vector<2x16xf32> to vector<2x16x1xf32>
    %113 = vector.broadcast %112 : vector<2x16x1xf32> to vector<2x16x16xf32>
    %114 = arith.subf %110, %113 : vector<2x16x16xf32>
    %115 = math.exp %114 : vector<2x16x16xf32>
    %cst_36 = arith.constant dense<0.000000e+00> : vector<2x16xf32>
    %116 = vector.multi_reduction <add>, %115, %cst_36 [2] : vector<2x16x16xf32> to vector<2x16xf32>
    %117 = vector.shape_cast %116 : vector<2x16xf32> to vector<2x16x1xf32>
    %118 = tpu.reciprocal %117 {approx = true} : vector<2x16x1xf32> -> vector<2x16x1xf32>
    %119 = vector.broadcast %118 : vector<2x16x1xf32> to vector<2x16x16xf32>
    %120 = arith.mulf %115, %119 : vector<2x16x16xf32>
    %121 = arith.truncf %120 : vector<2x16x16xf32> to vector<2x16x16xbf16>
    "tpu.trace_start"() <{level = 10 : i32, message = "bqk,bkd->bqd"}> : () -> ()
    %cst_37 = arith.constant dense<0.000000e+00> : vector<2x16x8xf32>
    %122 = tpu.matmul %121, %107, %cst_37 {dimension_numbers = #tpu.dot_dimension_numbers<[2], [1], [1], [2], [0, 0, 0, 1, 1, 2], [0], [0]>} : vector<2x16x16xbf16>, vector<2x16x8xbf16>, vector<2x16x8xf32> -> vector<2x16x8xf32>
    "tpu.trace_stop"() : () -> ()
    %123 = vector.shape_cast %122 : vector<2x16x8xf32> to vector<32x8xf32>
    %124 = arith.truncf %123 : vector<32x8xf32> to vector<32x8xbf16>
    %125 = vector.extract_strided_slice %22 {offsets = [24, 0], sizes = [8, 32], strides = [1, 1]} : vector<32x32xbf16> to vector<8x32xbf16>
    %cst_38 = arith.constant dense<0.000000e+00> : vector<32x32xf32>
    %126 = tpu.matmul %124, %125, %cst_38 {dimension_numbers = #tpu.dot_dimension_numbers<[1], [0], [0], [1], [0, 0, 1, 1], [], []>} : vector<32x8xbf16>, vector<8x32xbf16>, vector<32x32xf32> -> vector<32x32xf32>
    %127 = arith.addf %101, %126 : vector<32x32xf32>
    %128 = arith.addf %4, %127 : vector<32x32xf32>
    %129 = arith.mulf %128, %128 : vector<32x32xf32>
    %cst_39 = arith.constant dense<0.000000e+00> : vector<32xf32>
    %130 = vector.multi_reduction <add>, %129, %cst_39 [1] : vector<32x32xf32> to vector<32xf32>
    %131 = vector.shape_cast %130 : vector<32xf32> to vector<32x1xf32>
    %cst_40 = arith.constant 3.200000e+01 : f32
    %132 = vector.broadcast %cst_40 : f32 to vector<32x1xf32>
    %133 = arith.divf %131, %132 : vector<32x1xf32>
    %cst_41 = arith.constant 9.99999997E-7 : f32
    %134 = vector.broadcast %cst_41 : f32 to vector<32x1xf32>
    %135 = arith.addf %133, %134 : vector<32x1xf32>
    %136 = math.rsqrt %135 : vector<32x1xf32>
    %137 = vector.broadcast %136 : vector<32x1xf32> to vector<32x32xf32>
    %138 = arith.mulf %128, %137 : vector<32x32xf32>
    %c0_42 = arith.constant 0 : index
    %c0_43 = arith.constant 0 : index
    %139 = vector.load %arg7[%c0_42, %c0_43] : memref<1x32xf32, #tpu.memory_space<vmem>>, vector<1x32xf32>
    %140 = vector.broadcast %139 : vector<1x32xf32> to vector<32x32xf32>
    %141 = arith.mulf %138, %140 : vector<32x32xf32>
    %142 = arith.truncf %141 : vector<32x32xf32> to vector<32x32xbf16>
    %c0_44 = arith.constant 0 : index
    %c0_45 = arith.constant 0 : index
    %143 = vector.load %arg8[%c0_44, %c0_45] : memref<32x128xbf16, #tpu.memory_space<vmem>>, vector<32x128xbf16>
    %cst_46 = arith.constant dense<0.000000e+00> : vector<32x128xf32>
    %144 = tpu.matmul %142, %143, %cst_46 {dimension_numbers = #tpu.dot_dimension_numbers<[1], [0], [0], [1], [0, 0, 1, 1], [], []>} : vector<32x32xbf16>, vector<32x128xbf16>, vector<32x128xf32> -> vector<32x128xf32>
    %c0_47 = arith.constant 0 : index
    %c0_48 = arith.constant 0 : index
    %145 = vector.load %arg9[%c0_47, %c0_48] : memref<32x128xbf16, #tpu.memory_space<vmem>>, vector<32x128xbf16>
    %cst_49 = arith.constant dense<0.000000e+00> : vector<32x128xf32>
    %146 = tpu.matmul %142, %145, %cst_49 {dimension_numbers = #tpu.dot_dimension_numbers<[1], [0], [0], [1], [0, 0, 1, 1], [], []>} : vector<32x32xbf16>, vector<32x128xbf16>, vector<32x128xf32> -> vector<32x128xf32>
    %147 = arith.negf %144 : vector<32x128xf32>
    %148 = math.exp %147 : vector<32x128xf32>
    %cst_50 = arith.constant 1.000000e+00 : f32
    %149 = vector.broadcast %cst_50 : f32 to vector<32x128xf32>
    %150 = arith.addf %149, %148 : vector<32x128xf32>
    %151 = arith.divf %149, %150 : vector<32x128xf32>
    %152 = arith.mulf %144, %151 : vector<32x128xf32>
    %153 = arith.mulf %152, %146 : vector<32x128xf32>
    %154 = arith.truncf %153 : vector<32x128xf32> to vector<32x128xbf16>
    %c0_51 = arith.constant 0 : index
    %c0_52 = arith.constant 0 : index
    %155 = vector.load %arg10[%c0_51, %c0_52] : memref<128x32xbf16, #tpu.memory_space<vmem>>, vector<128x32xbf16>
    %cst_53 = arith.constant dense<0.000000e+00> : vector<32x32xf32>
    %156 = tpu.matmul %154, %155, %cst_53 {dimension_numbers = #tpu.dot_dimension_numbers<[1], [0], [0], [1], [0, 0, 1, 1], [], []>} : vector<32x128xbf16>, vector<128x32xbf16>, vector<32x32xf32> -> vector<32x32xf32>
    %157 = arith.addf %128, %156 : vector<32x32xf32>
    %158 = vector.shape_cast %157 : vector<32x32xf32> to vector<2x16x32xf32>
    %c0_54 = arith.constant 0 : index
    %c0_55 = arith.constant 0 : index
    %c0_56 = arith.constant 0 : index
    %159 = vector.load %arg11[%c0_54, %c0_55, %c0_56] : memref<2x16x32xf32, #tpu.memory_space<vmem>>, vector<2x16x32xf32>
    tpu.vector_store %arg11[%c0_54, %c0_55, %c0_56], %158 {strides = array<i32>} : memref<2x16x32xf32, #tpu.memory_space<vmem>>, vector<2x16x32xf32>,
    %160 = arith.mulf %158, %158 : vector<2x16x32xf32>
    %cst_57 = arith.constant dense<0.000000e+00> : vector<2x16xf32>
    %161 = vector.multi_reduction <add>, %160, %cst_57 [2] : vector<2x16x32xf32> to vector<2x16xf32>
    %162 = vector.shape_cast %161 : vector<2x16xf32> to vector<2x16x1xf32>
    %cst_58 = arith.constant dense<0.000000e+00> : vector<2x1xf32>
    %163 = vector.multi_reduction <add>, %162, %cst_58 [1] : vector<2x16x1xf32> to vector<2x1xf32>
    %164 = vector.shape_cast %163 : vector<2x1xf32> to vector<2x1x1xf32>
    %c0_59 = arith.constant 0 : index
    %c0_60 = arith.constant 0 : index
    %c0_61 = arith.constant 0 : index
    %165 = vector.load %arg12[%c0_59, %c0_60, %c0_61] : memref<2x1x1xf32, #tpu.memory_space<vmem>>, vector<2x1x1xf32>
    tpu.vector_store %arg12[%c0_59, %c0_60, %c0_61], %164 {strides = array<i32>} : memref<2x1x1xf32, #tpu.memory_space<vmem>>, vector<2x1x1xf32>,
    return
  }
  func.func @transform_0(%arg0: i32, %arg1: i32) -> (i32, i32, i32) {
    %c1_i32 = arith.constant 1 : i32
    %0 = arith.subi %c1_i32, %arg0 : i32
    %1 = arith.muli %arg1, %0 : i32
    %c0_i32 = arith.constant 0 : i32
    %c0_i32_0 = arith.constant 0 : i32
    %c0_i32_1 = arith.constant 0 : i32
    return %1, %c0_i32, %c0_i32_0 : i32, i32, i32
  }
  func.func @transform_1(%arg0: i32, %arg1: i32) -> (i32, i32, i32) {
    %0 = arith.muli %arg1, %arg0 : i32
    %c0_i32 = arith.constant 0 : i32
    %c0_i32_0 = arith.constant 0 : i32
    %c0_i32_1 = arith.constant 0 : i32
    return %0, %c0_i32, %c0_i32_0 : i32, i32, i32
  }
  func.func @transform_2(%arg0: i32, %arg1: i32) -> (i32, i32) {
    %c0_i32 = arith.constant 0 : i32
    %c0_i32_0 = arith.constant 0 : i32
    %c0_i32_1 = arith.constant 0 : i32
    return %c0_i32, %c0_i32_0 : i32, i32
  }
  func.func @transform_3(%arg0: i32, %arg1: i32) -> (i32, i32) {
    %c0_i32 = arith.constant 0 : i32
    %c0_i32_0 = arith.constant 0 : i32
    %c0_i32_1 = arith.constant 0 : i32
    return %c0_i32, %c0_i32_0 : i32, i32
  }
  func.func @transform_4(%arg0: i32, %arg1: i32) -> (i32, i32) {
    %c0_i32 = arith.constant 0 : i32
    %c0_i32_0 = arith.constant 0 : i32
    %c0_i32_1 = arith.constant 0 : i32
    return %c0_i32, %c0_i32_0 : i32, i32
  }
  func.func @transform_5(%arg0: i32, %arg1: i32) -> (i32, i32) {
    %c0_i32 = arith.constant 0 : i32
    %c0_i32_0 = arith.constant 0 : i32
    %c0_i32_1 = arith.constant 0 : i32
    return %c0_i32, %c0_i32_0 : i32, i32
  }
  func.func @transform_6(%arg0: i32, %arg1: i32) -> (i32, i32) {
    %c0_i32 = arith.constant 0 : i32
    %c0_i32_0 = arith.constant 0 : i32
    %c0_i32_1 = arith.constant 0 : i32
    return %c0_i32, %c0_i32_0 : i32, i32
  }
  func.func @transform_7(%arg0: i32, %arg1: i32) -> (i32, i32) {
    %c0_i32 = arith.constant 0 : i32
    %c0_i32_0 = arith.constant 0 : i32
    %c0_i32_1 = arith.constant 0 : i32
    return %c0_i32, %c0_i32_0 : i32, i32
  }
  func.func @transform_8(%arg0: i32, %arg1: i32) -> (i32, i32) {
    %c0_i32 = arith.constant 0 : i32
    %c0_i32_0 = arith.constant 0 : i32
    %c0_i32_1 = arith.constant 0 : i32
    return %c0_i32, %c0_i32_0 : i32, i32
  }
  func.func @transform_9(%arg0: i32, %arg1: i32) -> (i32, i32, i32) {
    %c1_i32 = arith.constant 1 : i32
    %0 = arith.muli %arg0, %c1_i32 : i32
    %1 = arith.addi %0, %arg1 : i32
    %c0_i32 = arith.constant 0 : i32
    %c0_i32_0 = arith.constant 0 : i32
    %c0_i32_1 = arith.constant 0 : i32
    return %1, %c0_i32, %c0_i32_0 : i32, i32, i32
  }
  func.func @transform_10(%arg0: i32, %arg1: i32) -> (i32, i32, i32) {
    %c1_i32 = arith.constant 1 : i32
    %0 = arith.muli %arg0, %c1_i32 : i32
    %1 = arith.addi %0, %arg1 : i32
    %c0_i32 = arith.constant 0 : i32
    %c0_i32_0 = arith.constant 0 : i32
    %c0_i32_1 = arith.constant 0 : i32
    return %1, %c0_i32, %c0_i32_0 : i32, i32, i32
  }
}

</mosaic_0001>

<llo_original>
// kernel: _forward.1
$region0: #{_forward.1}
  #allocation0 [shape = 'u32[]', space=smem, size = 0x4, offset = 0x4, fixed_abs, tag = 'smem constant byte address 0x4 - core index']
  #allocation1 [shape = 'u32[72,128]{1,0:T(1,128)}', space=vmem, size = 0x9000, scoped, tag = 'internal scratch']
  %s0 = inlined_call_operand.vmem [shape: f32[2,16,32], index: 0, kind: input, shape index: {}]
  %s1 = inlined_call_operand.vmem [shape: f32[2,16,32], index: 1, kind: input, shape index: {}]
  %s2 = inlined_call_operand.vmem [shape: f32[1,32], index: 2, kind: input, shape index: {}]
  %s3 = inlined_call_operand.vmem [shape: bf16[32,96], index: 3, kind: input, shape index: {}]
  %s4 = inlined_call_operand.vmem [shape: bf16[32,32], index: 4, kind: input, shape index: {}]
  %s5 = inlined_call_operand.vmem [shape: f32[1,32], index: 5, kind: input, shape index: {}]
  %s6 = inlined_call_operand.vmem [shape: bf16[32,128], index: 6, kind: input, shape index: {}]
  %s7 = inlined_call_operand.vmem [shape: bf16[32,128], index: 7, kind: input, shape index: {}]
  %s8 = inlined_call_operand.vmem [shape: bf16[128,32], index: 8, kind: input, shape index: {}]
  %s9 = inlined_call_operand.vmem [shape: f32[4,16,32], index: 9, kind: output, shape index: {0}]
  %s10 = inlined_call_operand.vmem [shape: f32[4,1,1], index: 10, kind: output, shape index: {1}]
  %11 = xla_tuple %s9, %s10
  %s12 = sld [smem:[#allocation0]]
  $region77: #{_forward.1} parent=0
    _
  %s14 = ssub.s32 1, %s12
  %s15 = scalar_select 0, %s14, %s12
  loop: start=0, step=1, limit=4
  $region2: #{_forward.1} parent=0 // loop_pre_header
    _
  $region3: #{_forward.1} parent=0 // loop_header
    %s17 = sphi 0, %s21
    %p18 = scmp.ge.s32.totalorder %s17, 4
    %s24 = sphi 0, %s36
    %s25 = sphi 0, %s32
    %s26 = sphi 0, %s24
    %s27 = sphi 0, %s25
    %s28 = sphi 0, %s26
    %s29 = sphi 0, %s27
    %s43 = sphi 0, %s45
    %s46 = sphi 0, %s43
    %s47 = sphi 0, %s46
    %s63 = sphi 0, %s47
    %s71 = sphi 0, %s73
    %s74 = sphi 0, %s71
    %s75 = sphi 0, %s74
    %s91 = sphi 0, %s75
    %s95 = sphi 0, %s95
    %s97 = sphi 0, %s95
    %s98 = sphi 0, %s97
    %s112 = sphi 0, %s98
    %s116 = sphi 0, %s116
    %s118 = sphi 0, %s116
    %s119 = sphi 0, %s118
    %s133 = sphi 0, %s119
    %s137 = sphi 0, %s137
    %s139 = sphi 0, %s137
    %s140 = sphi 0, %s139
    %s154 = sphi 0, %s140
    %s158 = sphi 0, %s158
    %s160 = sphi 0, %s158
    %s161 = sphi 0, %s160
    %s175 = sphi 0, %s161
    %s179 = sphi 0, %s179
    %s181 = sphi 0, %s179
    %s182 = sphi 0, %s181
    %s196 = sphi 0, %s182
    %s200 = sphi 0, %s200
    %s202 = sphi 0, %s200
    %s203 = sphi 0, %s202
    %s217 = sphi 0, %s203
    %s221 = sphi 0, %s221
    %s223 = sphi 0, %s221
    %s224 = sphi 0, %s223
    %s238 = sphi 0, %s224
    %s246 = sphi 0, %s248
    %s249 = sphi 0, %s246
    %s250 = sphi 0, %s249
    %s266 = sphi 0, %s250
    %s274 = sphi 0, %s276
    %s277 = sphi 0, %s274
    %s278 = sphi 0, %s277
    %s294 = sphi 0, %s278
  $region4: #{_forward.1} parent=0 // loop_header_branch
    %20 = sbr.rel (%p18) target = $region8
  $region5: #{_forward.1} parent=0 // loop_body
    %s22 = ssub.s32 %s17, 1
    %s23 = ssub.s32 %s17, 2
    %s30 = sadd.s32 1, %s25
    %p31 = scmp.ge.s32.totalorder %s30, 1
    %s32 = scalar_select %p31, 0, %s30
    %s33 = sadd.s32 1, %s24
    %s34 = scalar_select %p31, %s33, %s24
    %p35 = scmp.ge.s32.totalorder %s34, 2
    %s36 = scalar_select %p35, 0, %s34
    %s37 = ssub.s32 1, %s24
    %s38 = smul.u32 %s25, %s37
    %s39 = ssub.s32 1, %s36
    %s40 = smul.u32 %s32, %s39
    %s41 = ssub.s32 %s38, %s40
    %p42 = scmp.eq.s32.totalorder %s41, 0
    %s44 = sadd.s32 %s43, 1
    %s45 = scalar_select %p42, %s43, %s44
    %p48 = pneg %p42
    %p49 = scmp.eq.s32.totalorder %s17, 1
    %p50 = por %p48, %p49
    %p51 = scmp.ne.s32.totalorder %s43, %s46
    %p52 = scmp.eq.s32.totalorder %s17, 0
    %p53 = por %p51, %p52
    %p54 = scmp.ne.s32.totalorder %s43, %s46
    %p55 = scmp.eq.s32.totalorder %s22, 1
    %p56 = por %p54, %p55
    %p57 = scmp.ne.s32.totalorder %s46, %s47
    %p58 = scmp.eq.s32.totalorder %s22, 0
    %p59 = por %p57, %p58
    %p60 = scmp.ne.s32.totalorder %s46, %s47
    %p61 = scmp.eq.s32.totalorder %s23, 1
    %p62 = por %p60, %p61
    %p64 = scmp.ne.s32.totalorder %s47, %s63
    %p65 = scmp.eq.s32.totalorder %s23, 0
    %p66 = por %p64, %p65
    %s67 = smul.u32 %s25, %s24
    %s68 = smul.u32 %s32, %s36
    %s69 = ssub.s32 %s67, %s68
    %p70 = scmp.eq.s32.totalorder %s69, 0
    %s72 = sadd.s32 %s71, 1
    %s73 = scalar_select %p70, %s71, %s72
    %p76 = pneg %p70
    %p77 = scmp.eq.s32.totalorder %s17, 1
    %p78 = por %p76, %p77
    %p79 = scmp.ne.s32.totalorder %s71, %s74
    %p80 = scmp.eq.s32.totalorder %s17, 0
    %p81 = por %p79, %p80
    %p82 = scmp.ne.s32.totalorder %s71, %s74
    %p83 = scmp.eq.s32.totalorder %s22, 1
    %p84 = por %p82, %p83
    %p85 = scmp.ne.s32.totalorder %s74, %s75
    %p86 = scmp.eq.s32.totalorder %s22, 0
    %p87 = por %p85, %p86
    %p88 = scmp.ne.s32.totalorder %s74, %s75
    %p89 = scmp.eq.s32.totalorder %s23, 1
    %p90 = por %p88, %p89
    %p92 = scmp.ne.s32.totalorder %s75, %s91
    %p93 = scmp.eq.s32.totalorder %s23, 0
    %p94 = por %p92, %p93
    %s96 = sadd.s32 %s95, 1
    %p99 = scmp.eq.s32.totalorder %s17, 1
    %p100 = scmp.ne.s32.totalorder %s95, %s97
    %p101 = scmp.eq.s32.totalorder %s17, 0
    %p102 = por %p100, %p101
    %p103 = scmp.ne.s32.totalorder %s95, %s97
    %p104 = scmp.eq.s32.totalorder %s22, 1
    %p105 = por %p103, %p104
    %p106 = scmp.ne.s32.totalorder %s97, %s98
    %p107 = scmp.eq.s32.totalorder %s22, 0
    %p108 = por %p106, %p107
    %p109 = scmp.ne.s32.totalorder %s97, %s98
    %p110 = scmp.eq.s32.totalorder %s23, 1
    %p111 = por %p109, %p110
    %p113 = scmp.ne.s32.totalorder %s98, %s112
    %p114 = scmp.eq.s32.totalorder %s23, 0
    %p115 = por %p113, %p114
    %s117 = sadd.s32 %s116, 1
    %p120 = scmp.eq.s32.totalorder %s17, 1
    %p121 = scmp.ne.s32.totalorder %s116, %s118
    %p122 = scmp.eq.s32.totalorder %s17, 0
    %p123 = por %p121, %p122
    %p124 = scmp.ne.s32.totalorder %s116, %s118
    %p125 = scmp.eq.s32.totalorder %s22, 1
    %p126 = por %p124, %p125
    %p127 = scmp.ne.s32.totalorder %s118, %s119
    %p128 = scmp.eq.s32.totalorder %s22, 0
    %p129 = por %p127, %p128
    %p130 = scmp.ne.s32.totalorder %s118, %s119
    %p131 = scmp.eq.s32.totalorder %s23, 1
    %p132 = por %p130, %p131
    %p134 = scmp.ne.s32.totalorder %s119, %s133
    %p135 = scmp.eq.s32.totalorder %s23, 0
    %p136 = por %p134, %p135
    %s138 = sadd.s32 %s137, 1
    %p141 = scmp.eq.s32.totalorder %s17, 1
    %p142 = scmp.ne.s32.totalorder %s137, %s139
    %p143 = scmp.eq.s32.totalorder %s17, 0
    %p144 = por %p142, %p143
    %p145 = scmp.ne.s32.totalorder %s137, %s139
    %p146 = scmp.eq.s32.totalorder %s22, 1
    %p147 = por %p145, %p146
    %p148 = scmp.ne.s32.totalorder %s139, %s140
    %p149 = scmp.eq.s32.totalorder %s22, 0
    %p150 = por %p148, %p149
    %p151 = scmp.ne.s32.totalorder %s139, %s140
    %p152 = scmp.eq.s32.totalorder %s23, 1
    %p153 = por %p151, %p152
    %p155 = scmp.ne.s32.totalorder %s140, %s154
    %p156 = scmp.eq.s32.totalorder %s23, 0
    %p157 = por %p155, %p156
    %s159 = sadd.s32 %s158, 1
    %p162 = scmp.eq.s32.totalorder %s17, 1
    %p163 = scmp.ne.s32.totalorder %s158, %s160
    %p164 = scmp.eq.s32.totalorder %s17, 0
    %p165 = por %p163, %p164
    %p166 = scmp.ne.s32.totalorder %s158, %s160
    %p167 = scmp.eq.s32.totalorder %s22, 1
    %p168 = por %p166, %p167
    %p169 = scmp.ne.s32.totalorder %s160, %s161
    %p170 = scmp.eq.s32.totalorder %s22, 0
    %p171 = por %p169, %p170
    %p172 = scmp.ne.s32.totalorder %s160, %s161
    %p173 = scmp.eq.s32.totalorder %s23, 1
    %p174 = por %p172, %p173
    %p176 = scmp.ne.s32.totalorder %s161, %s175
    %p177 = scmp.eq.s32.totalorder %s23, 0
    %p178 = por %p176, %p177
    %s180 = sadd.s32 %s179, 1
    %p183 = scmp.eq.s32.totalorder %s17, 1
    %p184 = scmp.ne.s32.totalorder %s179, %s181
    %p185 = scmp.eq.s32.totalorder %s17, 0
    %p186 = por %p184, %p185
    %p187 = scmp.ne.s32.totalorder %s179, %s181
    %p188 = scmp.eq.s32.totalorder %s22, 1
    %p189 = por %p187, %p188
    %p190 = scmp.ne.s32.totalorder %s181, %s182
    %p191 = scmp.eq.s32.totalorder %s22, 0
    %p192 = por %p190, %p191
    %p193 = scmp.ne.s32.totalorder %s181, %s182
    %p194 = scmp.eq.s32.totalorder %s23, 1
    %p195 = por %p193, %p194
    %p197 = scmp.ne.s32.totalorder %s182, %s196
    %p198 = scmp.eq.s32.totalorder %s23, 0
    %p199 = por %p197, %p198
    %s201 = sadd.s32 %s200, 1
    %p204 = scmp.eq.s32.totalorder %s17, 1
    %p205 = scmp.ne.s32.totalorder %s200, %s202
    %p206 = scmp.eq.s32.totalorder %s17, 0
    %p207 = por %p205, %p206
    %p208 = scmp.ne.s32.totalorder %s200, %s202
    %p209 = scmp.eq.s32.totalorder %s22, 1
    %p210 = por %p208, %p209
    %p211 = scmp.ne.s32.totalorder %s202, %s203
    %p212 = scmp.eq.s32.totalorder %s22, 0
    %p213 = por %p211, %p212
    %p214 = scmp.ne.s32.totalorder %s202, %s203
    %p215 = scmp.eq.s32.totalorder %s23, 1
    %p216 = por %p214, %p215
    %p218 = scmp.ne.s32.totalorder %s203, %s217
    %p219 = scmp.eq.s32.totalorder %s23, 0
    %p220 = por %p218, %p219
    %s222 = sadd.s32 %s221, 1
    %p225 = scmp.eq.s32.totalorder %s17, 1
    %p226 = scmp.ne.s32.totalorder %s221, %s223
    %p227 = scmp.eq.s32.totalorder %s17, 0
    %p228 = por %p226, %p227
    %p229 = scmp.ne.s32.totalorder %s221, %s223
    %p230 = scmp.eq.s32.totalorder %s22, 1
    %p231 = por %p229, %p230
    %p232 = scmp.ne.s32.totalorder %s223, %s224
    %p233 = scmp.eq.s32.totalorder %s22, 0
    %p234 = por %p232, %p233
    %p235 = scmp.ne.s32.totalorder %s223, %s224
    %p236 = scmp.eq.s32.totalorder %s23, 1
    %p237 = por %p235, %p236
    %p239 = scmp.ne.s32.totalorder %s224, %s238
    %p240 = scmp.eq.s32.totalorder %s23, 0
    %p241 = por %p239, %p240
    %s242 = sadd.s32 %s24, %s25
    %s243 = sadd.s32 %s36, %s32
    %s244 = ssub.s32 %s242, %s243
    %p245 = scmp.eq.s32.totalorder %s244, 0
    %s247 = sadd.s32 %s246, 1
    %s248 = scalar_select %p245, %s246, %s247
    %p251 = pneg %p245
    %p252 = scmp.eq.s32.totalorder %s17, 1
    %p253 = por %p251, %p252
    %p254 = scmp.ne.s32.totalorder %s246, %s249
    %p255 = scmp.eq.s32.totalorder %s17, 0
    %p256 = por %p254, %p255
    %p257 = scmp.ne.s32.totalorder %s246, %s249
    %p258 = scmp.eq.s32.totalorder %s22, 1
    %p259 = por %p257, %p258
    %p260 = scmp.ne.s32.totalorder %s249, %s250
    %p261 = scmp.eq.s32.totalorder %s22, 0
    %p262 = por %p260, %p261
    %p263 = scmp.ne.s32.totalorder %s249, %s250
    %p264 = scmp.eq.s32.totalorder %s23, 1
    %p265 = por %p263, %p264
    %p267 = scmp.ne.s32.totalorder %s250, %s266
    %p268 = scmp.eq.s32.totalorder %s23, 0
    %p269 = por %p267, %p268
    %s270 = sadd.s32 %s24, %s25
    %s271 = sadd.s32 %s36, %s32
    %s272 = ssub.s32 %s270, %s271
    %p273 = scmp.eq.s32.totalorder %s272, 0
    %s275 = sadd.s32 %s274, 1
    %s276 = scalar_select %p273, %s274, %s275
    %p279 = pneg %p273
    %p280 = scmp.eq.s32.totalorder %s17, 1
    %p281 = por %p279, %p280
    %p282 = scmp.ne.s32.totalorder %s274, %s277
    %p283 = scmp.eq.s32.totalorder %s17, 0
    %p284 = por %p282, %p283
    %p285 = scmp.ne.s32.totalorder %s274, %s277
    %p286 = scmp.eq.s32.totalorder %s22, 1
    %p287 = por %p285, %p286
    %p288 = scmp.ne.s32.totalorder %s277, %s278
    %p289 = scmp.eq.s32.totalorder %s22, 0
    %p290 = por %p288, %p289
    %p291 = scmp.ne.s32.totalorder %s277, %s278
    %p292 = scmp.eq.s32.totalorder %s23, 1
    %p293 = por %p291, %p292
    %p295 = scmp.ne.s32.totalorder %s278, %s294
    %p296 = scmp.eq.s32.totalorder %s23, 0
    %p297 = por %p295, %p296
    %p298 = scmp.le.s32.totalorder 1, %s17
    %p299 = scmp.lt.s32.totalorder %s17, 3
    %p300 = pnand %p298, %p299
    %p301 = pneg %p300
    // Predicated region
    $region9: #{_forward.1} parent=5 // pred_check
      _
    $region10: #{_forward.1} parent=5 // pred_check_branch
      %303 = sbr.rel (%p300) target = $region12
    $region11: #{_forward.1} parent=5 // pred_region
      %s304 = ssub.s32 %s17, 1
      // Predicated region
      $region13: #{_forward.1} parent=11 // pred_check
        %p305 = pneg %p108
      $region14: #{_forward.1} parent=11 // pred_check_branch
        %307 = sbr.rel (%p305) target = $region16
      $region15: #{_forward.1} parent=11 // pred_region
        _
      $region16: #{_forward.1} parent=11 // pred_fallthru
        _
      // Predicated region
      $region17: #{_forward.1} parent=11 // pred_check
        %p308 = pneg %p129
      $region18: #{_forward.1} parent=11 // pred_check_branch
        %310 = sbr.rel (%p308) target = $region20
      $region19: #{_forward.1} parent=11 // pred_region
        _
      $region20: #{_forward.1} parent=11 // pred_fallthru
        _
      // Predicated region
      $region21: #{_forward.1} parent=11 // pred_check
        %p311 = pneg %p150
      $region22: #{_forward.1} parent=11 // pred_check_branch
        %313 = sbr.rel (%p311) target = $region24
      $region23: #{_forward.1} parent=11 // pred_region
        _
      $region24: #{_forward.1} parent=11 // pred_fallthru
        _
      // Predicated region
      $region25: #{_forward.1} parent=11 // pred_check
        %p314 = pneg %p171
      $region26: #{_forward.1} parent=11 // pred_check_branch
        %316 = sbr.rel (%p314) target = $region28
      $region27: #{_forward.1} parent=11 // pred_region
        _
      $region28: #{_forward.1} parent=11 // pred_fallthru
        _
      // Predicated region
      $region29: #{_forward.1} parent=11 // pred_check
        %p317 = pneg %p192
      $region30: #{_forward.1} parent=11 // pred_check_branch
        %319 = sbr.rel (%p317) target = $region32
      $region31: #{_forward.1} parent=11 // pred_region
        _
      $region32: #{_forward.1} parent=11 // pred_fallthru
        _
      // Predicated region
      $region33: #{_forward.1} parent=11 // pred_check
        %p320 = pneg %p213
      $region34: #{_forward.1} parent=11 // pred_check_branch
        %322 = sbr.rel (%p320) target = $region36
      $region35: #{_forward.1} parent=11 // pred_region
        _
      $region36: #{_forward.1} parent=11 // pred_fallthru
        _
      // Predicated region
      $region37: #{_forward.1} parent=11 // pred_check
        %p323 = pneg %p234
      $region38: #{_forward.1} parent=11 // pred_check_branch
        %325 = sbr.rel (%p323) target = $region40
      $region39: #{_forward.1} parent=11 // pred_region
        _
      $region40: #{_forward.1} parent=11 // pred_fallthru
        _
    $region12: #{_forward.1} parent=5 // pred_fallthru
      _
    %p326 = scmp.lt.s32.totalorder %s17, 2
    // Predicated region
    $region41: #{_forward.1} parent=5 // pred_check
      %p327 = pneg %p326
    $region42: #{_forward.1} parent=5 // pred_check_branch
      %329 = sbr.rel (%p327) target = $region44
    $region43: #{_forward.1} parent=5 // pred_region
      // Predicated region
      $region45: #{_forward.1} parent=43 // pred_check
        %p330 = pneg %p53
      $region46: #{_forward.1} parent=43 // pred_check_branch
        %332 = sbr.rel (%p330) target = $region48
      $region47: #{_forward.1} parent=43 // pred_region
        %s333 = ssub.s32 1, %s24
        %s334 = smul.u32 %s25, %s333
        %s335 = smul.u32 2, %s334
        %p336 = scmp.lt.s32.totalorder %s335, 1
        %s337 = scalar_select %p336, %s335, 1
        %s338 = smul.addr %s337, 2
        %s339 = smul.addr %s338, 8
        %s340 = scalar_lea.vmem %s0, %s339
        %s341 = ssub.s32 1, %s24
        %s342 = smul.u32 %s25, %s341
        %s343 = smul.u32 2, %s342
      $region48: #{_forward.1} parent=43 // pred_fallthru
        _
      // Predicated region
      $region49: #{_forward.1} parent=43 // pred_check
        %p344 = pneg %p81
      $region50: #{_forward.1} parent=43 // pred_check_branch
        %346 = sbr.rel (%p344) target = $region52
      $region51: #{_forward.1} parent=43 // pred_region
        %s347 = smul.u32 %s25, %s24
        %s348 = smul.u32 2, %s347
        %p349 = scmp.lt.s32.totalorder %s348, 1
        %s350 = scalar_select %p349, %s348, 1
        %s351 = smul.addr %s350, 2
        %s352 = smul.addr %s351, 8
        %s353 = scalar_lea.vmem %s1, %s352
        %s354 = smul.u32 %s25, %s24
        %s355 = smul.u32 2, %s354
      $region52: #{_forward.1} parent=43 // pred_fallthru
        _
    $region44: #{_forward.1} parent=5 // pred_fallthru
      _
    %p356 = scmp.le.s32.totalorder 1, %s17
    %p357 = scmp.lt.s32.totalorder %s17, 3
    %p358 = pnand %p356, %p357
    %p359 = pneg %p358
    // Predicated region
    $region53: #{_forward.1} parent=5 // pred_check
      _
    $region54: #{_forward.1} parent=5 // pred_check_branch
      %361 = sbr.rel (%p358) target = $region56
    $region55: #{_forward.1} parent=5 // pred_region
      %s362 = ssub.s32 %s17, 1
      %s363 = ssub.s32 1, %s26
      %s364 = smul.u32 %s27, %s363
      %s365 = smul.u32 2, %s364
      %p366 = scmp.lt.s32.totalorder %s365, 1
      %s367 = scalar_select %p366, %s365, 1
      %s368 = smul.addr %s367, 2
      %s369 = smul.addr %s368, 8
      %s370 = scalar_lea.vmem %s0, %s369
      %p371 = pneg %p59
      %p372 = pneg %p56
      %s373 = smul.u32 %s27, %s26
      %s374 = smul.u32 2, %s373
      %p375 = scmp.lt.s32.totalorder %s374, 1
      %s376 = scalar_select %p375, %s374, 1
      %s377 = smul.addr %s376, 2
      %s378 = smul.addr %s377, 8
      %s379 = scalar_lea.vmem %s1, %s378
      %p380 = pneg %p87
      %p381 = pneg %p84
      %p382 = pneg %p108
      %p383 = pneg %p105
      %p384 = pneg %p129
      %p385 = pneg %p126
      %p386 = pneg %p150
      %p387 = pneg %p147
      %p388 = pneg %p171
      %p389 = pneg %p168
      %p390 = pneg %p192
      %p391 = pneg %p189
      %p392 = pneg %p213
      %p393 = pneg %p210
      %p394 = pneg %p234
      %p395 = pneg %p231
      %p396 = pneg %p262
      %p397 = pneg %p259
      %s398 = sadd.s32 %s26, %s27
      %s399 = smul.u32 2, %s398
      %p400 = scmp.lt.s32.totalorder %s399, 3
      %s401 = scalar_select %p400, %s399, 3
      %s402 = smul.addr %s401, 2
      %s403 = smul.addr %s402, 8
      %s404 = scalar_lea.vmem %s9, %s403
      %p405 = pneg %p290
      %p406 = pneg %p287
      %s407 = sadd.s32 %s26, %s27
      %s408 = smul.u32 2, %s407
      %p409 = scmp.lt.s32.totalorder %s408, 3
      %s410 = scalar_select %p409, %s408, 3
      %s411 = scalar_lea.vmem %s10, %s410
      %s412 = ssub.s32 1, %s26
      %s413 = smul.u32 %s27, %s412
      %s414 = smul.u32 2, %s413
      %p415 = scmp.lt.s32.totalorder %s414, 1
      %s416 = scalar_select %p415, %s414, 1
      %s417 = smul.addr %s416, 2
      %s418 = smul.addr %s417, 8
      %s419 = scalar_lea.vmem %s0, %s418
      %s420 = ssub.s32 1, %s26
      %s421 = smul.u32 %s27, %s420
      %s422 = smul.u32 2, %s421
      %s423 = smul.u32 %s27, %s26
      %s424 = smul.u32 2, %s423
      %p425 = scmp.lt.s32.totalorder %s424, 1
      %s426 = scalar_select %p425, %s424, 1
      %s427 = smul.addr %s426, 2
      %s428 = smul.addr %s427, 8
      %s429 = scalar_lea.vmem %s1, %s428
      %s430 = smul.u32 %s27, %s26
      %s431 = smul.u32 2, %s430
      %s432 = sadd.s32 %s26, %s27
      %s433 = smul.u32 2, %s432
      %p434 = scmp.lt.s32.totalorder %s433, 3
      %s435 = scalar_select %p434, %s433, 3
      %s436 = smul.addr %s435, 2
      %s437 = smul.addr %s436, 8
      %s438 = scalar_lea.vmem %s9, %s437
      %s439 = sadd.s32 %s26, %s27
      %s440 = smul.u32 2, %s439
      %s441 = sadd.s32 %s26, %s27
      %s442 = smul.u32 2, %s441
      %p443 = scmp.lt.s32.totalorder %s442, 3
      %s444 = scalar_select %p443, %s442, 3
      %s445 = scalar_lea.vmem %s10, %s444
      %s446 = sadd.s32 %s26, %s27
      %s447 = smul.u32 2, %s446
      %p449 = scmp.eq.s32.totalorder %s26, 0
      %v450 = vld [vmem:[%s419] sm:$0xff]
      %v451 = vld [vmem:[%s419 + $0x8] sm:$0xff]
      %v452 = vld [vmem:[%s419 + $0x10] sm:$0xff]
      %v453 = vld [vmem:[%s419 + $0x18] sm:$0xff]
      %v454 = vld [vmem:[%s429] sm:$0xff]
      %v455 = vld [vmem:[%s429 + $0x8] sm:$0xff]
      %v456 = vld [vmem:[%s429 + $0x10] sm:$0xff]
      %v457 = vld [vmem:[%s429 + $0x18] sm:$0xff]
      %s458 = scalar_select %p449, 1, 0
      %v459 = vstv %s458
      %vm460 = vcmp.eq.s32.totalorder %v459, 1
      %v461 = vsel %vm460, %v450, %v454
      %v462 = vsel %vm460, %v451, %v455
      %v463 = vsel %vm460, %v452, %v456
      %v464 = vsel %vm460, %v453, %v457
      %v465 = vmul.f32 %v461, %v461
      %v466 = vmul.f32 %v462, %v462
      %v467 = vmul.f32 %v463, %v463
      %v468 = vmul.f32 %v464, %v464
      %vm469 = vcmask 261120
      %v470 = vsel %vm469, %v465, 0.0
      %471 = vadd.xlane.f32.xlu0 %v470
      %v472 = vpop.xlane.xlu0 %471
      %v473 = vsel %vm469, %v466, 0.0
      %474 = vadd.xlane.f32.xlu0 %v473
      %v475 = vpop.xlane.xlu0 %474
      %v476 = vsel %vm469, %v467, 0.0
      %477 = vadd.xlane.f32.xlu0 %v476
      %v478 = vpop.xlane.xlu0 %477
      %v479 = vsel %vm469, %v468, 0.0
      %480 = vadd.xlane.f32.xlu0 %v479
      %v481 = vpop.xlane.xlu0 %480
      %v482 = vrcp.pop 32.0
      %v483 = vmul.f32 32.0, %v482
      %v484 = vsub.f32 1.0, %v483
      %v485 = vmul.f32 %v482, %v484
      %v486 = vadd.f32 %v482, %v485
      %vm487 = vweird.f32 %v482
      %v488 = vsel %vm487, %v482, %v486
      %v489 = vmul.f32 %v472, %v488
      %v490 = vmul.f32 %v475, %v488
      %v491 = vmul.f32 %v478, %v488
      %v492 = vmul.f32 %v481, %v488
      %v493 = vadd.f32 %v489, 1e-06
      %v494 = vadd.f32 %v490, 1e-06
      %v495 = vadd.f32 %v491, 1e-06
      %v496 = vadd.f32 %v492, 1e-06
      %v497 = vrsqrt.pop %v493
      %v498 = vmul.f32 %v497, %v493
      %v499 = vmul.f32 %v498, %v497
      %v500 = vmul.f32 0.5, %v499
      %v501 = vsub.f32 1.5, %v500
      %v502 = vmul.f32 %v497, %v501
      %vm503 = vweird.f32 %v493
      %vm504 = vweird.f32 %v497
      %vm505 = vmor %vm503, %vm504
      %v506 = vsel %vm505, %v497, %v502
      %v507 = vrsqrt.pop %v494
      %v508 = vmul.f32 %v507, %v494
      %v509 = vmul.f32 %v508, %v507
      %v510 = vmul.f32 0.5, %v509
      %v511 = vsub.f32 1.5, %v510
      %v512 = vmul.f32 %v507, %v511
      %vm513 = vweird.f32 %v494
      %vm514 = vweird.f32 %v507
      %vm515 = vmor %vm513, %vm514
      %v516 = vsel %vm515, %v507, %v512
      %v517 = vrsqrt.pop %v495
      %v518 = vmul.f32 %v517, %v495
      %v519 = vmul.f32 %v518, %v517
      %v520 = vmul.f32 0.5, %v519
      %v521 = vsub.f32 1.5, %v520
      %v522 = vmul.f32 %v517, %v521
      %vm523 = vweird.f32 %v495
      %vm524 = vweird.f32 %v517
      %vm525 = vmor %vm523, %vm524
      %v526 = vsel %vm525, %v517, %v522
      %v527 = vrsqrt.pop %v496
      %v528 = vmul.f32 %v527, %v496
      %v529 = vmul.f32 %v528, %v527
      %v530 = vmul.f32 0.5, %v529
      %v531 = vsub.f32 1.5, %v530
      %v532 = vmul.f32 %v527, %v531
      %vm533 = vweird.f32 %v496
      %vm534 = vweird.f32 %v527
      %vm535 = vmor %vm533, %vm534
      %v536 = vsel %vm535, %v527, %v532
      %v537 = vmul.f32 %v461, %v506
      %v538 = vmul.f32 %v462, %v516
      %v539 = vmul.f32 %v463, %v526
      %v540 = vmul.f32 %v464, %v536
      %v541 = vld [vmem:[%s2] sm:$0x1]
      %v543 = vperm.slane %v541, 0
      %v545 = vmul.f32 %v537, %v543
      %v546 = vmul.f32 %v538, %v543
      %v547 = vmul.f32 %v539, %v543
      %v548 = vmul.f32 %v540, %v543
      %v549 = vpack.c.bf16 %v546, %v545
      %v550 = vpack.c.bf16 %v548, %v547
      %v551 = vld [vmem:[%s3] sm:$0xf]
      %v552 = vld [vmem:[%s3 + $0x4] sm:$0xf]
      %v553 = vld [vmem:[%s3 + $0x8] sm:$0xf]
      %v554 = vld [vmem:[%s3 + $0xc] sm:$0xf]
      %v559 = vunpack.c.l.b16 %v551
      %v560 = vunpack.c.l.b16 %v552
      %v561 = vunpack.c.l.b16 %v553
      %v562 = vunpack.c.l.b16 %v554
      %v563 = vpack.c.b16 %v560, %v559
      %v564 = vpack.c.b16 %v562, %v561
      %v568 = vsel %vm469, %v549, 0
      %v571 = vsel %vm469, %v550, 0
      %573 = vmatpush.bf16.msra.mxu0 0
      %574 = vmatpush.bf16.msra.mxu0 0
      %575 = vmatpush.bf16.msra.mxu0 0
      %576 = vmatpush.bf16.msra.mxu0 0
      %577 = vmatpush.bf16.msra.mxu0 0
      %578 = vmatpush.bf16.msra.mxu0 0
      %579 = vmatpush.bf16.msra.mxu0 %v564
      %580 = vmatpush.bf16.msra.mxu0 %v563
      %581 = vmatmul.bf16.gmra.mxu0 %v568
      %v582 = vpop.f32.mrf.mxu0
      %v583 = vadd.f32 0.0, %v582
      %v584 = vpop.f32.mrf.mxu0
      %v585 = vadd.f32 0.0, %v584
      %586 = vmatmul.bf16.gmra.mxu0 %v571
      %v587 = vpop.f32.mrf.mxu0
      %v588 = vadd.f32 0.0, %v587
      %v589 = vpop.f32.mrf.mxu0
      %v590 = vadd.f32 0.0, %v589
      %591 = vdwg.mxu0
      %v592 = vld [vmem:[%s4] sm:$0xf]
      %v593 = vld [vmem:[%s4 + $0x4] sm:$0xf]
      %v594 = vld [vmem:[%s4 + $0x8] sm:$0xf]
      %v595 = vld [vmem:[%s4 + $0xc] sm:$0xf]
      %v596 = vpack.c.bf16 %v583, %v583
      %v597 = vpack.c.bf16 %v585, %v585
      %v598 = vpack.c.bf16 %v588, %v588
      %v599 = vpack.c.bf16 %v590, %v590
      %v602 = vunpack.c.l.b16 %v596
      %v603 = vunpack.c.l.b16 %v597
      %v604 = vpack.c.b16 %v603, %v602
      %605 = vrot.lane.b32.xlu0 %v604, 96
      %v606 = vpop.permute.xlu0 %605
      %vm607 = vcmask 64512
      %v609 = vsel %vm607, %v604, 0
      %v612 = vsel %vm607, %v606, 0
      %614 = vmatpush.bf16.xpose.msra.mxu0 0
      %615 = vmatpush.bf16.xpose.msra.mxu0 0
      %616 = vmatpush.bf16.xpose.msra.mxu0 0
      %617 = vmatpush.bf16.xpose.msra.mxu0 0
      %618 = vmatpush.bf16.xpose.msra.mxu0 0
      %619 = vmatpush.bf16.xpose.msra.mxu0 0
      %620 = vmatpush.bf16.xpose.msra.mxu0 0
      %621 = vmatpush.bf16.xpose.msra.mxu0 %v612
      %622 = vmatmul.bf16.gmra.mxu0 %v609
      %v623 = vpop.f32.mrf.mxu0
      %v624 = vadd.f32 0.0, %v623
      %v625 = vpop.f32.mrf.mxu0
      %v626 = vadd.f32 0.0, %v625
      %627 = vdwg.mxu0
      %v630 = vunpack.c.l.b16 %v598
      %v631 = vunpack.c.l.b16 %v599
      %v632 = vpack.c.b16 %v631, %v630
      %633 = vrot.lane.b32.xlu0 %v632, 96
      %v634 = vpop.permute.xlu0 %633
      %v636 = vsel %vm607, %v632, 0
      %v639 = vsel %vm607, %v634, 0
      %641 = vmatpush.bf16.xpose.msra.mxu0 0
      %642 = vmatpush.bf16.xpose.msra.mxu0 0
      %643 = vmatpush.bf16.xpose.msra.mxu0 0
      %644 = vmatpush.bf16.xpose.msra.mxu0 0
      %645 = vmatpush.bf16.xpose.msra.mxu0 0
      %646 = vmatpush.bf16.xpose.msra.mxu0 0
      %647 = vmatpush.bf16.xpose.msra.mxu0 0
      %648 = vmatpush.bf16.xpose.msra.mxu0 %v639
      %649 = vmatmul.bf16.gmra.mxu0 %v636
      %v650 = vpop.f32.mrf.mxu0
      %v651 = vadd.f32 0.0, %v650
      %v652 = vpop.f32.mrf.mxu0
      %v653 = vadd.f32 0.0, %v652
      %654 = vdwg.mxu0
      %v655 = vmul.f32 %v624, 0.35355338
      %v656 = vmul.f32 %v626, 0.35355338
      %v657 = vmul.f32 %v651, 0.35355338
      %v658 = vmul.f32 %v653, 0.35355338
      %vm659 = vcmask 130048
      %v660 = vsel %vm659, %v655, -inf
      %661 = vmax.xlane.f32.xlu0 %v660
      %v662 = vpop.xlane.xlu0 %661
      %v663 = vsel %vm659, %v656, -inf
      %664 = vmax.xlane.f32.xlu0 %v663
      %v665 = vpop.xlane.xlu0 %664
      %v666 = vsel %vm659, %v657, -inf
      %667 = vmax.xlane.f32.xlu0 %v666
      %v668 = vpop.xlane.xlu0 %667
      %v669 = vsel %vm659, %v658, -inf
      %670 = vmax.xlane.f32.xlu0 %v669
      %v671 = vpop.xlane.xlu0 %670
      %v672 = vsub.f32 %v655, %v662
      %v673 = vsub.f32 %v656, %v665
      %v674 = vsub.f32 %v657, %v668
      %v675 = vsub.f32 %v658, %v671
      %v676 = vmul.f32 %v672, 1.442695
      %v677 = vpow.pop %v676
      %v678 = vmul.f32 %v673, 1.442695
      %v679 = vpow.pop %v678
      %v680 = vmul.f32 %v674, 1.442695
      %v681 = vpow.pop %v680
      %v682 = vmul.f32 %v675, 1.442695
      %v683 = vpow.pop %v682
      %v684 = vsel %vm659, %v677, 0.0
      %685 = vadd.xlane.f32.xlu0 %v684
      %v686 = vpop.xlane.xlu0 %685
      %v687 = vsel %vm659, %v679, 0.0
      %688 = vadd.xlane.f32.xlu0 %v687
      %v689 = vpop.xlane.xlu0 %688
      %v690 = vsel %vm659, %v681, 0.0
      %691 = vadd.xlane.f32.xlu0 %v690
      %v692 = vpop.xlane.xlu0 %691
      %v693 = vsel %vm659, %v683, 0.0
      %694 = vadd.xlane.f32.xlu0 %v693
      %v695 = vpop.xlane.xlu0 %694
      %v696 = vrcp.pop %v686
      %v697 = vrcp.pop %v689
      %v698 = vrcp.pop %v692
      %v699 = vrcp.pop %v695
      %v700 = vmul.f32 %v677, %v696
      %v701 = vmul.f32 %v679, %v697
      %v702 = vmul.f32 %v681, %v698
      %v703 = vmul.f32 %v683, %v699
      %v704 = vpack.c.bf16 %v700, %v700
      %v705 = vpack.c.bf16 %v701, %v701
      %v706 = vpack.c.bf16 %v702, %v702
      %v707 = vpack.c.bf16 %v703, %v703
      %v710 = vunpack.c.l.b16 %v704
      %v711 = vunpack.c.l.b16 %v705
      %v712 = vpack.c.b16 %v711, %v710
      %713 = vrot.lane.b32.xlu0 %v604, 64
      %v714 = vpop.permute.xlu0 %713
      %v717 = vsel %vm659, %v712, 0
      %719 = vmatpush.bf16.msra.mxu0 0
      %720 = vmatpush.bf16.msra.mxu0 0
      %721 = vmatpush.bf16.msra.mxu0 0
      %722 = vmatpush.bf16.msra.mxu0 0
      %723 = vmatpush.bf16.msra.mxu0 0
      %724 = vmatpush.bf16.msra.mxu0 0
      %725 = vmatpush.bf16.msra.mxu0 0
      %726 = vmatpush.bf16.msra.mxu0 %v714
      %727 = vmatmul.bf16.gmra.mxu0 %v717
      %v728 = vpop.f32.mrf.mxu0
      %v729 = vadd.f32 0.0, %v728
      %v730 = vpop.f32.mrf.mxu0
      %v731 = vadd.f32 0.0, %v730
      %732 = vdwg.mxu0
      %v735 = vunpack.c.l.b16 %v706
      %v736 = vunpack.c.l.b16 %v707
      %v737 = vpack.c.b16 %v736, %v735
      %738 = vrot.lane.b32.xlu0 %v632, 64
      %v739 = vpop.permute.xlu0 %738
      %v742 = vsel %vm659, %v737, 0
      %744 = vmatpush.bf16.msra.mxu0 0
      %745 = vmatpush.bf16.msra.mxu0 0
      %746 = vmatpush.bf16.msra.mxu0 0
      %747 = vmatpush.bf16.msra.mxu0 0
      %748 = vmatpush.bf16.msra.mxu0 0
      %749 = vmatpush.bf16.msra.mxu0 0
      %750 = vmatpush.bf16.msra.mxu0 0
      %751 = vmatpush.bf16.msra.mxu0 %v739
      %752 = vmatmul.bf16.gmra.mxu0 %v742
      %v753 = vpop.f32.mrf.mxu0
      %v754 = vadd.f32 0.0, %v753
      %v755 = vpop.f32.mrf.mxu0
      %v756 = vadd.f32 0.0, %v755
      %757 = vdwg.mxu0
      %v758 = vpack.c.bf16 %v731, %v729
      %v759 = vpack.c.bf16 %v756, %v754
      %760 = vrot.lane.b32.xlu0 %v604, 120
      %v761 = vpop.permute.xlu0 %760
      %762 = vrot.lane.b32.xlu0 %v604, 88
      %v763 = vpop.permute.xlu0 %762
      %v765 = vsel %vm607, %v761, 0
      %v768 = vsel %vm607, %v763, 0
      %770 = vmatpush.bf16.xpose.msra.mxu0 0
      %771 = vmatpush.bf16.xpose.msra.mxu0 0
      %772 = vmatpush.bf16.xpose.msra.mxu0 0
      %773 = vmatpush.bf16.xpose.msra.mxu0 0
      %774 = vmatpush.bf16.xpose.msra.mxu0 0
      %775 = vmatpush.bf16.xpose.msra.mxu0 0
      %776 = vmatpush.bf16.xpose.msra.mxu0 0
      %777 = vmatpush.bf16.xpose.msra.mxu0 %v768
      %778 = vmatmul.bf16.gmra.mxu0 %v765
      %v779 = vpop.f32.mrf.mxu0
      %v780 = vadd.f32 0.0, %v779
      %v781 = vpop.f32.mrf.mxu0
      %v782 = vadd.f32 0.0, %v781
      %783 = vdwg.mxu0
      %784 = vrot.lane.b32.xlu0 %v632, 120
      %v785 = vpop.permute.xlu0 %784
      %786 = vrot.lane.b32.xlu0 %v632, 88
      %v787 = vpop.permute.xlu0 %786
      %v789 = vsel %vm607, %v785, 0
      %v792 = vsel %vm607, %v787, 0
      %794 = vmatpush.bf16.xpose.msra.mxu0 0
      %795 = vmatpush.bf16.xpose.msra.mxu0 0
      %796 = vmatpush.bf16.xpose.msra.mxu0 0
      %797 = vmatpush.bf16.xpose.msra.mxu0 0
      %798 = vmatpush.bf16.xpose.msra.mxu0 0
      %799 = vmatpush.bf16.xpose.msra.mxu0 0
      %800 = vmatpush.bf16.xpose.msra.mxu0 0
      %801 = vmatpush.bf16.xpose.msra.mxu0 %v792
      %802 = vmatmul.bf16.gmra.mxu0 %v789
      %v803 = vpop.f32.mrf.mxu0
      %v804 = vadd.f32 0.0, %v803
      %v805 = vpop.f32.mrf.mxu0
      %v806 = vadd.f32 0.0, %v805
      %807 = vdwg.mxu0
      %v808 = vmul.f32 %v780, 0.35355338
      %v809 = vmul.f32 %v782, 0.35355338
      %v810 = vmul.f32 %v804, 0.35355338
      %v811 = vmul.f32 %v806, 0.35355338
      %v812 = vsel %vm659, %v808, -inf
      %813 = vmax.xlane.f32.xlu0 %v812
      %v814 = vpop.xlane.xlu0 %813
      %v815 = vsel %vm659, %v809, -inf
      %816 = vmax.xlane.f32.xlu0 %v815
      %v817 = vpop.xlane.xlu0 %816
      %v818 = vsel %vm659, %v810, -inf
      %819 = vmax.xlane.f32.xlu0 %v818
      %v820 = vpop.xlane.xlu0 %819
      %v821 = vsel %vm659, %v811, -inf
      %822 = vmax.xlane.f32.xlu0 %v821
      %v823 = vpop.xlane.xlu0 %822
      %v824 = vsub.f32 %v808, %v814
      %v825 = vsub.f32 %v809, %v817
      %v826 = vsub.f32 %v810, %v820
      %v827 = vsub.f32 %v811, %v823
      %v828 = vmul.f32 %v824, 1.442695
      %v829 = vpow.pop %v828
      %v830 = vmul.f32 %v825, 1.442695
      %v831 = vpow.pop %v830
      %v832 = vmul.f32 %v826, 1.442695
      %v833 = vpow.pop %v832
      %v834 = vmul.f32 %v827, 1.442695
      %v835 = vpow.pop %v834
      %v836 = vsel %vm659, %v829, 0.0
      %837 = vadd.xlane.f32.xlu0 %v836
      %v838 = vpop.xlane.xlu0 %837
      %v839 = vsel %vm659, %v831, 0.0
      %840 = vadd.xlane.f32.xlu0 %v839
      %v841 = vpop.xlane.xlu0 %840
      %v842 = vsel %vm659, %v833, 0.0
      %843 = vadd.xlane.f32.xlu0 %v842
      %v844 = vpop.xlane.xlu0 %843
      %v845 = vsel %vm659, %v835, 0.0
      %846 = vadd.xlane.f32.xlu0 %v845
      %v847 = vpop.xlane.xlu0 %846
      %v848 = vrcp.pop %v838
      %v849 = vrcp.pop %v841
      %v850 = vrcp.pop %v844
      %v851 = vrcp.pop %v847
      %v852 = vmul.f32 %v829, %v848
      %v853 = vmul.f32 %v831, %v849
      %v854 = vmul.f32 %v833, %v850
      %v855 = vmul.f32 %v835, %v851
      %v856 = vpack.c.bf16 %v852, %v852
      %v857 = vpack.c.bf16 %v853, %v853
      %v858 = vpack.c.bf16 %v854, %v854
      %v859 = vpack.c.bf16 %v855, %v855
      %v862 = vunpack.c.l.b16 %v856
      %v863 = vunpack.c.l.b16 %v857
      %v864 = vpack.c.b16 %v863, %v862
      %865 = vrot.lane.b32.xlu0 %v604, 56
      %v866 = vpop.permute.xlu0 %865
      %v869 = vsel %vm659, %v864, 0
      %871 = vmatpush.bf16.msra.mxu0 0
      %872 = vmatpush.bf16.msra.mxu0 0
      %873 = vmatpush.bf16.msra.mxu0 0
      %874 = vmatpush.bf16.msra.mxu0 0
      %875 = vmatpush.bf16.msra.mxu0 0
      %876 = vmatpush.bf16.msra.mxu0 0
      %877 = vmatpush.bf16.msra.mxu0 0
      %878 = vmatpush.bf16.msra.mxu0 %v866
      %879 = vmatmul.bf16.gmra.mxu0 %v869
      %v880 = vpop.f32.mrf.mxu0
      %v881 = vadd.f32 0.0, %v880
      %v882 = vpop.f32.mrf.mxu0
      %v883 = vadd.f32 0.0, %v882
      %884 = vdwg.mxu0
      %v887 = vunpack.c.l.b16 %v858
      %v888 = vunpack.c.l.b16 %v859
      %v889 = vpack.c.b16 %v888, %v887
      %890 = vrot.lane.b32.xlu0 %v632, 56
      %v891 = vpop.permute.xlu0 %890
      %v894 = vsel %vm659, %v889, 0
      %896 = vmatpush.bf16.msra.mxu0 0
      %897 = vmatpush.bf16.msra.mxu0 0
      %898 = vmatpush.bf16.msra.mxu0 0
      %899 = vmatpush.bf16.msra.mxu0 0
      %900 = vmatpush.bf16.msra.mxu0 0
      %901 = vmatpush.bf16.msra.mxu0 0
      %902 = vmatpush.bf16.msra.mxu0 0
      %903 = vmatpush.bf16.msra.mxu0 %v891
      %904 = vmatmul.bf16.gmra.mxu0 %v894
      %v905 = vpop.f32.mrf.mxu0
      %v906 = vadd.f32 0.0, %v905
      %v907 = vpop.f32.mrf.mxu0
      %v908 = vadd.f32 0.0, %v907
      %909 = vdwg.mxu0
      %v910 = vpack.c.bf16 %v883, %v881
      %v911 = vpack.c.bf16 %v908, %v906
      %v913 = vsel %vm607, %v910, 0
      %v916 = vsel %vm607, %v911, 0
      %vm918 = vcmask 1043456
      %v920 = vsel %vm918, %v593, 0
      %922 = vmatpush.bf16.msra.mxu0 0
      %923 = vmatpush.bf16.msra.mxu0 0
      %924 = vmatpush.bf16.msra.mxu0 0
      %925 = vmatpush.bf16.msra.mxu0 0
      %926 = vmatpush.bf16.msra.mxu0 0
      %927 = vmatpush.bf16.msra.mxu0 0
      %928 = vmatpush.bf16.msra.mxu0 0
      %929 = vmatpush.bf16.msra.mxu0 %v920
      %930 = vmatmul.bf16.gmra.mxu0 %v913
      %v931 = vpop.f32.mrf.mxu0
      %v932 = vadd.f32 0.0, %v931
      %v933 = vpop.f32.mrf.mxu0
      %v934 = vadd.f32 0.0, %v933
      %935 = vmatmul.bf16.gmra.mxu0 %v916
      %v936 = vpop.f32.mrf.mxu0
      %v937 = vadd.f32 0.0, %v936
      %v938 = vpop.f32.mrf.mxu0
      %v939 = vadd.f32 0.0, %v938
      %940 = vdwg.mxu0
      %v942 = vsel %vm607, %v758, 0
      %v945 = vsel %vm607, %v759, 0
      %v948 = vsel %vm918, %v592, 0
      %950 = vmatpush.bf16.msra.mxu0 0
      %951 = vmatpush.bf16.msra.mxu0 0
      %952 = vmatpush.bf16.msra.mxu0 0
      %953 = vmatpush.bf16.msra.mxu0 0
      %954 = vmatpush.bf16.msra.mxu0 0
      %955 = vmatpush.bf16.msra.mxu0 0
      %956 = vmatpush.bf16.msra.mxu0 0
      %957 = vmatpush.bf16.msra.mxu0 %v948
      %958 = vmatmul.bf16.gmra.mxu0 %v942
      %v959 = vpop.f32.mrf.mxu0
      %v960 = vadd.f32 %v932, %v959
      %v961 = vpop.f32.mrf.mxu0
      %v962 = vadd.f32 %v934, %v961
      %963 = vmatmul.bf16.gmra.mxu0 %v945
      %v964 = vpop.f32.mrf.mxu0
      %v965 = vadd.f32 %v937, %v964
      %v966 = vpop.f32.mrf.mxu0
      %v967 = vadd.f32 %v939, %v966
      %968 = vdwg.mxu0
      %969 = vrot.lane.b32.xlu0 %v604, 112
      %v970 = vpop.permute.xlu0 %969
      %971 = vrot.lane.b32.xlu0 %v604, 80
      %v972 = vpop.permute.xlu0 %971
      %v974 = vsel %vm607, %v970, 0
      %v977 = vsel %vm607, %v972, 0
      %979 = vmatpush.bf16.xpose.msra.mxu0 0
      %980 = vmatpush.bf16.xpose.msra.mxu0 0
      %981 = vmatpush.bf16.xpose.msra.mxu0 0
      %982 = vmatpush.bf16.xpose.msra.mxu0 0
      %983 = vmatpush.bf16.xpose.msra.mxu0 0
      %984 = vmatpush.bf16.xpose.msra.mxu0 0
      %985 = vmatpush.bf16.xpose.msra.mxu0 0
      %986 = vmatpush.bf16.xpose.msra.mxu0 %v977
      %987 = vmatmul.bf16.gmra.mxu0 %v974
      %v988 = vpop.f32.mrf.mxu0
      %v989 = vadd.f32 0.0, %v988
      %v990 = vpop.f32.mrf.mxu0
      %v991 = vadd.f32 0.0, %v990
      %992 = vdwg.mxu0
      %993 = vrot.lane.b32.xlu0 %v632, 112
      %v994 = vpop.permute.xlu0 %993
      %995 = vrot.lane.b32.xlu0 %v632, 80
      %v996 = vpop.permute.xlu0 %995
      %v998 = vsel %vm607, %v994, 0
      %v1001 = vsel %vm607, %v996, 0
      %1003 = vmatpush.bf16.xpose.msra.mxu0 0
      %1004 = vmatpush.bf16.xpose.msra.mxu0 0
      %1005 = vmatpush.bf16.xpose.msra.mxu0 0
      %1006 = vmatpush.bf16.xpose.msra.mxu0 0
      %1007 = vmatpush.bf16.xpose.msra.mxu0 0
      %1008 = vmatpush.bf16.xpose.msra.mxu0 0
      %1009 = vmatpush.bf16.xpose.msra.mxu0 0
      %1010 = vmatpush.bf16.xpose.msra.mxu0 %v1001
      %1011 = vmatmul.bf16.gmra.mxu0 %v998
      %v1012 = vpop.f32.mrf.mxu0
      %v1013 = vadd.f32 0.0, %v1012
      %v1014 = vpop.f32.mrf.mxu0
      %v1015 = vadd.f32 0.0, %v1014
      %1016 = vdwg.mxu0
      %v1017 = vmul.f32 %v989, 0.35355338
      %v1018 = vmul.f32 %v991, 0.35355338
      %v1019 = vmul.f32 %v1013, 0.35355338
      %v1020 = vmul.f32 %v1015, 0.35355338
      %v1021 = vsel %vm659, %v1017, -inf
      %1022 = vmax.xlane.f32.xlu0 %v1021
      %v1023 = vpop.xlane.xlu0 %1022
      %v1024 = vsel %vm659, %v1018, -inf
      %1025 = vmax.xlane.f32.xlu0 %v1024
      %v1026 = vpop.xlane.xlu0 %1025
      %v1027 = vsel %vm659, %v1019, -inf
      %1028 = vmax.xlane.f32.xlu0 %v1027
      %v1029 = vpop.xlane.xlu0 %1028
      %v1030 = vsel %vm659, %v1020, -inf
      %1031 = vmax.xlane.f32.xlu0 %v1030
      %v1032 = vpop.xlane.xlu0 %1031
      %v1033 = vsub.f32 %v1017, %v1023
      %v1034 = vsub.f32 %v1018, %v1026
      %v1035 = vsub.f32 %v1019, %v1029
      %v1036 = vsub.f32 %v1020, %v1032
      %v1037 = vmul.f32 %v1033, 1.442695
      %v1038 = vpow.pop %v1037
      %v1039 = vmul.f32 %v1034, 1.442695
      %v1040 = vpow.pop %v1039
      %v1041 = vmul.f32 %v1035, 1.442695
      %v1042 = vpow.pop %v1041
      %v1043 = vmul.f32 %v1036, 1.442695
      %v1044 = vpow.pop %v1043
      %v1045 = vsel %vm659, %v1038, 0.0
      %1046 = vadd.xlane.f32.xlu0 %v1045
      %v1047 = vpop.xlane.xlu0 %1046
      %v1048 = vsel %vm659, %v1040, 0.0
      %1049 = vadd.xlane.f32.xlu0 %v1048
      %v1050 = vpop.xlane.xlu0 %1049
      %v1051 = vsel %vm659, %v1042, 0.0
      %1052 = vadd.xlane.f32.xlu0 %v1051
      %v1053 = vpop.xlane.xlu0 %1052
      %v1054 = vsel %vm659, %v1044, 0.0
      %1055 = vadd.xlane.f32.xlu0 %v1054
      %v1056 = vpop.xlane.xlu0 %1055
      %v1057 = vrcp.pop %v1047
      %v1058 = vrcp.pop %v1050
      %v1059 = vrcp.pop %v1053
      %v1060 = vrcp.pop %v1056
      %v1061 = vmul.f32 %v1038, %v1057
      %v1062 = vmul.f32 %v1040, %v1058
      %v1063 = vmul.f32 %v1042, %v1059
      %v1064 = vmul.f32 %v1044, %v1060
      %v1065 = vpack.c.bf16 %v1061, %v1061
      %v1066 = vpack.c.bf16 %v1062, %v1062
      %v1067 = vpack.c.bf16 %v1063, %v1063
      %v1068 = vpack.c.bf16 %v1064, %v1064
      %v1071 = vunpack.c.l.b16 %v1065
      %v1072 = vunpack.c.l.b16 %v1066
      %v1073 = vpack.c.b16 %v1072, %v1071
      %1074 = vrot.lane.b32.xlu0 %v604, 48
      %v1075 = vpop.permute.xlu0 %1074
      %v1078 = vsel %vm659, %v1073, 0
      %1080 = vmatpush.bf16.msra.mxu0 0
      %1081 = vmatpush.bf16.msra.mxu0 0
      %1082 = vmatpush.bf16.msra.mxu0 0
      %1083 = vmatpush.bf16.msra.mxu0 0
      %1084 = vmatpush.bf16.msra.mxu0 0
      %1085 = vmatpush.bf16.msra.mxu0 0
      %1086 = vmatpush.bf16.msra.mxu0 0
      %1087 = vmatpush.bf16.msra.mxu0 %v1075
      %1088 = vmatmul.bf16.gmra.mxu0 %v1078
      %v1089 = vpop.f32.mrf.mxu0
      %v1090 = vadd.f32 0.0, %v1089
      %v1091 = vpop.f32.mrf.mxu0
      %v1092 = vadd.f32 0.0, %v1091
      %1093 = vdwg.mxu0
      %v1096 = vunpack.c.l.b16 %v1067
      %v1097 = vunpack.c.l.b16 %v1068
      %v1098 = vpack.c.b16 %v1097, %v1096
      %1099 = vrot.lane.b32.xlu0 %v632, 48
      %v1100 = vpop.permute.xlu0 %1099
      %v1103 = vsel %vm659, %v1098, 0
      %1105 = vmatpush.bf16.msra.mxu0 0
      %1106 = vmatpush.bf16.msra.mxu0 0
      %1107 = vmatpush.bf16.msra.mxu0 0
      %1108 = vmatpush.bf16.msra.mxu0 0
      %1109 = vmatpush.bf16.msra.mxu0 0
      %1110 = vmatpush.bf16.msra.mxu0 0
      %1111 = vmatpush.bf16.msra.mxu0 0
      %1112 = vmatpush.bf16.msra.mxu0 %v1100
      %1113 = vmatmul.bf16.gmra.mxu0 %v1103
      %v1114 = vpop.f32.mrf.mxu0
      %v1115 = vadd.f32 0.0, %v1114
      %v1116 = vpop.f32.mrf.mxu0
      %v1117 = vadd.f32 0.0, %v1116
      %1118 = vdwg.mxu0
      %v1119 = vpack.c.bf16 %v1092, %v1090
      %v1120 = vpack.c.bf16 %v1117, %v1115
      %v1122 = vsel %vm607, %v1119, 0
      %v1125 = vsel %vm607, %v1120, 0
      %v1128 = vsel %vm918, %v594, 0
      %1130 = vmatpush.bf16.msra.mxu0 0
      %1131 = vmatpush.bf16.msra.mxu0 0
      %1132 = vmatpush.bf16.msra.mxu0 0
      %1133 = vmatpush.bf16.msra.mxu0 0
      %1134 = vmatpush.bf16.msra.mxu0 0
      %1135 = vmatpush.bf16.msra.mxu0 0
      %1136 = vmatpush.bf16.msra.mxu0 0
      %1137 = vmatpush.bf16.msra.mxu0 %v1128
      %1138 = vmatmul.bf16.gmra.mxu0 %v1122
      %v1139 = vpop.f32.mrf.mxu0
      %v1140 = vadd.f32 0.0, %v1139
      %v1141 = vpop.f32.mrf.mxu0
      %v1142 = vadd.f32 0.0, %v1141
      %1143 = vmatmul.bf16.gmra.mxu0 %v1125
      %v1144 = vpop.f32.mrf.mxu0
      %v1145 = vadd.f32 0.0, %v1144
      %v1146 = vpop.f32.mrf.mxu0
      %v1147 = vadd.f32 0.0, %v1146
      %1148 = vdwg.mxu0
      %v1149 = vadd.f32 %v960, %v1140
      %v1150 = vadd.f32 %v962, %v1142
      %v1151 = vadd.f32 %v965, %v1145
      %v1152 = vadd.f32 %v967, %v1147
      %1153 = vrot.lane.b32.xlu0 %v604, 104
      %v1154 = vpop.permute.xlu0 %1153
      %1155 = vrot.lane.b32.xlu0 %v604, 72
      %v1156 = vpop.permute.xlu0 %1155
      %v1158 = vsel %vm607, %v1154, 0
      %v1161 = vsel %vm607, %v1156, 0
      %1163 = vmatpush.bf16.xpose.msra.mxu0 0
      %1164 = vmatpush.bf16.xpose.msra.mxu0 0
      %1165 = vmatpush.bf16.xpose.msra.mxu0 0
      %1166 = vmatpush.bf16.xpose.msra.mxu0 0
      %1167 = vmatpush.bf16.xpose.msra.mxu0 0
      %1168 = vmatpush.bf16.xpose.msra.mxu0 0
      %1169 = vmatpush.bf16.xpose.msra.mxu0 0
      %1170 = vmatpush.bf16.xpose.msra.mxu0 %v1161
      %1171 = vmatmul.bf16.gmra.mxu0 %v1158
      %v1172 = vpop.f32.mrf.mxu0
      %v1173 = vadd.f32 0.0, %v1172
      %v1174 = vpop.f32.mrf.mxu0
      %v1175 = vadd.f32 0.0, %v1174
      %1176 = vdwg.mxu0
      %1177 = vrot.lane.b32.xlu0 %v632, 104
      %v1178 = vpop.permute.xlu0 %1177
      %1179 = vrot.lane.b32.xlu0 %v632, 72
      %v1180 = vpop.permute.xlu0 %1179
      %v1182 = vsel %vm607, %v1178, 0
      %v1185 = vsel %vm607, %v1180, 0
      %1187 = vmatpush.bf16.xpose.msra.mxu0 0
      %1188 = vmatpush.bf16.xpose.msra.mxu0 0
      %1189 = vmatpush.bf16.xpose.msra.mxu0 0
      %1190 = vmatpush.bf16.xpose.msra.mxu0 0
      %1191 = vmatpush.bf16.xpose.msra.mxu0 0
      %1192 = vmatpush.bf16.xpose.msra.mxu0 0
      %1193 = vmatpush.bf16.xpose.msra.mxu0 0
      %1194 = vmatpush.bf16.xpose.msra.mxu0 %v1185
      %1195 = vmatmul.bf16.gmra.mxu0 %v1182
      %v1196 = vpop.f32.mrf.mxu0
      %v1197 = vadd.f32 0.0, %v1196
      %v1198 = vpop.f32.mrf.mxu0
      %v1199 = vadd.f32 0.0, %v1198
      %1200 = vdwg.mxu0
      %v1201 = vmul.f32 %v1173, 0.35355338
      %v1202 = vmul.f32 %v1175, 0.35355338
      %v1203 = vmul.f32 %v1197, 0.35355338
      %v1204 = vmul.f32 %v1199, 0.35355338
      %v1205 = vsel %vm659, %v1201, -inf
      %1206 = vmax.xlane.f32.xlu0 %v1205
      %v1207 = vpop.xlane.xlu0 %1206
      %v1208 = vsel %vm659, %v1202, -inf
      %1209 = vmax.xlane.f32.xlu0 %v1208
      %v1210 = vpop.xlane.xlu0 %1209
      %v1211 = vsel %vm659, %v1203, -inf
      %1212 = vmax.xlane.f32.xlu0 %v1211
      %v1213 = vpop.xlane.xlu0 %1212
      %v1214 = vsel %vm659, %v1204, -inf
      %1215 = vmax.xlane.f32.xlu0 %v1214
      %v1216 = vpop.xlane.xlu0 %1215
      %v1217 = vsub.f32 %v1201, %v1207
      %v1218 = vsub.f32 %v1202, %v1210
      %v1219 = vsub.f32 %v1203, %v1213
      %v1220 = vsub.f32 %v1204, %v1216
      %v1221 = vmul.f32 %v1217, 1.442695
      %v1222 = vpow.pop %v1221
      %v1223 = vmul.f32 %v1218, 1.442695
      %v1224 = vpow.pop %v1223
      %v1225 = vmul.f32 %v1219, 1.442695
      %v1226 = vpow.pop %v1225
      %v1227 = vmul.f32 %v1220, 1.442695
      %v1228 = vpow.pop %v1227
      %v1229 = vsel %vm659, %v1222, 0.0
      %1230 = vadd.xlane.f32.xlu0 %v1229
      %v1231 = vpop.xlane.xlu0 %1230
      %v1232 = vsel %vm659, %v1224, 0.0
      %1233 = vadd.xlane.f32.xlu0 %v1232
      %v1234 = vpop.xlane.xlu0 %1233
      %v1235 = vsel %vm659, %v1226, 0.0
      %1236 = vadd.xlane.f32.xlu0 %v1235
      %v1237 = vpop.xlane.xlu0 %1236
      %v1238 = vsel %vm659, %v1228, 0.0
      %1239 = vadd.xlane.f32.xlu0 %v1238
      %v1240 = vpop.xlane.xlu0 %1239
      %v1241 = vrcp.pop %v1231
      %v1242 = vrcp.pop %v1234
      %v1243 = vrcp.pop %v1237
      %v1244 = vrcp.pop %v1240
      %v1245 = vmul.f32 %v1222, %v1241
      %v1246 = vmul.f32 %v1224, %v1242
      %v1247 = vmul.f32 %v1226, %v1243
      %v1248 = vmul.f32 %v1228, %v1244
      %v1249 = vpack.c.bf16 %v1245, %v1245
      %v1250 = vpack.c.bf16 %v1246, %v1246
      %v1251 = vpack.c.bf16 %v1247, %v1247
      %v1252 = vpack.c.bf16 %v1248, %v1248
      %v1255 = vunpack.c.l.b16 %v1249
      %v1256 = vunpack.c.l.b16 %v1250
      %v1257 = vpack.c.b16 %v1256, %v1255
      %1258 = vrot.lane.b32.xlu0 %v604, 40
      %v1259 = vpop.permute.xlu0 %1258
      %v1262 = vsel %vm659, %v1257, 0
      %1264 = vmatpush.bf16.msra.mxu0 0
      %1265 = vmatpush.bf16.msra.mxu0 0
      %1266 = vmatpush.bf16.msra.mxu0 0
      %1267 = vmatpush.bf16.msra.mxu0 0
      %1268 = vmatpush.bf16.msra.mxu0 0
      %1269 = vmatpush.bf16.msra.mxu0 0
      %1270 = vmatpush.bf16.msra.mxu0 0
      %1271 = vmatpush.bf16.msra.mxu0 %v1259
      %1272 = vmatmul.bf16.gmra.mxu0 %v1262
      %v1273 = vpop.f32.mrf.mxu0
      %v1274 = vadd.f32 0.0, %v1273
      %v1275 = vpop.f32.mrf.mxu0
      %v1276 = vadd.f32 0.0, %v1275
      %1277 = vdwg.mxu0
      %v1280 = vunpack.c.l.b16 %v1251
      %v1281 = vunpack.c.l.b16 %v1252
      %v1282 = vpack.c.b16 %v1281, %v1280
      %1283 = vrot.lane.b32.xlu0 %v632, 40
      %v1284 = vpop.permute.xlu0 %1283
      %v1287 = vsel %vm659, %v1282, 0
      %1289 = vmatpush.bf16.msra.mxu0 0
      %1290 = vmatpush.bf16.msra.mxu0 0
      %1291 = vmatpush.bf16.msra.mxu0 0
      %1292 = vmatpush.bf16.msra.mxu0 0
      %1293 = vmatpush.bf16.msra.mxu0 0
      %1294 = vmatpush.bf16.msra.mxu0 0
      %1295 = vmatpush.bf16.msra.mxu0 0
      %1296 = vmatpush.bf16.msra.mxu0 %v1284
      %1297 = vmatmul.bf16.gmra.mxu0 %v1287
      %v1298 = vpop.f32.mrf.mxu0
      %v1299 = vadd.f32 0.0, %v1298
      %v1300 = vpop.f32.mrf.mxu0
      %v1301 = vadd.f32 0.0, %v1300
      %1302 = vdwg.mxu0
      %v1303 = vpack.c.bf16 %v1276, %v1274
      %v1304 = vpack.c.bf16 %v1301, %v1299
      %v1306 = vsel %vm607, %v1303, 0
      %v1309 = vsel %vm607, %v1304, 0
      %v1312 = vsel %vm918, %v595, 0
      %1314 = vmatpush.bf16.msra.mxu0 0
      %1315 = vmatpush.bf16.msra.mxu0 0
      %1316 = vmatpush.bf16.msra.mxu0 0
      %1317 = vmatpush.bf16.msra.mxu0 0
      %1318 = vmatpush.bf16.msra.mxu0 0
      %1319 = vmatpush.bf16.msra.mxu0 0
      %1320 = vmatpush.bf16.msra.mxu0 0
      %1321 = vmatpush.bf16.msra.mxu0 %v1312
      %1322 = vmatmul.bf16.gmra.mxu0 %v1306
      %v1323 = vpop.f32.mrf.mxu0
      %v1324 = vadd.f32 0.0, %v1323
      %v1325 = vpop.f32.mrf.mxu0
      %v1326 = vadd.f32 0.0, %v1325
      %1327 = vmatmul.bf16.gmra.mxu0 %v1309
      %v1328 = vpop.f32.mrf.mxu0
      %v1329 = vadd.f32 0.0, %v1328
      %v1330 = vpop.f32.mrf.mxu0
      %v1331 = vadd.f32 0.0, %v1330
      %1332 = vdwg.mxu0
      %v1333 = vadd.f32 %v1149, %v1324
      %v1334 = vadd.f32 %v1150, %v1326
      %v1335 = vadd.f32 %v1151, %v1329
      %v1336 = vadd.f32 %v1152, %v1331
      %v1337 = vadd.f32 %v461, %v1333
      %v1338 = vadd.f32 %v462, %v1334
      %v1339 = vadd.f32 %v463, %v1335
      %v1340 = vadd.f32 %v464, %v1336
      %v1341 = vmul.f32 %v1337, %v1337
      %v1342 = vmul.f32 %v1338, %v1338
      %v1343 = vmul.f32 %v1339, %v1339
      %v1344 = vmul.f32 %v1340, %v1340
      %v1345 = vsel %vm469, %v1341, 0.0
      %1346 = vadd.xlane.f32.xlu0 %v1345
      %v1347 = vpop.xlane.xlu0 %1346
      %v1348 = vsel %vm469, %v1342, 0.0
      %1349 = vadd.xlane.f32.xlu0 %v1348
      %v1350 = vpop.xlane.xlu0 %1349
      %v1351 = vsel %vm469, %v1343, 0.0
      %1352 = vadd.xlane.f32.xlu0 %v1351
      %v1353 = vpop.xlane.xlu0 %1352
      %v1354 = vsel %vm469, %v1344, 0.0
      %1355 = vadd.xlane.f32.xlu0 %v1354
      %v1356 = vpop.xlane.xlu0 %1355
      %v1357 = vmul.f32 %v1347, %v488
      %v1358 = vmul.f32 %v1350, %v488
      %v1359 = vmul.f32 %v1353, %v488
      %v1360 = vmul.f32 %v1356, %v488
      %v1361 = vadd.f32 %v1357, 1e-06
      %v1362 = vadd.f32 %v1358, 1e-06
      %v1363 = vadd.f32 %v1359, 1e-06
      %v1364 = vadd.f32 %v1360, 1e-06
      %v1365 = vrsqrt.pop %v1361
      %v1366 = vmul.f32 %v1365, %v1361
      %v1367 = vmul.f32 %v1366, %v1365
      %v1368 = vmul.f32 0.5, %v1367
      %v1369 = vsub.f32 1.5, %v1368
      %v1370 = vmul.f32 %v1365, %v1369
      %vm1371 = vweird.f32 %v1361
      %vm1372 = vweird.f32 %v1365
      %vm1373 = vmor %vm1371, %vm1372
      %v1374 = vsel %vm1373, %v1365, %v1370
      %v1375 = vrsqrt.pop %v1362
      %v1376 = vmul.f32 %v1375, %v1362
      %v1377 = vmul.f32 %v1376, %v1375
      %v1378 = vmul.f32 0.5, %v1377
      %v1379 = vsub.f32 1.5, %v1378
      %v1380 = vmul.f32 %v1375, %v1379
      %vm1381 = vweird.f32 %v1362
      %vm1382 = vweird.f32 %v1375
      %vm1383 = vmor %vm1381, %vm1382
      %v1384 = vsel %vm1383, %v1375, %v1380
      %v1385 = vrsqrt.pop %v1363
      %v1386 = vmul.f32 %v1385, %v1363
      %v1387 = vmul.f32 %v1386, %v1385
      %v1388 = vmul.f32 0.5, %v1387
      %v1389 = vsub.f32 1.5, %v1388
      %v1390 = vmul.f32 %v1385, %v1389
      %vm1391 = vweird.f32 %v1363
      %vm1392 = vweird.f32 %v1385
      %vm1393 = vmor %vm1391, %vm1392
      %v1394 = vsel %vm1393, %v1385, %v1390
      %v1395 = vrsqrt.pop %v1364
      %v1396 = vmul.f32 %v1395, %v1364
      %v1397 = vmul.f32 %v1396, %v1395
      %v1398 = vmul.f32 0.5, %v1397
      %v1399 = vsub.f32 1.5, %v1398
      %v1400 = vmul.f32 %v1395, %v1399
      %vm1401 = vweird.f32 %v1364
      %vm1402 = vweird.f32 %v1395
      %vm1403 = vmor %vm1401, %vm1402
      %v1404 = vsel %vm1403, %v1395, %v1400
      %v1405 = vmul.f32 %v1337, %v1374
      %v1406 = vmul.f32 %v1338, %v1384
      %v1407 = vmul.f32 %v1339, %v1394
      %v1408 = vmul.f32 %v1340, %v1404
      %v1409 = vld [vmem:[%s5] sm:$0x1]
      %v1411 = vperm.slane %v1409, 0
      %v1413 = vmul.f32 %v1405, %v1411
      %v1414 = vmul.f32 %v1406, %v1411
      %v1415 = vmul.f32 %v1407, %v1411
      %v1416 = vmul.f32 %v1408, %v1411
      %v1417 = vpack.c.bf16 %v1414, %v1413
      %v1418 = vpack.c.bf16 %v1416, %v1415
      %v1419 = vld [vmem:[%s6] sm:$0xf]
      %v1420 = vld [vmem:[%s6 + $0x4] sm:$0xf]
      %v1421 = vld [vmem:[%s6 + $0x8] sm:$0xf]
      %v1422 = vld [vmem:[%s6 + $0xc] sm:$0xf]
      %v1427 = vunpack.c.l.b16 %v1419
      %v1428 = vunpack.c.l.b16 %v1420
      %v1429 = vunpack.c.l.b16 %v1421
      %v1430 = vunpack.c.l.b16 %v1422
      %v1431 = vpack.c.b16 %v1428, %v1427
      %v1432 = vpack.c.b16 %v1430, %v1429
      %v1436 = vsel %vm469, %v1417, 0
      %v1439 = vsel %vm469, %v1418, 0
      %1441 = vmatpush.bf16.msra.mxu0 0
      %1442 = vmatpush.bf16.msra.mxu0 0
      %1443 = vmatpush.bf16.msra.mxu0 0
      %1444 = vmatpush.bf16.msra.mxu0 0
      %1445 = vmatpush.bf16.msra.mxu0 0
      %1446 = vmatpush.bf16.msra.mxu0 0
      %1447 = vmatpush.bf16.msra.mxu0 %v1432
      %1448 = vmatpush.bf16.msra.mxu0 %v1431
      %1449 = vmatmul.bf16.gmra.mxu0 %v1436
      %v1450 = vpop.f32.mrf.mxu0
      %v1451 = vadd.f32 0.0, %v1450
      %v1452 = vpop.f32.mrf.mxu0
      %v1453 = vadd.f32 0.0, %v1452
      %1454 = vmatmul.bf16.gmra.mxu0 %v1439
      %v1455 = vpop.f32.mrf.mxu0
      %v1456 = vadd.f32 0.0, %v1455
      %v1457 = vpop.f32.mrf.mxu0
      %v1458 = vadd.f32 0.0, %v1457
      %1459 = vdwg.mxu0
      %v1460 = vld [vmem:[%s7] sm:$0xf]
      %v1461 = vld [vmem:[%s7 + $0x4] sm:$0xf]
      %v1462 = vld [vmem:[%s7 + $0x8] sm:$0xf]
      %v1463 = vld [vmem:[%s7 + $0xc] sm:$0xf]
      %v1468 = vunpack.c.l.b16 %v1460
      %v1469 = vunpack.c.l.b16 %v1461
      %v1470 = vunpack.c.l.b16 %v1462
      %v1471 = vunpack.c.l.b16 %v1463
      %v1472 = vpack.c.b16 %v1469, %v1468
      %v1473 = vpack.c.b16 %v1471, %v1470
      %1476 = vmatpush.bf16.msra.mxu0 0
      %1477 = vmatpush.bf16.msra.mxu0 0
      %1478 = vmatpush.bf16.msra.mxu0 0
      %1479 = vmatpush.bf16.msra.mxu0 0
      %1480 = vmatpush.bf16.msra.mxu0 0
      %1481 = vmatpush.bf16.msra.mxu0 0
      %1482 = vmatpush.bf16.msra.mxu0 %v1473
      %1483 = vmatpush.bf16.msra.mxu0 %v1472
      %1484 = vmatmul.bf16.gmra.mxu0 %v1436
      %v1485 = vpop.f32.mrf.mxu0
      %v1486 = vadd.f32 0.0, %v1485
      %v1487 = vpop.f32.mrf.mxu0
      %v1488 = vadd.f32 0.0, %v1487
      %1489 = vmatmul.bf16.gmra.mxu0 %v1439
      %v1490 = vpop.f32.mrf.mxu0
      %v1491 = vadd.f32 0.0, %v1490
      %v1492 = vpop.f32.mrf.mxu0
      %v1493 = vadd.f32 0.0, %v1492
      %1494 = vdwg.mxu0
      %v1495 = vxor.u32 %v1451, 2147483648
      %v1496 = vxor.u32 %v1453, 2147483648
      %v1497 = vxor.u32 %v1456, 2147483648
      %v1498 = vxor.u32 %v1458, 2147483648
      %v1499 = vmul.f32 %v1495, 1.442695
      %v1500 = vpow.pop %v1499
      %v1501 = vmul.f32 %v1496, 1.442695
      %v1502 = vpow.pop %v1501
      %v1503 = vmul.f32 %v1497, 1.442695
      %v1504 = vpow.pop %v1503
      %v1505 = vmul.f32 %v1498, 1.442695
      %v1506 = vpow.pop %v1505
      %v1507 = vadd.f32 %v1500, 1.0
      %v1508 = vadd.f32 %v1502, 1.0
      %v1509 = vadd.f32 %v1504, 1.0
      %v1510 = vadd.f32 %v1506, 1.0
      %v1511 = vrcp.pop %v1507
      %v1512 = vmul.f32 %v1507, %v1511
      %v1513 = vsub.f32 1.0, %v1512
      %v1514 = vmul.f32 %v1511, %v1513
      %v1515 = vadd.f32 %v1511, %v1514
      %vm1516 = vweird.f32 %v1507
      %vm1517 = vweird.f32 %v1511
      %vm1518 = vmor %vm1516, %vm1517
      %v1519 = vsel %vm1518, %v1511, %v1515
      %v1520 = vand.u32 2147483647, %v1507
      %vm1521 = vcmp.eq.f32.partialorder %v1520, 8.507059e+37
      %v1522 = vand.u32 %v1507, 2147483648
      %v1523 = vor.u32 1.1754944e-38, %v1522
      %v1524 = vsel %vm1521, %v1523, %v1519
      %v1525 = vmul.f32 1.0, %v1524
      %v1526 = vrcp.pop %v1508
      %v1527 = vmul.f32 %v1508, %v1526
      %v1528 = vsub.f32 1.0, %v1527
      %v1529 = vmul.f32 %v1526, %v1528
      %v1530 = vadd.f32 %v1526, %v1529
      %vm1531 = vweird.f32 %v1508
      %vm1532 = vweird.f32 %v1526
      %vm1533 = vmor %vm1531, %vm1532
      %v1534 = vsel %vm1533, %v1526, %v1530
      %v1535 = vand.u32 2147483647, %v1508
      %vm1536 = vcmp.eq.f32.partialorder %v1535, 8.507059e+37
      %v1537 = vand.u32 %v1508, 2147483648
      %v1538 = vor.u32 1.1754944e-38, %v1537
      %v1539 = vsel %vm1536, %v1538, %v1534
      %v1540 = vmul.f32 1.0, %v1539
      %v1541 = vrcp.pop %v1509
      %v1542 = vmul.f32 %v1509, %v1541
      %v1543 = vsub.f32 1.0, %v1542
      %v1544 = vmul.f32 %v1541, %v1543
      %v1545 = vadd.f32 %v1541, %v1544
      %vm1546 = vweird.f32 %v1509
      %vm1547 = vweird.f32 %v1541
      %vm1548 = vmor %vm1546, %vm1547
      %v1549 = vsel %vm1548, %v1541, %v1545
      %v1550 = vand.u32 2147483647, %v1509
      %vm1551 = vcmp.eq.f32.partialorder %v1550, 8.507059e+37
      %v1552 = vand.u32 %v1509, 2147483648
      %v1553 = vor.u32 1.1754944e-38, %v1552
      %v1554 = vsel %vm1551, %v1553, %v1549
      %v1555 = vmul.f32 1.0, %v1554
      %v1556 = vrcp.pop %v1510
      %v1557 = vmul.f32 %v1510, %v1556
      %v1558 = vsub.f32 1.0, %v1557
      %v1559 = vmul.f32 %v1556, %v1558
      %v1560 = vadd.f32 %v1556, %v1559
      %vm1561 = vweird.f32 %v1510
      %vm1562 = vweird.f32 %v1556
      %vm1563 = vmor %vm1561, %vm1562
      %v1564 = vsel %vm1563, %v1556, %v1560
      %v1565 = vand.u32 2147483647, %v1510
      %vm1566 = vcmp.eq.f32.partialorder %v1565, 8.507059e+37
      %v1567 = vand.u32 %v1510, 2147483648
      %v1568 = vor.u32 1.1754944e-38, %v1567
      %v1569 = vsel %vm1566, %v1568, %v1564
      %v1570 = vmul.f32 1.0, %v1569
      %v1571 = vmul.f32 %v1451, %v1525
      %v1572 = vmul.f32 %v1453, %v1540
      %v1573 = vmul.f32 %v1456, %v1555
      %v1574 = vmul.f32 %v1458, %v1570
      %v1575 = vmul.f32 %v1571, %v1486
      %v1576 = vmul.f32 %v1572, %v1488
      %v1577 = vmul.f32 %v1573, %v1491
      %v1578 = vmul.f32 %v1574, %v1493
      %v1579 = vpack.c.bf16 %v1576, %v1575
      %v1580 = vpack.c.bf16 %v1578, %v1577
      %v1581 = vld [vmem:[%s8] sm:$0xf]
      %v1582 = vld [vmem:[%s8 + $0x4] sm:$0xf]
      %v1583 = vld [vmem:[%s8 + $0x8] sm:$0xf]
      %v1584 = vld [vmem:[%s8 + $0xc] sm:$0xf]
      %v1585 = vld [vmem:[%s8 + $0x10] sm:$0xf]
      %v1586 = vld [vmem:[%s8 + $0x14] sm:$0xf]
      %v1587 = vld [vmem:[%s8 + $0x18] sm:$0xf]
      %v1588 = vld [vmem:[%s8 + $0x1c] sm:$0xf]
      %v1589 = vld [vmem:[%s8 + $0x20] sm:$0xf]
      %v1590 = vld [vmem:[%s8 + $0x24] sm:$0xf]
      %v1591 = vld [vmem:[%s8 + $0x28] sm:$0xf]
      %v1592 = vld [vmem:[%s8 + $0x2c] sm:$0xf]
      %v1593 = vld [vmem:[%s8 + $0x30] sm:$0xf]
      %v1594 = vld [vmem:[%s8 + $0x34] sm:$0xf]
      %v1595 = vld [vmem:[%s8 + $0x38] sm:$0xf]
      %v1596 = vld [vmem:[%s8 + $0x3c] sm:$0xf]
      %v1613 = vunpack.c.l.b16 %v1581
      %v1614 = vunpack.c.l.b16 %v1582
      %v1615 = vunpack.c.l.b16 %v1583
      %v1616 = vunpack.c.l.b16 %v1584
      %v1617 = vunpack.c.l.b16 %v1585
      %v1618 = vunpack.c.l.b16 %v1586
      %v1619 = vunpack.c.l.b16 %v1587
      %v1620 = vunpack.c.l.b16 %v1588
      %v1621 = vunpack.c.l.b16 %v1589
      %v1622 = vunpack.c.l.b16 %v1590
      %v1623 = vunpack.c.l.b16 %v1591
      %v1624 = vunpack.c.l.b16 %v1592
      %v1625 = vunpack.c.l.b16 %v1593
      %v1626 = vunpack.c.l.b16 %v1594
      %v1627 = vunpack.c.l.b16 %v1595
      %v1628 = vunpack.c.l.b16 %v1596
      %v1629 = vpack.c.b16 %v1614, %v1613
      %v1630 = vpack.c.b16 %v1616, %v1615
      %v1631 = vpack.c.b16 %v1618, %v1617
      %v1632 = vpack.c.b16 %v1620, %v1619
      %v1633 = vpack.c.b16 %v1622, %v1621
      %v1634 = vpack.c.b16 %v1624, %v1623
      %v1635 = vpack.c.b16 %v1626, %v1625
      %v1636 = vpack.c.b16 %v1628, %v1627
      %1645 = vmatpush.bf16.msra.mxu0 %v1636
      %1646 = vmatpush.bf16.msra.mxu0 %v1635
      %1647 = vmatpush.bf16.msra.mxu0 %v1634
      %1648 = vmatpush.bf16.msra.mxu0 %v1633
      %1649 = vmatpush.bf16.msra.mxu0 %v1632
      %1650 = vmatpush.bf16.msra.mxu0 %v1631
      %1651 = vmatpush.bf16.msra.mxu0 %v1630
      %1652 = vmatpush.bf16.msra.mxu0 %v1629
      %1653 = vmatmul.bf16.gmra.mxu0 %v1579
      %v1654 = vpop.f32.mrf.mxu0
      %v1655 = vadd.f32 0.0, %v1654
      %v1656 = vpop.f32.mrf.mxu0
      %v1657 = vadd.f32 0.0, %v1656
      %1658 = vmatmul.bf16.gmra.mxu0 %v1580
      %v1659 = vpop.f32.mrf.mxu0
      %v1660 = vadd.f32 0.0, %v1659
      %v1661 = vpop.f32.mrf.mxu0
      %v1662 = vadd.f32 0.0, %v1661
      %1663 = vdwg.mxu0
      %v1664 = vadd.f32 %v1337, %v1655
      %v1665 = vadd.f32 %v1338, %v1657
      %v1666 = vadd.f32 %v1339, %v1660
      %v1667 = vadd.f32 %v1340, %v1662
      %1668 = vst.msk [vmem:[%s438] sm:$0xff] %vm469, %v1664
      %1669 = vst.msk [vmem:[%s438 + $0x8] sm:$0xff] %vm469, %v1665
      %1670 = vst.msk [vmem:[%s438 + $0x10] sm:$0xff] %vm469, %v1666
      %1671 = vst.msk [vmem:[%s438 + $0x18] sm:$0xff] %vm469, %v1667
      %v1672 = vmul.f32 %v1664, %v1664
      %v1673 = vmul.f32 %v1665, %v1665
      %v1674 = vmul.f32 %v1666, %v1666
      %v1675 = vmul.f32 %v1667, %v1667
      %v1676 = vsel %vm469, %v1672, 0.0
      %1677 = vadd.xlane.f32.xlu0 %v1676
      %v1678 = vpop.xlane.xlu0 %1677
      %v1679 = vsel %vm469, %v1673, 0.0
      %1680 = vadd.xlane.f32.xlu0 %v1679
      %v1681 = vpop.xlane.xlu0 %1680
      %v1682 = vsel %vm469, %v1674, 0.0
      %1683 = vadd.xlane.f32.xlu0 %v1682
      %v1684 = vpop.xlane.xlu0 %1683
      %v1685 = vsel %vm469, %v1675, 0.0
      %1686 = vadd.xlane.f32.xlu0 %v1685
      %v1687 = vpop.xlane.xlu0 %1686
      %v1688 = vadd.f32 %v1678, %v1681
      %v1689 = vrot.slane %v1688, 4
      %v1690 = vadd.f32 %v1688, %v1689
      %v1691 = vrot.slane %v1690, 2
      %v1692 = vadd.f32 %v1690, %v1691
      %v1693 = vrot.slane %v1692, 1
      %v1694 = vadd.f32 %v1692, %v1693
      %v1695 = vadd.f32 %v1684, %v1687
      %v1696 = vrot.slane %v1695, 4
      %v1697 = vadd.f32 %v1695, %v1696
      %v1698 = vrot.slane %v1697, 2
      %v1699 = vadd.f32 %v1697, %v1698
      %v1700 = vrot.slane %v1699, 1
      %v1701 = vadd.f32 %v1699, %v1700
      %vm1702 = vcmask 0
      %1703 = vst.msk [vmem:[%s445] sm:$0x1] %vm1702, %v1694
      %1704 = vst.msk [vmem:[%s445 + $0x1] sm:$0x1] %vm1702, %v1701
      %s1705 = sadd.s32 %s26, %s27
      %s1706 = smul.u32 2, %s1705
      %p1707 = scmp.lt.s32.totalorder %s1706, 3
      %s1708 = scalar_select %p1707, %s1706, 3
      %s1709 = smul.addr %s1708, 2
      %s1710 = smul.addr %s1709, 8
      %s1711 = scalar_lea.vmem %s9, %s1710
      %s1712 = sadd.s32 %s26, %s27
      %s1713 = smul.u32 2, %s1712
      %p1714 = scmp.lt.s32.totalorder %s1713, 3
      %s1715 = scalar_select %p1714, %s1713, 3
      %s1716 = scalar_lea.vmem %s10, %s1715
      // Predicated region
      $region57: #{_forward.1} parent=55 // pred_check
        %p1717 = pneg %p259
      $region58: #{_forward.1} parent=55 // pred_check_branch
        %1719 = sbr.rel (%p1717) target = $region60
      $region59: #{_forward.1} parent=55 // pred_region
        %s1720 = sadd.s32 %s26, %s27
        %s1721 = smul.u32 2, %s1720
      $region60: #{_forward.1} parent=55 // pred_fallthru
        _
      // Predicated region
      $region61: #{_forward.1} parent=55 // pred_check
        %p1722 = pneg %p287
      $region62: #{_forward.1} parent=55 // pred_check_branch
        %1724 = sbr.rel (%p1722) target = $region64
      $region63: #{_forward.1} parent=55 // pred_region
        %s1725 = sadd.s32 %s26, %s27
        %s1726 = smul.u32 2, %s1725
      $region64: #{_forward.1} parent=55 // pred_fallthru
        _
    $region56: #{_forward.1} parent=5 // pred_fallthru
      _
    %p1727 = scmp.le.s32.totalorder 2, %s17
    // Predicated region
    $region65: #{_forward.1} parent=5 // pred_check
      %p1728 = pneg %p1727
    $region66: #{_forward.1} parent=5 // pred_check_branch
      %1730 = sbr.rel (%p1728) target = $region68
    $region67: #{_forward.1} parent=5 // pred_region
      %s1731 = ssub.s32 %s17, 2
      // Predicated region
      $region69: #{_forward.1} parent=67 // pred_check
        %p1732 = pneg %p265
      $region70: #{_forward.1} parent=67 // pred_check_branch
        %1734 = sbr.rel (%p1732) target = $region72
      $region71: #{_forward.1} parent=67 // pred_region
        %s1735 = sadd.s32 %s28, %s29
        %s1736 = smul.u32 2, %s1735
        %p1737 = scmp.lt.s32.totalorder %s1736, 3
        %s1738 = scalar_select %p1737, %s1736, 3
        %s1739 = smul.addr %s1738, 2
        %s1740 = smul.addr %s1739, 8
        %s1741 = scalar_lea.vmem %s9, %s1740
      $region72: #{_forward.1} parent=67 // pred_fallthru
        _
      // Predicated region
      $region73: #{_forward.1} parent=67 // pred_check
        %p1742 = pneg %p293
      $region74: #{_forward.1} parent=67 // pred_check_branch
        %1744 = sbr.rel (%p1742) target = $region76
      $region75: #{_forward.1} parent=67 // pred_region
        %s1745 = sadd.s32 %s28, %s29
        %s1746 = smul.u32 2, %s1745
        %p1747 = scmp.lt.s32.totalorder %s1746, 3
        %s1748 = scalar_select %p1747, %s1746, 3
        %s1749 = scalar_lea.vmem %s10, %s1748
      $region76: #{_forward.1} parent=67 // pred_fallthru
        _
    $region68: #{_forward.1} parent=5 // pred_fallthru
      _
  $region6: #{_forward.1} parent=0 // loop_footer
    %s21 = sadd.s32 1, %s17
  $region7: #{_forward.1} parent=0 // loop_footer_branch
    %16 = sbr.rel target = $region3
  $region8: #{_forward.1} parent=0 // loop_exit
    _

// kernel: _forward.1
$region0: #{_forward.1}
  #allocation0 [shape = 'u32[]', space=smem, size = 0x4, offset = 0x4, fixed_abs, tag = 'smem constant byte address 0x4 - core index']
  #allocation1 [shape = 'u32[72,128]{1,0:T(1,128)}', space=vmem, size = 0x9000, scoped, tag = 'internal scratch']
  %s0 = inlined_call_operand.vmem [shape: f32[2,16,32], index: 0, kind: input, shape index: {}]
  %s1 = inlined_call_operand.vmem [shape: f32[2,16,32], index: 1, kind: input, shape index: {}]
  %s2 = inlined_call_operand.vmem [shape: f32[1,32], index: 2, kind: input, shape index: {}]
  %s3 = inlined_call_operand.vmem [shape: bf16[32,96], index: 3, kind: input, shape index: {}]
  %s4 = inlined_call_operand.vmem [shape: bf16[32,32], index: 4, kind: input, shape index: {}]
  %s5 = inlined_call_operand.vmem [shape: f32[1,32], index: 5, kind: input, shape index: {}]
  %s6 = inlined_call_operand.vmem [shape: bf16[32,128], index: 6, kind: input, shape index: {}]
  %s7 = inlined_call_operand.vmem [shape: bf16[32,128], index: 7, kind: input, shape index: {}]
  %s8 = inlined_call_operand.vmem [shape: bf16[128,32], index: 8, kind: input, shape index: {}]
  %s9 = inlined_call_operand.vmem [shape: f32[4,16,32], index: 9, kind: output, shape index: {0}]
  %s10 = inlined_call_operand.vmem [shape: f32[4,1,1], index: 10, kind: output, shape index: {1}]
  %11 = xla_tuple %s9, %s10
  %s12 = sld [smem:[#allocation0]]
  $region77: #{_forward.1} parent=0
    _
  %s14 = ssub.s32 1, %s12
  %s15 = scalar_select 0, %s14, %s12
  loop: start=0, step=1, limit=4
  $region2: #{_forward.1} parent=0 // loop_pre_header
    _
  $region3: #{_forward.1} parent=0 // loop_header
    %s17 = sphi 0, %s21
    %p18 = scmp.ge.s32.totalorder %s17, 4
    %s24 = sphi 0, %s36
    %s25 = sphi 0, %s32
    %s26 = sphi 0, %s24
    %s27 = sphi 0, %s25
    %s28 = sphi 0, %s26
    %s29 = sphi 0, %s27
    %s43 = sphi 0, %s45
    %s46 = sphi 0, %s43
    %s47 = sphi 0, %s46
    %s63 = sphi 0, %s47
    %s71 = sphi 0, %s73
    %s74 = sphi 0, %s71
    %s75 = sphi 0, %s74
    %s91 = sphi 0, %s75
    %s95 = sphi 0, %s95
    %s97 = sphi 0, %s95
    %s98 = sphi 0, %s97
    %s112 = sphi 0, %s98
    %s116 = sphi 0, %s116
    %s118 = sphi 0, %s116
    %s119 = sphi 0, %s118
    %s133 = sphi 0, %s119
    %s137 = sphi 0, %s137
    %s139 = sphi 0, %s137
    %s140 = sphi 0, %s139
    %s154 = sphi 0, %s140
    %s158 = sphi 0, %s158
    %s160 = sphi 0, %s158
    %s161 = sphi 0, %s160
    %s175 = sphi 0, %s161
    %s179 = sphi 0, %s179
    %s181 = sphi 0, %s179
    %s182 = sphi 0, %s181
    %s196 = sphi 0, %s182
    %s200 = sphi 0, %s200
    %s202 = sphi 0, %s200
    %s203 = sphi 0, %s202
    %s217 = sphi 0, %s203
    %s221 = sphi 0, %s221
    %s223 = sphi 0, %s221
    %s224 = sphi 0, %s223
    %s238 = sphi 0, %s224
    %s246 = sphi 0, %s248
    %s249 = sphi 0, %s246
    %s250 = sphi 0, %s249
    %s266 = sphi 0, %s250
    %s274 = sphi 0, %s276
    %s277 = sphi 0, %s274
    %s278 = sphi 0, %s277
    %s294 = sphi 0, %s278
  $region4: #{_forward.1} parent=0 // loop_header_branch
    %20 = sbr.rel (%p18) target = $region8
  $region5: #{_forward.1} parent=0 // loop_body
    %s22 = ssub.s32 %s17, 1
    %s23 = ssub.s32 %s17, 2
    %s30 = sadd.s32 1, %s25
    %p31 = scmp.ge.s32.totalorder %s30, 1
    %s32 = scalar_select %p31, 0, %s30
    %s33 = sadd.s32 1, %s24
    %s34 = scalar_select %p31, %s33, %s24
    %p35 = scmp.ge.s32.totalorder %s34, 2
    %s36 = scalar_select %p35, 0, %s34
    %s37 = ssub.s32 1, %s24
    %s38 = smul.u32 %s25, %s37
    %s39 = ssub.s32 1, %s36
    %s40 = smul.u32 %s32, %s39
    %s41 = ssub.s32 %s38, %s40
    %p42 = scmp.eq.s32.totalorder %s41, 0
    %s44 = sadd.s32 %s43, 1
    %s45 = scalar_select %p42, %s43, %s44
    %p48 = pneg %p42
    %p49 = scmp.eq.s32.totalorder %s17, 1
    %p50 = por %p48, %p49
    %p51 = scmp.ne.s32.totalorder %s43, %s46
    %p52 = scmp.eq.s32.totalorder %s17, 0
    %p53 = por %p51, %p52
    %p54 = scmp.ne.s32.totalorder %s43, %s46
    %p55 = scmp.eq.s32.totalorder %s22, 1
    %p56 = por %p54, %p55
    %p57 = scmp.ne.s32.totalorder %s46, %s47
    %p58 = scmp.eq.s32.totalorder %s22, 0
    %p59 = por %p57, %p58
    %p60 = scmp.ne.s32.totalorder %s46, %s47
    %p61 = scmp.eq.s32.totalorder %s23, 1
    %p62 = por %p60, %p61
    %p64 = scmp.ne.s32.totalorder %s47, %s63
    %p65 = scmp.eq.s32.totalorder %s23, 0
    %p66 = por %p64, %p65
    %s67 = smul.u32 %s25, %s24
    %s68 = smul.u32 %s32, %s36
    %s69 = ssub.s32 %s67, %s68
    %p70 = scmp.eq.s32.totalorder %s69, 0
    %s72 = sadd.s32 %s71, 1
    %s73 = scalar_select %p70, %s71, %s72
    %p76 = pneg %p70
    %p77 = scmp.eq.s32.totalorder %s17, 1
    %p78 = por %p76, %p77
    %p79 = scmp.ne.s32.totalorder %s71, %s74
    %p80 = scmp.eq.s32.totalorder %s17, 0
    %p81 = por %p79, %p80
    %p82 = scmp.ne.s32.totalorder %s71, %s74
    %p83 = scmp.eq.s32.totalorder %s22, 1
    %p84 = por %p82, %p83
    %p85 = scmp.ne.s32.totalorder %s74, %s75
    %p86 = scmp.eq.s32.totalorder %s22, 0
    %p87 = por %p85, %p86
    %p88 = scmp.ne.s32.totalorder %s74, %s75
    %p89 = scmp.eq.s32.totalorder %s23, 1
    %p90 = por %p88, %p89
    %p92 = scmp.ne.s32.totalorder %s75, %s91
    %p93 = scmp.eq.s32.totalorder %s23, 0
    %p94 = por %p92, %p93
    %s96 = sadd.s32 %s95, 1
    %p99 = scmp.eq.s32.totalorder %s17, 1
    %p100 = scmp.ne.s32.totalorder %s95, %s97
    %p101 = scmp.eq.s32.totalorder %s17, 0
    %p102 = por %p100, %p101
    %p103 = scmp.ne.s32.totalorder %s95, %s97
    %p104 = scmp.eq.s32.totalorder %s22, 1
    %p105 = por %p103, %p104
    %p106 = scmp.ne.s32.totalorder %s97, %s98
    %p107 = scmp.eq.s32.totalorder %s22, 0
    %p108 = por %p106, %p107
    %p109 = scmp.ne.s32.totalorder %s97, %s98
    %p110 = scmp.eq.s32.totalorder %s23, 1
    %p111 = por %p109, %p110
    %p113 = scmp.ne.s32.totalorder %s98, %s112
    %p114 = scmp.eq.s32.totalorder %s23, 0
    %p115 = por %p113, %p114
    %s117 = sadd.s32 %s116, 1
    %p120 = scmp.eq.s32.totalorder %s17, 1
    %p121 = scmp.ne.s32.totalorder %s116, %s118
    %p122 = scmp.eq.s32.totalorder %s17, 0
    %p123 = por %p121, %p122
    %p124 = scmp.ne.s32.totalorder %s116, %s118
    %p125 = scmp.eq.s32.totalorder %s22, 1
    %p126 = por %p124, %p125
    %p127 = scmp.ne.s32.totalorder %s118, %s119
    %p128 = scmp.eq.s32.totalorder %s22, 0
    %p129 = por %p127, %p128
    %p130 = scmp.ne.s32.totalorder %s118, %s119
    %p131 = scmp.eq.s32.totalorder %s23, 1
    %p132 = por %p130, %p131
    %p134 = scmp.ne.s32.totalorder %s119, %s133
    %p135 = scmp.eq.s32.totalorder %s23, 0
    %p136 = por %p134, %p135
    %s138 = sadd.s32 %s137, 1
    %p141 = scmp.eq.s32.totalorder %s17, 1
    %p142 = scmp.ne.s32.totalorder %s137, %s139
    %p143 = scmp.eq.s32.totalorder %s17, 0
    %p144 = por %p142, %p143
    %p145 = scmp.ne.s32.totalorder %s137, %s139
    %p146 = scmp.eq.s32.totalorder %s22, 1
    %p147 = por %p145, %p146
    %p148 = scmp.ne.s32.totalorder %s139, %s140
    %p149 = scmp.eq.s32.totalorder %s22, 0
    %p150 = por %p148, %p149
    %p151 = scmp.ne.s32.totalorder %s139, %s140
    %p152 = scmp.eq.s32.totalorder %s23, 1
    %p153 = por %p151, %p152
    %p155 = scmp.ne.s32.totalorder %s140, %s154
    %p156 = scmp.eq.s32.totalorder %s23, 0
    %p157 = por %p155, %p156
    %s159 = sadd.s32 %s158, 1
    %p162 = scmp.eq.s32.totalorder %s17, 1
    %p163 = scmp.ne.s32.totalorder %s158, %s160
    %p164 = scmp.eq.s32.totalorder %s17, 0
    %p165 = por %p163, %p164
    %p166 = scmp.ne.s32.totalorder %s158, %s160
    %p167 = scmp.eq.s32.totalorder %s22, 1
    %p168 = por %p166, %p167
    %p169 = scmp.ne.s32.totalorder %s160, %s161
    %p170 = scmp.eq.s32.totalorder %s22, 0
    %p171 = por %p169, %p170
    %p172 = scmp.ne.s32.totalorder %s160, %s161
    %p173 = scmp.eq.s32.totalorder %s23, 1
    %p174 = por %p172, %p173
    %p176 = scmp.ne.s32.totalorder %s161, %s175
    %p177 = scmp.eq.s32.totalorder %s23, 0
    %p178 = por %p176, %p177
    %s180 = sadd.s32 %s179, 1
    %p183 = scmp.eq.s32.totalorder %s17, 1
    %p184 = scmp.ne.s32.totalorder %s179, %s181
    %p185 = scmp.eq.s32.totalorder %s17, 0
    %p186 = por %p184, %p185
    %p187 = scmp.ne.s32.totalorder %s179, %s181
    %p188 = scmp.eq.s32.totalorder %s22, 1
    %p189 = por %p187, %p188
    %p190 = scmp.ne.s32.totalorder %s181, %s182
    %p191 = scmp.eq.s32.totalorder %s22, 0
    %p192 = por %p190, %p191
    %p193 = scmp.ne.s32.totalorder %s181, %s182
    %p194 = scmp.eq.s32.totalorder %s23, 1
    %p195 = por %p193, %p194
    %p197 = scmp.ne.s32.totalorder %s182, %s196
    %p198 = scmp.eq.s32.totalorder %s23, 0
    %p199 = por %p197, %p198
    %s201 = sadd.s32 %s200, 1
    %p204 = scmp.eq.s32.totalorder %s17, 1
    %p205 = scmp.ne.s32.totalorder %s200, %s202
    %p206 = scmp.eq.s32.totalorder %s17, 0
    %p207 = por %p205, %p206
    %p208 = scmp.ne.s32.totalorder %s200, %s202
    %p209 = scmp.eq.s32.totalorder %s22, 1
    %p210 = por %p208, %p209
    %p211 = scmp.ne.s32.totalorder %s202, %s203
    %p212 = scmp.eq.s32.totalorder %s22, 0
    %p213 = por %p211, %p212
    %p214 = scmp.ne.s32.totalorder %s202, %s203
    %p215 = scmp.eq.s32.totalorder %s23, 1
    %p216 = por %p214, %p215
    %p218 = scmp.ne.s32.totalorder %s203, %s217
    %p219 = scmp.eq.s32.totalorder %s23, 0
    %p220 = por %p218, %p219
    %s222 = sadd.s32 %s221, 1
    %p225 = scmp.eq.s32.totalorder %s17, 1
    %p226 = scmp.ne.s32.totalorder %s221, %s223
    %p227 = scmp.eq.s32.totalorder %s17, 0
    %p228 = por %p226, %p227
    %p229 = scmp.ne.s32.totalorder %s221, %s223
    %p230 = scmp.eq.s32.totalorder %s22, 1
    %p231 = por %p229, %p230
    %p232 = scmp.ne.s32.totalorder %s223, %s224
    %p233 = scmp.eq.s32.totalorder %s22, 0
    %p234 = por %p232, %p233
    %p235 = scmp.ne.s32.totalorder %s223, %s224
    %p236 = scmp.eq.s32.totalorder %s23, 1
    %p237 = por %p235, %p236
    %p239 = scmp.ne.s32.totalorder %s224, %s238
    %p240 = scmp.eq.s32.totalorder %s23, 0
    %p241 = por %p239, %p240
    %s242 = sadd.s32 %s24, %s25
    %s243 = sadd.s32 %s36, %s32
    %s244 = ssub.s32 %s242, %s243
    %p245 = scmp.eq.s32.totalorder %s244, 0
    %s247 = sadd.s32 %s246, 1
    %s248 = scalar_select %p245, %s246, %s247
    %p251 = pneg %p245
    %p252 = scmp.eq.s32.totalorder %s17, 1
    %p253 = por %p251, %p252
    %p254 = scmp.ne.s32.totalorder %s246, %s249
    %p255 = scmp.eq.s32.totalorder %s17, 0
    %p256 = por %p254, %p255
    %p257 = scmp.ne.s32.totalorder %s246, %s249
    %p258 = scmp.eq.s32.totalorder %s22, 1
    %p259 = por %p257, %p258
    %p260 = scmp.ne.s32.totalorder %s249, %s250
    %p261 = scmp.eq.s32.totalorder %s22, 0
    %p262 = por %p260, %p261
    %p263 = scmp.ne.s32.totalorder %s249, %s250
    %p264 = scmp.eq.s32.totalorder %s23, 1
    %p265 = por %p263, %p264
    %p267 = scmp.ne.s32.totalorder %s250, %s266
    %p268 = scmp.eq.s32.totalorder %s23, 0
    %p269 = por %p267, %p268
    %s270 = sadd.s32 %s24, %s25
    %s271 = sadd.s32 %s36, %s32
    %s272 = ssub.s32 %s270, %s271
    %p273 = scmp.eq.s32.totalorder %s272, 0
    %s275 = sadd.s32 %s274, 1
    %s276 = scalar_select %p273, %s274, %s275
    %p279 = pneg %p273
    %p280 = scmp.eq.s32.totalorder %s17, 1
    %p281 = por %p279, %p280
    %p282 = scmp.ne.s32.totalorder %s274, %s277
    %p283 = scmp.eq.s32.totalorder %s17, 0
    %p284 = por %p282, %p283
    %p285 = scmp.ne.s32.totalorder %s274, %s277
    %p286 = scmp.eq.s32.totalorder %s22, 1
    %p287 = por %p285, %p286
    %p288 = scmp.ne.s32.totalorder %s277, %s278
    %p289 = scmp.eq.s32.totalorder %s22, 0
    %p290 = por %p288, %p289
    %p291 = scmp.ne.s32.totalorder %s277, %s278
    %p292 = scmp.eq.s32.totalorder %s23, 1
    %p293 = por %p291, %p292
    %p295 = scmp.ne.s32.totalorder %s278, %s294
    %p296 = scmp.eq.s32.totalorder %s23, 0
    %p297 = por %p295, %p296
    %p298 = scmp.le.s32.totalorder 1, %s17
    %p299 = scmp.lt.s32.totalorder %s17, 3
    %p300 = pnand %p298, %p299
    %p301 = pneg %p300
    // Predicated region
    $region9: #{_forward.1} parent=5 // pred_check
      _
    $region10: #{_forward.1} parent=5 // pred_check_branch
      %303 = sbr.rel (%p300) target = $region12
    $region11: #{_forward.1} parent=5 // pred_region
      %s304 = ssub.s32 %s17, 1
      // Predicated region
      $region13: #{_forward.1} parent=11 // pred_check
        %p305 = pneg %p108
      $region14: #{_forward.1} parent=11 // pred_check_branch
        %307 = sbr.rel (%p305) target = $region16
      $region15: #{_forward.1} parent=11 // pred_region
        _
      $region16: #{_forward.1} parent=11 // pred_fallthru
        _
      // Predicated region
      $region17: #{_forward.1} parent=11 // pred_check
        %p308 = pneg %p129
      $region18: #{_forward.1} parent=11 // pred_check_branch
        %310 = sbr.rel (%p308) target = $region20
      $region19: #{_forward.1} parent=11 // pred_region
        _
      $region20: #{_forward.1} parent=11 // pred_fallthru
        _
      // Predicated region
      $region21: #{_forward.1} parent=11 // pred_check
        %p311 = pneg %p150
      $region22: #{_forward.1} parent=11 // pred_check_branch
        %313 = sbr.rel (%p311) target = $region24
      $region23: #{_forward.1} parent=11 // pred_region
        _
      $region24: #{_forward.1} parent=11 // pred_fallthru
        _
      // Predicated region
      $region25: #{_forward.1} parent=11 // pred_check
        %p314 = pneg %p171
      $region26: #{_forward.1} parent=11 // pred_check_branch
        %316 = sbr.rel (%p314) target = $region28
      $region27: #{_forward.1} parent=11 // pred_region
        _
      $region28: #{_forward.1} parent=11 // pred_fallthru
        _
      // Predicated region
      $region29: #{_forward.1} parent=11 // pred_check
        %p317 = pneg %p192
      $region30: #{_forward.1} parent=11 // pred_check_branch
        %319 = sbr.rel (%p317) target = $region32
      $region31: #{_forward.1} parent=11 // pred_region
        _
      $region32: #{_forward.1} parent=11 // pred_fallthru
        _
      // Predicated region
      $region33: #{_forward.1} parent=11 // pred_check
        %p320 = pneg %p213
      $region34: #{_forward.1} parent=11 // pred_check_branch
        %322 = sbr.rel (%p320) target = $region36
      $region35: #{_forward.1} parent=11 // pred_region
        _
      $region36: #{_forward.1} parent=11 // pred_fallthru
        _
      // Predicated region
      $region37: #{_forward.1} parent=11 // pred_check
        %p323 = pneg %p234
      $region38: #{_forward.1} parent=11 // pred_check_branch
        %325 = sbr.rel (%p323) target = $region40
      $region39: #{_forward.1} parent=11 // pred_region
        _
      $region40: #{_forward.1} parent=11 // pred_fallthru
        _
    $region12: #{_forward.1} parent=5 // pred_fallthru
      _
    %p326 = scmp.lt.s32.totalorder %s17, 2
    // Predicated region
    $region41: #{_forward.1} parent=5 // pred_check
      %p327 = pneg %p326
    $region42: #{_forward.1} parent=5 // pred_check_branch
      %329 = sbr.rel (%p327) target = $region44
    $region43: #{_forward.1} parent=5 // pred_region
      // Predicated region
      $region45: #{_forward.1} parent=43 // pred_check
        %p330 = pneg %p53
      $region46: #{_forward.1} parent=43 // pred_check_branch
        %332 = sbr.rel (%p330) target = $region48
      $region47: #{_forward.1} parent=43 // pred_region
        %s333 = ssub.s32 1, %s24
        %s334 = smul.u32 %s25, %s333
        %s335 = smul.u32 2, %s334
        %p336 = scmp.lt.s32.totalorder %s335, 1
        %s337 = scalar_select %p336, %s335, 1
        %s338 = smul.addr %s337, 2
        %s339 = smul.addr %s338, 8
        %s340 = scalar_lea.vmem %s0, %s339
        %s341 = ssub.s32 1, %s24
        %s342 = smul.u32 %s25, %s341
        %s343 = smul.u32 2, %s342
      $region48: #{_forward.1} parent=43 // pred_fallthru
        _
      // Predicated region
      $region49: #{_forward.1} parent=43 // pred_check
        %p344 = pneg %p81
      $region50: #{_forward.1} parent=43 // pred_check_branch
        %346 = sbr.rel (%p344) target = $region52
      $region51: #{_forward.1} parent=43 // pred_region
        %s347 = smul.u32 %s25, %s24
        %s348 = smul.u32 2, %s347
        %p349 = scmp.lt.s32.totalorder %s348, 1
        %s350 = scalar_select %p349, %s348, 1
        %s351 = smul.addr %s350, 2
        %s352 = smul.addr %s351, 8
        %s353 = scalar_lea.vmem %s1, %s352
        %s354 = smul.u32 %s25, %s24
        %s355 = smul.u32 2, %s354
      $region52: #{_forward.1} parent=43 // pred_fallthru
        _
    $region44: #{_forward.1} parent=5 // pred_fallthru
      _
    %p356 = scmp.le.s32.totalorder 1, %s17
    %p357 = scmp.lt.s32.totalorder %s17, 3
    %p358 = pnand %p356, %p357
    %p359 = pneg %p358
    // Predicated region
    $region53: #{_forward.1} parent=5 // pred_check
      _
    $region54: #{_forward.1} parent=5 // pred_check_branch
      %361 = sbr.rel (%p358) target = $region56
    $region55: #{_forward.1} parent=5 // pred_region
      %s362 = ssub.s32 %s17, 1
      %s363 = ssub.s32 1, %s26
      %s364 = smul.u32 %s27, %s363
      %s365 = smul.u32 2, %s364
      %p366 = scmp.lt.s32.totalorder %s365, 1
      %s367 = scalar_select %p366, %s365, 1
      %s368 = smul.addr %s367, 2
      %s369 = smul.addr %s368, 8
      %s370 = scalar_lea.vmem %s0, %s369
      %p371 = pneg %p59
      %p372 = pneg %p56
      %s373 = smul.u32 %s27, %s26
      %s374 = smul.u32 2, %s373
      %p375 = scmp.lt.s32.totalorder %s374, 1
      %s376 = scalar_select %p375, %s374, 1
      %s377 = smul.addr %s376, 2
      %s378 = smul.addr %s377, 8
      %s379 = scalar_lea.vmem %s1, %s378
      %p380 = pneg %p87
      %p381 = pneg %p84
      %p382 = pneg %p108
      %p383 = pneg %p105
      %p384 = pneg %p129
      %p385 = pneg %p126
      %p386 = pneg %p150
      %p387 = pneg %p147
      %p388 = pneg %p171
      %p389 = pneg %p168
      %p390 = pneg %p192
      %p391 = pneg %p189
      %p392 = pneg %p213
      %p393 = pneg %p210
      %p394 = pneg %p234
      %p395 = pneg %p231
      %p396 = pneg %p262
      %p397 = pneg %p259
      %s398 = sadd.s32 %s26, %s27
      %s399 = smul.u32 2, %s398
      %p400 = scmp.lt.s32.totalorder %s399, 3
      %s401 = scalar_select %p400, %s399, 3
      %s402 = smul.addr %s401, 2
      %s403 = smul.addr %s402, 8
      %s404 = scalar_lea.vmem %s9, %s403
      %p405 = pneg %p290
      %p406 = pneg %p287
      %s407 = sadd.s32 %s26, %s27
      %s408 = smul.u32 2, %s407
      %p409 = scmp.lt.s32.totalorder %s408, 3
      %s410 = scalar_select %p409, %s408, 3
      %s411 = scalar_lea.vmem %s10, %s410
      %s412 = ssub.s32 1, %s26
      %s413 = smul.u32 %s27, %s412
      %s414 = smul.u32 2, %s413
      %p415 = scmp.lt.s32.totalorder %s414, 1
      %s416 = scalar_select %p415, %s414, 1
      %s417 = smul.addr %s416, 2
      %s418 = smul.addr %s417, 8
      %s419 = scalar_lea.vmem %s0, %s418
      %s420 = ssub.s32 1, %s26
      %s421 = smul.u32 %s27, %s420
      %s422 = smul.u32 2, %s421
      %s423 = smul.u32 %s27, %s26
      %s424 = smul.u32 2, %s423
      %p425 = scmp.lt.s32.totalorder %s424, 1
      %s426 = scalar_select %p425, %s424, 1
      %s427 = smul.addr %s426, 2
      %s428 = smul.addr %s427, 8
      %s429 = scalar_lea.vmem %s1, %s428
      %s430 = smul.u32 %s27, %s26
      %s431 = smul.u32 2, %s430
      %s432 = sadd.s32 %s26, %s27
      %s433 = smul.u32 2, %s432
      %p434 = scmp.lt.s32.totalorder %s433, 3
      %s435 = scalar_select %p434, %s433, 3
      %s436 = smul.addr %s435, 2
      %s437 = smul.addr %s436, 8
      %s438 = scalar_lea.vmem %s9, %s437
      %s439 = sadd.s32 %s26, %s27
      %s440 = smul.u32 2, %s439
      %s441 = sadd.s32 %s26, %s27
      %s442 = smul.u32 2, %s441
      %p443 = scmp.lt.s32.totalorder %s442, 3
      %s444 = scalar_select %p443, %s442, 3
      %s445 = scalar_lea.vmem %s10, %s444
      %s446 = sadd.s32 %s26, %s27
      %s447 = smul.u32 2, %s446
      %p449 = scmp.eq.s32.totalorder %s26, 0
      %v450 = vld [vmem:[%s419] sm:$0xff]
      %v451 = vld [vmem:[%s419 + $0x8] sm:$0xff]
      %v452 = vld [vmem:[%s419 + $0x10] sm:$0xff]
      %v453 = vld [vmem:[%s419 + $0x18] sm:$0xff]
      %v454 = vld [vmem:[%s429] sm:$0xff]
      %v455 = vld [vmem:[%s429 + $0x8] sm:$0xff]
      %v456 = vld [vmem:[%s429 + $0x10] sm:$0xff]
      %v457 = vld [vmem:[%s429 + $0x18] sm:$0xff]
      %s458 = scalar_select %p449, 1, 0
      %v459 = vstv %s458
      %vm460 = vcmp.eq.s32.totalorder %v459, 1
      %v461 = vsel %vm460, %v450, %v454
      %v462 = vsel %vm460, %v451, %v455
      %v463 = vsel %vm460, %v452, %v456
      %v464 = vsel %vm460, %v453, %v457
      %v465 = vmul.f32 %v461, %v461
      %v466 = vmul.f32 %v462, %v462
      %v467 = vmul.f32 %v463, %v463
      %v468 = vmul.f32 %v464, %v464
      %vm469 = vcmask 261120
      %v470 = vsel %vm469, %v465, 0.0
      %471 = vadd.xlane.f32.xlu0 %v470
      %v472 = vpop.xlane.xlu0 %471
      %v473 = vsel %vm469, %v466, 0.0
      %474 = vadd.xlane.f32.xlu0 %v473
      %v475 = vpop.xlane.xlu0 %474
      %v476 = vsel %vm469, %v467, 0.0
      %477 = vadd.xlane.f32.xlu0 %v476
      %v478 = vpop.xlane.xlu0 %477
      %v479 = vsel %vm469, %v468, 0.0
      %480 = vadd.xlane.f32.xlu0 %v479
      %v481 = vpop.xlane.xlu0 %480
      %v482 = vrcp.pop 32.0
      %v483 = vmul.f32 32.0, %v482
      %v484 = vsub.f32 1.0, %v483
      %v485 = vmul.f32 %v482, %v484
      %v486 = vadd.f32 %v482, %v485
      %vm487 = vweird.f32 %v482
      %v488 = vsel %vm487, %v482, %v486
      %v489 = vmul.f32 %v472, %v488
      %v490 = vmul.f32 %v475, %v488
      %v491 = vmul.f32 %v478, %v488
      %v492 = vmul.f32 %v481, %v488
      %v493 = vadd.f32 %v489, 1e-06
      %v494 = vadd.f32 %v490, 1e-06
      %v495 = vadd.f32 %v491, 1e-06
      %v496 = vadd.f32 %v492, 1e-06
      %v497 = vrsqrt.pop %v493
      %v498 = vmul.f32 %v497, %v493
      %v499 = vmul.f32 %v498, %v497
      %v500 = vmul.f32 0.5, %v499
      %v501 = vsub.f32 1.5, %v500
      %v502 = vmul.f32 %v497, %v501
      %vm503 = vweird.f32 %v493
      %vm504 = vweird.f32 %v497
      %vm505 = vmor %vm503, %vm504
      %v506 = vsel %vm505, %v497, %v502
      %v507 = vrsqrt.pop %v494
      %v508 = vmul.f32 %v507, %v494
      %v509 = vmul.f32 %v508, %v507
      %v510 = vmul.f32 0.5, %v509
      %v511 = vsub.f32 1.5, %v510
      %v512 = vmul.f32 %v507, %v511
      %vm513 = vweird.f32 %v494
      %vm514 = vweird.f32 %v507
      %vm515 = vmor %vm513, %vm514
      %v516 = vsel %vm515, %v507, %v512
      %v517 = vrsqrt.pop %v495
      %v518 = vmul.f32 %v517, %v495
      %v519 = vmul.f32 %v518, %v517
      %v520 = vmul.f32 0.5, %v519
      %v521 = vsub.f32 1.5, %v520
      %v522 = vmul.f32 %v517, %v521
      %vm523 = vweird.f32 %v495
      %vm524 = vweird.f32 %v517
      %vm525 = vmor %vm523, %vm524
      %v526 = vsel %vm525, %v517, %v522
      %v527 = vrsqrt.pop %v496
      %v528 = vmul.f32 %v527, %v496
      %v529 = vmul.f32 %v528, %v527
      %v530 = vmul.f32 0.5, %v529
      %v531 = vsub.f32 1.5, %v530
      %v532 = vmul.f32 %v527, %v531
      %vm533 = vweird.f32 %v496
      %vm534 = vweird.f32 %v527
      %vm535 = vmor %vm533, %vm534
      %v536 = vsel %vm535, %v527, %v532
      %v537 = vmul.f32 %v461, %v506
      %v538 = vmul.f32 %v462, %v516
      %v539 = vmul.f32 %v463, %v526
      %v540 = vmul.f32 %v464, %v536
      %v541 = vld [vmem:[%s2] sm:$0x1]
      %v543 = vperm.slane %v541, 0
      %v545 = vmul.f32 %v537, %v543
      %v546 = vmul.f32 %v538, %v543
      %v547 = vmul.f32 %v539, %v543
      %v548 = vmul.f32 %v540, %v543
      %v549 = vpack.c.bf16 %v546, %v545
      %v550 = vpack.c.bf16 %v548, %v547
      %v551 = vld [vmem:[%s3] sm:$0xf]
      %v552 = vld [vmem:[%s3 + $0x4] sm:$0xf]
      %v553 = vld [vmem:[%s3 + $0x8] sm:$0xf]
      %v554 = vld [vmem:[%s3 + $0xc] sm:$0xf]
      %v559 = vunpack.c.l.b16 %v551
      %v560 = vunpack.c.l.b16 %v552
      %v561 = vunpack.c.l.b16 %v553
      %v562 = vunpack.c.l.b16 %v554
      %v563 = vpack.c.b16 %v560, %v559
      %v564 = vpack.c.b16 %v562, %v561
      %v568 = vsel %vm469, %v549, 0
      %v571 = vsel %vm469, %v550, 0
      %573 = vmatpush.bf16.msra.mxu0 0
      %574 = vmatpush.bf16.msra.mxu0 0
      %575 = vmatpush.bf16.msra.mxu0 0
      %576 = vmatpush.bf16.msra.mxu0 0
      %577 = vmatpush.bf16.msra.mxu0 0
      %578 = vmatpush.bf16.msra.mxu0 0
      %579 = vmatpush.bf16.msra.mxu0 %v564
      %580 = vmatpush.bf16.msra.mxu0 %v563
      %581 = vmatmul.bf16.gmra.mxu0 %v568
      %v582 = vpop.f32.mrf.mxu0
      %v583 = vadd.f32 0.0, %v582
      %v584 = vpop.f32.mrf.mxu0
      %v585 = vadd.f32 0.0, %v584
      %586 = vmatmul.bf16.gmra.mxu0 %v571
      %v587 = vpop.f32.mrf.mxu0
      %v588 = vadd.f32 0.0, %v587
      %v589 = vpop.f32.mrf.mxu0
      %v590 = vadd.f32 0.0, %v589
      %591 = vdwg.mxu0
      %v592 = vld [vmem:[%s4] sm:$0xf]
      %v593 = vld [vmem:[%s4 + $0x4] sm:$0xf]
      %v594 = vld [vmem:[%s4 + $0x8] sm:$0xf]
      %v595 = vld [vmem:[%s4 + $0xc] sm:$0xf]
      %v596 = vpack.c.bf16 %v583, %v583
      %v597 = vpack.c.bf16 %v585, %v585
      %v598 = vpack.c.bf16 %v588, %v588
      %v599 = vpack.c.bf16 %v590, %v590
      %v602 = vunpack.c.l.b16 %v596
      %v603 = vunpack.c.l.b16 %v597
      %v604 = vpack.c.b16 %v603, %v602
      %605 = vrot.lane.b32.xlu0 %v604, 96
      %v606 = vpop.permute.xlu0 %605
      %vm607 = vcmask 64512
      %v609 = vsel %vm607, %v604, 0
      %v612 = vsel %vm607, %v606, 0
      %614 = vmatpush.bf16.xpose.msra.mxu0 0
      %615 = vmatpush.bf16.xpose.msra.mxu0 0
      %616 = vmatpush.bf16.xpose.msra.mxu0 0
      %617 = vmatpush.bf16.xpose.msra.mxu0 0
      %618 = vmatpush.bf16.xpose.msra.mxu0 0
      %619 = vmatpush.bf16.xpose.msra.mxu0 0
      %620 = vmatpush.bf16.xpose.msra.mxu0 0
      %621 = vmatpush.bf16.xpose.msra.mxu0 %v612
      %622 = vmatmul.bf16.gmra.mxu0 %v609
      %v623 = vpop.f32.mrf.mxu0
      %v624 = vadd.f32 0.0, %v623
      %v625 = vpop.f32.mrf.mxu0
      %v626 = vadd.f32 0.0, %v625
      %627 = vdwg.mxu0
      %v630 = vunpack.c.l.b16 %v598
      %v631 = vunpack.c.l.b16 %v599
      %v632 = vpack.c.b16 %v631, %v630
      %633 = vrot.lane.b32.xlu0 %v632, 96
      %v634 = vpop.permute.xlu0 %633
      %v636 = vsel %vm607, %v632, 0
      %v639 = vsel %vm607, %v634, 0
      %641 = vmatpush.bf16.xpose.msra.mxu0 0
      %642 = vmatpush.bf16.xpose.msra.mxu0 0
      %643 = vmatpush.bf16.xpose.msra.mxu0 0
      %644 = vmatpush.bf16.xpose.msra.mxu0 0
      %645 = vmatpush.bf16.xpose.msra.mxu0 0
      %646 = vmatpush.bf16.xpose.msra.mxu0 0
      %647 = vmatpush.bf16.xpose.msra.mxu0 0
      %648 = vmatpush.bf16.xpose.msra.mxu0 %v639
      %649 = vmatmul.bf16.gmra.mxu0 %v636
      %v650 = vpop.f32.mrf.mxu0
      %v651 = vadd.f32 0.0, %v650
      %v652 = vpop.f32.mrf.mxu0
      %v653 = vadd.f32 0.0, %v652
      %654 = vdwg.mxu0
      %v655 = vmul.f32 %v624, 0.35355338
      %v656 = vmul.f32 %v626, 0.35355338
      %v657 = vmul.f32 %v651, 0.35355338
      %v658 = vmul.f32 %v653, 0.35355338
      %vm659 = vcmask 130048
      %v660 = vsel %vm659, %v655, -inf
      %661 = vmax.xlane.f32.xlu0 %v660
      %v662 = vpop.xlane.xlu0 %661
      %v663 = vsel %vm659, %v656, -inf
      %664 = vmax.xlane.f32.xlu0 %v663
      %v665 = vpop.xlane.xlu0 %664
      %v666 = vsel %vm659, %v657, -inf
      %667 = vmax.xlane.f32.xlu0 %v666
      %v668 = vpop.xlane.xlu0 %667
      %v669 = vsel %vm659, %v658, -inf
      %670 = vmax.xlane.f32.xlu0 %v669
      %v671 = vpop.xlane.xlu0 %670
      %v672 = vsub.f32 %v655, %v662
      %v673 = vsub.f32 %v656, %v665
      %v674 = vsub.f32 %v657, %v668
      %v675 = vsub.f32 %v658, %v671
      %v676 = vmul.f32 %v672, 1.442695
      %v677 = vpow.pop %v676
      %v678 = vmul.f32 %v673, 1.442695
      %v679 = vpow.pop %v678
      %v680 = vmul.f32 %v674, 1.442695
      %v681 = vpow.pop %v680
      %v682 = vmul.f32 %v675, 1.442695
      %v683 = vpow.pop %v682
      %v684 = vsel %vm659, %v677, 0.0
      %685 = vadd.xlane.f32.xlu0 %v684
      %v686 = vpop.xlane.xlu0 %685
      %v687 = vsel %vm659, %v679, 0.0
      %688 = vadd.xlane.f32.xlu0 %v687
      %v689 = vpop.xlane.xlu0 %688
      %v690 = vsel %vm659, %v681, 0.0
      %691 = vadd.xlane.f32.xlu0 %v690
      %v692 = vpop.xlane.xlu0 %691
      %v693 = vsel %vm659, %v683, 0.0
      %694 = vadd.xlane.f32.xlu0 %v693
      %v695 = vpop.xlane.xlu0 %694
      %v696 = vrcp.pop %v686
      %v697 = vrcp.pop %v689
      %v698 = vrcp.pop %v692
      %v699 = vrcp.pop %v695
      %v700 = vmul.f32 %v677, %v696
      %v701 = vmul.f32 %v679, %v697
      %v702 = vmul.f32 %v681, %v698
      %v703 = vmul.f32 %v683, %v699
      %v704 = vpack.c.bf16 %v700, %v700
      %v705 = vpack.c.bf16 %v701, %v701
      %v706 = vpack.c.bf16 %v702, %v702
      %v707 = vpack.c.bf16 %v703, %v703
      %v710 = vunpack.c.l.b16 %v704
      %v711 = vunpack.c.l.b16 %v705
      %v712 = vpack.c.b16 %v711, %v710
      %713 = vrot.lane.b32.xlu0 %v604, 64
      %v714 = vpop.permute.xlu0 %713
      %v717 = vsel %vm659, %v712, 0
      %719 = vmatpush.bf16.msra.mxu0 0
      %720 = vmatpush.bf16.msra.mxu0 0
      %721 = vmatpush.bf16.msra.mxu0 0
      %722 = vmatpush.bf16.msra.mxu0 0
      %723 = vmatpush.bf16.msra.mxu0 0
      %724 = vmatpush.bf16.msra.mxu0 0
      %725 = vmatpush.bf16.msra.mxu0 0
      %726 = vmatpush.bf16.msra.mxu0 %v714
      %727 = vmatmul.bf16.gmra.mxu0 %v717
      %v728 = vpop.f32.mrf.mxu0
      %v729 = vadd.f32 0.0, %v728
      %v730 = vpop.f32.mrf.mxu0
      %v731 = vadd.f32 0.0, %v730
      %732 = vdwg.mxu0
      %v735 = vunpack.c.l.b16 %v706
      %v736 = vunpack.c.l.b16 %v707
      %v737 = vpack.c.b16 %v736, %v735
      %738 = vrot.lane.b32.xlu0 %v632, 64
      %v739 = vpop.permute.xlu0 %738
      %v742 = vsel %vm659, %v737, 0
      %744 = vmatpush.bf16.msra.mxu0 0
      %745 = vmatpush.bf16.msra.mxu0 0
      %746 = vmatpush.bf16.msra.mxu0 0
      %747 = vmatpush.bf16.msra.mxu0 0
      %748 = vmatpush.bf16.msra.mxu0 0
      %749 = vmatpush.bf16.msra.mxu0 0
      %750 = vmatpush.bf16.msra.mxu0 0
      %751 = vmatpush.bf16.msra.mxu0 %v739
      %752 = vmatmul.bf16.gmra.mxu0 %v742
      %v753 = vpop.f32.mrf.mxu0
      %v754 = vadd.f32 0.0, %v753
      %v755 = vpop.f32.mrf.mxu0
      %v756 = vadd.f32 0.0, %v755
      %757 = vdwg.mxu0
      %v758 = vpack.c.bf16 %v731, %v729
      %v759 = vpack.c.bf16 %v756, %v754
      %760 = vrot.lane.b32.xlu0 %v604, 120
      %v761 = vpop.permute.xlu0 %760
      %762 = vrot.lane.b32.xlu0 %v604, 88
      %v763 = vpop.permute.xlu0 %762
      %v765 = vsel %vm607, %v761, 0
      %v768 = vsel %vm607, %v763, 0
      %770 = vmatpush.bf16.xpose.msra.mxu0 0
      %771 = vmatpush.bf16.xpose.msra.mxu0 0
      %772 = vmatpush.bf16.xpose.msra.mxu0 0
      %773 = vmatpush.bf16.xpose.msra.mxu0 0
      %774 = vmatpush.bf16.xpose.msra.mxu0 0
      %775 = vmatpush.bf16.xpose.msra.mxu0 0
      %776 = vmatpush.bf16.xpose.msra.mxu0 0
      %777 = vmatpush.bf16.xpose.msra.mxu0 %v768
      %778 = vmatmul.bf16.gmra.mxu0 %v765
      %v779 = vpop.f32.mrf.mxu0
      %v780 = vadd.f32 0.0, %v779
      %v781 = vpop.f32.mrf.mxu0
      %v782 = vadd.f32 0.0, %v781
      %783 = vdwg.mxu0
      %784 = vrot.lane.b32.xlu0 %v632, 120
      %v785 = vpop.permute.xlu0 %784
      %786 = vrot.lane.b32.xlu0 %v632, 88
      %v787 = vpop.permute.xlu0 %786
      %v789 = vsel %vm607, %v785, 0
      %v792 = vsel %vm607, %v787, 0
      %794 = vmatpush.bf16.xpose.msra.mxu0 0
      %795 = vmatpush.bf16.xpose.msra.mxu0 0
      %796 = vmatpush.bf16.xpose.msra.mxu0 0
      %797 = vmatpush.bf16.xpose.msra.mxu0 0
      %798 = vmatpush.bf16.xpose.msra.mxu0 0
      %799 = vmatpush.bf16.xpose.msra.mxu0 0
      %800 = vmatpush.bf16.xpose.msra.mxu0 0
      %801 = vmatpush.bf16.xpose.msra.mxu0 %v792
      %802 = vmatmul.bf16.gmra.mxu0 %v789
      %v803 = vpop.f32.mrf.mxu0
      %v804 = vadd.f32 0.0, %v803
      %v805 = vpop.f32.mrf.mxu0
      %v806 = vadd.f32 0.0, %v805
      %807 = vdwg.mxu0
      %v808 = vmul.f32 %v780, 0.35355338
      %v809 = vmul.f32 %v782, 0.35355338
      %v810 = vmul.f32 %v804, 0.35355338
      %v811 = vmul.f32 %v806, 0.35355338
      %v812 = vsel %vm659, %v808, -inf
      %813 = vmax.xlane.f32.xlu0 %v812
      %v814 = vpop.xlane.xlu0 %813
      %v815 = vsel %vm659, %v809, -inf
      %816 = vmax.xlane.f32.xlu0 %v815
      %v817 = vpop.xlane.xlu0 %816
      %v818 = vsel %vm659, %v810, -inf
      %819 = vmax.xlane.f32.xlu0 %v818
      %v820 = vpop.xlane.xlu0 %819
      %v821 = vsel %vm659, %v811, -inf
      %822 = vmax.xlane.f32.xlu0 %v821
      %v823 = vpop.xlane.xlu0 %822
      %v824 = vsub.f32 %v808, %v814
      %v825 = vsub.f32 %v809, %v817
      %v826 = vsub.f32 %v810, %v820
      %v827 = vsub.f32 %v811, %v823
      %v828 = vmul.f32 %v824, 1.442695
      %v829 = vpow.pop %v828
      %v830 = vmul.f32 %v825, 1.442695
      %v831 = vpow.pop %v830
      %v832 = vmul.f32 %v826, 1.442695
      %v833 = vpow.pop %v832
      %v834 = vmul.f32 %v827, 1.442695
      %v835 = vpow.pop %v834
      %v836 = vsel %vm659, %v829, 0.0
      %837 = vadd.xlane.f32.xlu0 %v836
      %v838 = vpop.xlane.xlu0 %837
      %v839 = vsel %vm659, %v831, 0.0
      %840 = vadd.xlane.f32.xlu0 %v839
      %v841 = vpop.xlane.xlu0 %840
      %v842 = vsel %vm659, %v833, 0.0
      %843 = vadd.xlane.f32.xlu0 %v842
      %v844 = vpop.xlane.xlu0 %843
      %v845 = vsel %vm659, %v835, 0.0
      %846 = vadd.xlane.f32.xlu0 %v845
      %v847 = vpop.xlane.xlu0 %846
      %v848 = vrcp.pop %v838
      %v849 = vrcp.pop %v841
      %v850 = vrcp.pop %v844
      %v851 = vrcp.pop %v847
      %v852 = vmul.f32 %v829, %v848
      %v853 = vmul.f32 %v831, %v849
      %v854 = vmul.f32 %v833, %v850
      %v855 = vmul.f32 %v835, %v851
      %v856 = vpack.c.bf16 %v852, %v852
      %v857 = vpack.c.bf16 %v853, %v853
      %v858 = vpack.c.bf16 %v854, %v854
      %v859 = vpack.c.bf16 %v855, %v855
      %v862 = vunpack.c.l.b16 %v856
      %v863 = vunpack.c.l.b16 %v857
      %v864 = vpack.c.b16 %v863, %v862
      %865 = vrot.lane.b32.xlu0 %v604, 56
      %v866 = vpop.permute.xlu0 %865
      %v869 = vsel %vm659, %v864, 0
      %871 = vmatpush.bf16.msra.mxu0 0
      %872 = vmatpush.bf16.msra.mxu0 0
      %873 = vmatpush.bf16.msra.mxu0 0
      %874 = vmatpush.bf16.msra.mxu0 0
      %875 = vmatpush.bf16.msra.mxu0 0
      %876 = vmatpush.bf16.msra.mxu0 0
      %877 = vmatpush.bf16.msra.mxu0 0
      %878 = vmatpush.bf16.msra.mxu0 %v866
      %879 = vmatmul.bf16.gmra.mxu0 %v869
      %v880 = vpop.f32.mrf.mxu0
      %v881 = vadd.f32 0.0, %v880
      %v882 = vpop.f32.mrf.mxu0
      %v883 = vadd.f32 0.0, %v882
      %884 = vdwg.mxu0
      %v887 = vunpack.c.l.b16 %v858
      %v888 = vunpack.c.l.b16 %v859
      %v889 = vpack.c.b16 %v888, %v887
      %890 = vrot.lane.b32.xlu0 %v632, 56
      %v891 = vpop.permute.xlu0 %890
      %v894 = vsel %vm659, %v889, 0
      %896 = vmatpush.bf16.msra.mxu0 0
      %897 = vmatpush.bf16.msra.mxu0 0
      %898 = vmatpush.bf16.msra.mxu0 0
      %899 = vmatpush.bf16.msra.mxu0 0
      %900 = vmatpush.bf16.msra.mxu0 0
      %901 = vmatpush.bf16.msra.mxu0 0
      %902 = vmatpush.bf16.msra.mxu0 0
      %903 = vmatpush.bf16.msra.mxu0 %v891
      %904 = vmatmul.bf16.gmra.mxu0 %v894
      %v905 = vpop.f32.mrf.mxu0
      %v906 = vadd.f32 0.0, %v905
      %v907 = vpop.f32.mrf.mxu0
      %v908 = vadd.f32 0.0, %v907
      %909 = vdwg.mxu0
      %v910 = vpack.c.bf16 %v883, %v881
      %v911 = vpack.c.bf16 %v908, %v906
      %v913 = vsel %vm607, %v910, 0
      %v916 = vsel %vm607, %v911, 0
      %vm918 = vcmask 1043456
      %v920 = vsel %vm918, %v593, 0
      %922 = vmatpush.bf16.msra.mxu0 0
      %923 = vmatpush.bf16.msra.mxu0 0
      %924 = vmatpush.bf16.msra.mxu0 0
      %925 = vmatpush.bf16.msra.mxu0 0
      %926 = vmatpush.bf16.msra.mxu0 0
      %927 = vmatpush.bf16.msra.mxu0 0
      %928 = vmatpush.bf16.msra.mxu0 0
      %929 = vmatpush.bf16.msra.mxu0 %v920
      %930 = vmatmul.bf16.gmra.mxu0 %v913
      %v931 = vpop.f32.mrf.mxu0
      %v932 = vadd.f32 0.0, %v931
      %v933 = vpop.f32.mrf.mxu0
      %v934 = vadd.f32 0.0, %v933
      %935 = vmatmul.bf16.gmra.mxu0 %v916
      %v936 = vpop.f32.mrf.mxu0
      %v937 = vadd.f32 0.0, %v936
      %v938 = vpop.f32.mrf.mxu0
      %v939 = vadd.f32 0.0, %v938
      %940 = vdwg.mxu0
      %v942 = vsel %vm607, %v758, 0
      %v945 = vsel %vm607, %v759, 0
      %v948 = vsel %vm918, %v592, 0
      %950 = vmatpush.bf16.msra.mxu0 0
      %951 = vmatpush.bf16.msra.mxu0 0
      %952 = vmatpush.bf16.msra.mxu0 0
      %953 = vmatpush.bf16.msra.mxu0 0
      %954 = vmatpush.bf16.msra.mxu0 0
      %955 = vmatpush.bf16.msra.mxu0 0
      %956 = vmatpush.bf16.msra.mxu0 0
      %957 = vmatpush.bf16.msra.mxu0 %v948
      %958 = vmatmul.bf16.gmra.mxu0 %v942
      %v959 = vpop.f32.mrf.mxu0
      %v960 = vadd.f32 %v932, %v959
      %v961 = vpop.f32.mrf.mxu0
      %v962 = vadd.f32 %v934, %v961
      %963 = vmatmul.bf16.gmra.mxu0 %v945
      %v964 = vpop.f32.mrf.mxu0
      %v965 = vadd.f32 %v937, %v964
      %v966 = vpop.f32.mrf.mxu0
      %v967 = vadd.f32 %v939, %v966
      %968 = vdwg.mxu0
      %969 = vrot.lane.b32.xlu0 %v604, 112
      %v970 = vpop.permute.xlu0 %969
      %971 = vrot.lane.b32.xlu0 %v604, 80
      %v972 = vpop.permute.xlu0 %971
      %v974 = vsel %vm607, %v970, 0
      %v977 = vsel %vm607, %v972, 0
      %979 = vmatpush.bf16.xpose.msra.mxu0 0
      %980 = vmatpush.bf16.xpose.msra.mxu0 0
      %981 = vmatpush.bf16.xpose.msra.mxu0 0
      %982 = vmatpush.bf16.xpose.msra.mxu0 0
      %983 = vmatpush.bf16.xpose.msra.mxu0 0
      %984 = vmatpush.bf16.xpose.msra.mxu0 0
      %985 = vmatpush.bf16.xpose.msra.mxu0 0
      %986 = vmatpush.bf16.xpose.msra.mxu0 %v977
      %987 = vmatmul.bf16.gmra.mxu0 %v974
      %v988 = vpop.f32.mrf.mxu0
      %v989 = vadd.f32 0.0, %v988
      %v990 = vpop.f32.mrf.mxu0
      %v991 = vadd.f32 0.0, %v990
      %992 = vdwg.mxu0
      %993 = vrot.lane.b32.xlu0 %v632, 112
      %v994 = vpop.permute.xlu0 %993
      %995 = vrot.lane.b32.xlu0 %v632, 80
      %v996 = vpop.permute.xlu0 %995
      %v998 = vsel %vm607, %v994, 0
      %v1001 = vsel %vm607, %v996, 0
      %1003 = vmatpush.bf16.xpose.msra.mxu0 0
      %1004 = vmatpush.bf16.xpose.msra.mxu0 0
      %1005 = vmatpush.bf16.xpose.msra.mxu0 0
      %1006 = vmatpush.bf16.xpose.msra.mxu0 0
      %1007 = vmatpush.bf16.xpose.msra.mxu0 0
      %1008 = vmatpush.bf16.xpose.msra.mxu0 0
      %1009 = vmatpush.bf16.xpose.msra.mxu0 0
      %1010 = vmatpush.bf16.xpose.msra.mxu0 %v1001
      %1011 = vmatmul.bf16.gmra.mxu0 %v998
      %v1012 = vpop.f32.mrf.mxu0
      %v1013 = vadd.f32 0.0, %v1012
      %v1014 = vpop.f32.mrf.mxu0
      %v1015 = vadd.f32 0.0, %v1014
      %1016 = vdwg.mxu0
      %v1017 = vmul.f32 %v989, 0.35355338
      %v1018 = vmul.f32 %v991, 0.35355338
      %v1019 = vmul.f32 %v1013, 0.35355338
      %v1020 = vmul.f32 %v1015, 0.35355338
      %v1021 = vsel %vm659, %v1017, -inf
      %1022 = vmax.xlane.f32.xlu0 %v1021
      %v1023 = vpop.xlane.xlu0 %1022
      %v1024 = vsel %vm659, %v1018, -inf
      %1025 = vmax.xlane.f32.xlu0 %v1024
      %v1026 = vpop.xlane.xlu0 %1025
      %v1027 = vsel %vm659, %v1019, -inf
      %1028 = vmax.xlane.f32.xlu0 %v1027
      %v1029 = vpop.xlane.xlu0 %1028
      %v1030 = vsel %vm659, %v1020, -inf
      %1031 = vmax.xlane.f32.xlu0 %v1030
      %v1032 = vpop.xlane.xlu0 %1031
      %v1033 = vsub.f32 %v1017, %v1023
      %v1034 = vsub.f32 %v1018, %v1026
      %v1035 = vsub.f32 %v1019, %v1029
      %v1036 = vsub.f32 %v1020, %v1032
      %v1037 = vmul.f32 %v1033, 1.442695
      %v1038 = vpow.pop %v1037
      %v1039 = vmul.f32 %v1034, 1.442695
      %v1040 = vpow.pop %v1039
      %v1041 = vmul.f32 %v1035, 1.442695
      %v1042 = vpow.pop %v1041
      %v1043 = vmul.f32 %v1036, 1.442695
      %v1044 = vpow.pop %v1043
      %v1045 = vsel %vm659, %v1038, 0.0
      %1046 = vadd.xlane.f32.xlu0 %v1045
      %v1047 = vpop.xlane.xlu0 %1046
      %v1048 = vsel %vm659, %v1040, 0.0
      %1049 = vadd.xlane.f32.xlu0 %v1048
      %v1050 = vpop.xlane.xlu0 %1049
      %v1051 = vsel %vm659, %v1042, 0.0
      %1052 = vadd.xlane.f32.xlu0 %v1051
      %v1053 = vpop.xlane.xlu0 %1052
      %v1054 = vsel %vm659, %v1044, 0.0
      %1055 = vadd.xlane.f32.xlu0 %v1054
      %v1056 = vpop.xlane.xlu0 %1055
      %v1057 = vrcp.pop %v1047
      %v1058 = vrcp.pop %v1050
      %v1059 = vrcp.pop %v1053
      %v1060 = vrcp.pop %v1056
      %v1061 = vmul.f32 %v1038, %v1057
      %v1062 = vmul.f32 %v1040, %v1058
      %v1063 = vmul.f32 %v1042, %v1059
      %v1064 = vmul.f32 %v1044, %v1060
      %v1065 = vpack.c.bf16 %v1061, %v1061
      %v1066 = vpack.c.bf16 %v1062, %v1062
      %v1067 = vpack.c.bf16 %v1063, %v1063
      %v1068 = vpack.c.bf16 %v1064, %v1064
      %v1071 = vunpack.c.l.b16 %v1065
      %v1072 = vunpack.c.l.b16 %v1066
      %v1073 = vpack.c.b16 %v1072, %v1071
      %1074 = vrot.lane.b32.xlu0 %v604, 48
      %v1075 = vpop.permute.xlu0 %1074
      %v1078 = vsel %vm659, %v1073, 0
      %1080 = vmatpush.bf16.msra.mxu0 0
      %1081 = vmatpush.bf16.msra.mxu0 0
      %1082 = vmatpush.bf16.msra.mxu0 0
      %1083 = vmatpush.bf16.msra.mxu0 0
      %1084 = vmatpush.bf16.msra.mxu0 0
      %1085 = vmatpush.bf16.msra.mxu0 0
      %1086 = vmatpush.bf16.msra.mxu0 0
      %1087 = vmatpush.bf16.msra.mxu0 %v1075
      %1088 = vmatmul.bf16.gmra.mxu0 %v1078
      %v1089 = vpop.f32.mrf.mxu0
      %v1090 = vadd.f32 0.0, %v1089
      %v1091 = vpop.f32.mrf.mxu0
      %v1092 = vadd.f32 0.0, %v1091
      %1093 = vdwg.mxu0
      %v1096 = vunpack.c.l.b16 %v1067
      %v1097 = vunpack.c.l.b16 %v1068
      %v1098 = vpack.c.b16 %v1097, %v1096
      %1099 = vrot.lane.b32.xlu0 %v632, 48
      %v1100 = vpop.permute.xlu0 %1099
      %v1103 = vsel %vm659, %v1098, 0
      %1105 = vmatpush.bf16.msra.mxu0 0
      %1106 = vmatpush.bf16.msra.mxu0 0
      %1107 = vmatpush.bf16.msra.mxu0 0
      %1108 = vmatpush.bf16.msra.mxu0 0
      %1109 = vmatpush.bf16.msra.mxu0 0
      %1110 = vmatpush.bf16.msra.mxu0 0
      %1111 = vmatpush.bf16.msra.mxu0 0
      %1112 = vmatpush.bf16.msra.mxu0 %v1100
      %1113 = vmatmul.bf16.gmra.mxu0 %v1103
      %v1114 = vpop.f32.mrf.mxu0
      %v1115 = vadd.f32 0.0, %v1114
      %v1116 = vpop.f32.mrf.mxu0
      %v1117 = vadd.f32 0.0, %v1116
      %1118 = vdwg.mxu0
      %v1119 = vpack.c.bf16 %v1092, %v1090
      %v1120 = vpack.c.bf16 %v1117, %v1115
      %v1122 = vsel %vm607, %v1119, 0
      %v1125 = vsel %vm607, %v1120, 0
      %v1128 = vsel %vm918, %v594, 0
      %1130 = vmatpush.bf16.msra.mxu0 0
      %1131 = vmatpush.bf16.msra.mxu0 0
      %1132 = vmatpush.bf16.msra.mxu0 0
      %1133 = vmatpush.bf16.msra.mxu0 0
      %1134 = vmatpush.bf16.msra.mxu0 0
      %1135 = vmatpush.bf16.msra.mxu0 0
      %1136 = vmatpush.bf16.msra.mxu0 0
      %1137 = vmatpush.bf16.msra.mxu0 %v1128
      %1138 = vmatmul.bf16.gmra.mxu0 %v1122
      %v1139 = vpop.f32.mrf.mxu0
      %v1140 = vadd.f32 0.0, %v1139
      %v1141 = vpop.f32.mrf.mxu0
      %v1142 = vadd.f32 0.0, %v1141
      %1143 = vmatmul.bf16.gmra.mxu0 %v1125
      %v1144 = vpop.f32.mrf.mxu0
      %v1145 = vadd.f32 0.0, %v1144
      %v1146 = vpop.f32.mrf.mxu0
      %v1147 = vadd.f32 0.0, %v1146
      %1148 = vdwg.mxu0
      %v1149 = vadd.f32 %v960, %v1140
      %v1150 = vadd.f32 %v962, %v1142
      %v1151 = vadd.f32 %v965, %v1145
      %v1152 = vadd.f32 %v967, %v1147
      %1153 = vrot.lane.b32.xlu0 %v604, 104
      %v1154 = vpop.permute.xlu0 %1153
      %1155 = vrot.lane.b32.xlu0 %v604, 72
      %v1156 = vpop.permute.xlu0 %1155
      %v1158 = vsel %vm607, %v1154, 0
      %v1161 = vsel %vm607, %v1156, 0
      %1163 = vmatpush.bf16.xpose.msra.mxu0 0
      %1164 = vmatpush.bf16.xpose.msra.mxu0 0
      %1165 = vmatpush.bf16.xpose.msra.mxu0 0
      %1166 = vmatpush.bf16.xpose.msra.mxu0 0
      %1167 = vmatpush.bf16.xpose.msra.mxu0 0
      %1168 = vmatpush.bf16.xpose.msra.mxu0 0
      %1169 = vmatpush.bf16.xpose.msra.mxu0 0
      %1170 = vmatpush.bf16.xpose.msra.mxu0 %v1161
      %1171 = vmatmul.bf16.gmra.mxu0 %v1158
      %v1172 = vpop.f32.mrf.mxu0
      %v1173 = vadd.f32 0.0, %v1172
      %v1174 = vpop.f32.mrf.mxu0
      %v1175 = vadd.f32 0.0, %v1174
      %1176 = vdwg.mxu0
      %1177 = vrot.lane.b32.xlu0 %v632, 104
      %v1178 = vpop.permute.xlu0 %1177
      %1179 = vrot.lane.b32.xlu0 %v632, 72
      %v1180 = vpop.permute.xlu0 %1179
      %v1182 = vsel %vm607, %v1178, 0
      %v1185 = vsel %vm607, %v1180, 0
      %1187 = vmatpush.bf16.xpose.msra.mxu0 0
      %1188 = vmatpush.bf16.xpose.msra.mxu0 0
      %1189 = vmatpush.bf16.xpose.msra.mxu0 0
      %1190 = vmatpush.bf16.xpose.msra.mxu0 0
      %1191 = vmatpush.bf16.xpose.msra.mxu0 0
      %1192 = vmatpush.bf16.xpose.msra.mxu0 0
      %1193 = vmatpush.bf16.xpose.msra.mxu0 0
      %1194 = vmatpush.bf16.xpose.msra.mxu0 %v1185
      %1195 = vmatmul.bf16.gmra.mxu0 %v1182
      %v1196 = vpop.f32.mrf.mxu0
      %v1197 = vadd.f32 0.0, %v1196
      %v1198 = vpop.f32.mrf.mxu0
      %v1199 = vadd.f32 0.0, %v1198
      %1200 = vdwg.mxu0
      %v1201 = vmul.f32 %v1173, 0.35355338
      %v1202 = vmul.f32 %v1175, 0.35355338
      %v1203 = vmul.f32 %v1197, 0.35355338
      %v1204 = vmul.f32 %v1199, 0.35355338
      %v1205 = vsel %vm659, %v1201, -inf
      %1206 = vmax.xlane.f32.xlu0 %v1205
      %v1207 = vpop.xlane.xlu0 %1206
      %v1208 = vsel %vm659, %v1202, -inf
      %1209 = vmax.xlane.f32.xlu0 %v1208
      %v1210 = vpop.xlane.xlu0 %1209
      %v1211 = vsel %vm659, %v1203, -inf
      %1212 = vmax.xlane.f32.xlu0 %v1211
      %v1213 = vpop.xlane.xlu0 %1212
      %v1214 = vsel %vm659, %v1204, -inf
      %1215 = vmax.xlane.f32.xlu0 %v1214
      %v1216 = vpop.xlane.xlu0 %1215
      %v1217 = vsub.f32 %v1201, %v1207
      %v1218 = vsub.f32 %v1202, %v1210
      %v1219 = vsub.f32 %v1203, %v1213
      %v1220 = vsub.f32 %v1204, %v1216
      %v1221 = vmul.f32 %v1217, 1.442695
      %v1222 = vpow.pop %v1221
      %v1223 = vmul.f32 %v1218, 1.442695
      %v1224 = vpow.pop %v1223
      %v1225 = vmul.f32 %v1219, 1.442695
      %v1226 = vpow.pop %v1225
      %v1227 = vmul.f32 %v1220, 1.442695
      %v1228 = vpow.pop %v1227
      %v1229 = vsel %vm659, %v1222, 0.0
      %1230 = vadd.xlane.f32.xlu0 %v1229
      %v1231 = vpop.xlane.xlu0 %1230
      %v1232 = vsel %vm659, %v1224, 0.0
      %1233 = vadd.xlane.f32.xlu0 %v1232
      %v1234 = vpop.xlane.xlu0 %1233
      %v1235 = vsel %vm659, %v1226, 0.0
      %1236 = vadd.xlane.f32.xlu0 %v1235
      %v1237 = vpop.xlane.xlu0 %1236
      %v1238 = vsel %vm659, %v1228, 0.0
      %1239 = vadd.xlane.f32.xlu0 %v1238
      %v1240 = vpop.xlane.xlu0 %1239
      %v1241 = vrcp.pop %v1231
      %v1242 = vrcp.pop %v1234
      %v1243 = vrcp.pop %v1237
      %v1244 = vrcp.pop %v1240
      %v1245 = vmul.f32 %v1222, %v1241
      %v1246 = vmul.f32 %v1224, %v1242
      %v1247 = vmul.f32 %v1226, %v1243
      %v1248 = vmul.f32 %v1228, %v1244
      %v1249 = vpack.c.bf16 %v1245, %v1245
      %v1250 = vpack.c.bf16 %v1246, %v1246
      %v1251 = vpack.c.bf16 %v1247, %v1247
      %v1252 = vpack.c.bf16 %v1248, %v1248
      %v1255 = vunpack.c.l.b16 %v1249
      %v1256 = vunpack.c.l.b16 %v1250
      %v1257 = vpack.c.b16 %v1256, %v1255
      %1258 = vrot.lane.b32.xlu0 %v604, 40
      %v1259 = vpop.permute.xlu0 %1258
      %v1262 = vsel %vm659, %v1257, 0
      %1264 = vmatpush.bf16.msra.mxu0 0
      %1265 = vmatpush.bf16.msra.mxu0 0
      %1266 = vmatpush.bf16.msra.mxu0 0
      %1267 = vmatpush.bf16.msra.mxu0 0
      %1268 = vmatpush.bf16.msra.mxu0 0
      %1269 = vmatpush.bf16.msra.mxu0 0
      %1270 = vmatpush.bf16.msra.mxu0 0
      %1271 = vmatpush.bf16.msra.mxu0 %v1259
      %1272 = vmatmul.bf16.gmra.mxu0 %v1262
      %v1273 = vpop.f32.mrf.mxu0
      %v1274 = vadd.f32 0.0, %v1273
      %v1275 = vpop.f32.mrf.mxu0
      %v1276 = vadd.f32 0.0, %v1275
      %1277 = vdwg.mxu0
      %v1280 = vunpack.c.l.b16 %v1251
      %v1281 = vunpack.c.l.b16 %v1252
      %v1282 = vpack.c.b16 %v1281, %v1280
      %1283 = vrot.lane.b32.xlu0 %v632, 40
      %v1284 = vpop.permute.xlu0 %1283
      %v1287 = vsel %vm659, %v1282, 0
      %1289 = vmatpush.bf16.msra.mxu0 0
      %1290 = vmatpush.bf16.msra.mxu0 0
      %1291 = vmatpush.bf16.msra.mxu0 0
      %1292 = vmatpush.bf16.msra.mxu0 0
      %1293 = vmatpush.bf16.msra.mxu0 0
      %1294 = vmatpush.bf16.msra.mxu0 0
      %1295 = vmatpush.bf16.msra.mxu0 0
      %1296 = vmatpush.bf16.msra.mxu0 %v1284
      %1297 = vmatmul.bf16.gmra.mxu0 %v1287
      %v1298 = vpop.f32.mrf.mxu0
      %v1299 = vadd.f32 0.0, %v1298
      %v1300 = vpop.f32.mrf.mxu0
      %v1301 = vadd.f32 0.0, %v1300
      %1302 = vdwg.mxu0
      %v1303 = vpack.c.bf16 %v1276, %v1274
      %v1304 = vpack.c.bf16 %v1301, %v1299
      %v1306 = vsel %vm607, %v1303, 0
      %v1309 = vsel %vm607, %v1304, 0
      %v1312 = vsel %vm918, %v595, 0
      %1314 = vmatpush.bf16.msra.mxu0 0
      %1315 = vmatpush.bf16.msra.mxu0 0
      %1316 = vmatpush.bf16.msra.mxu0 0
      %1317 = vmatpush.bf16.msra.mxu0 0
      %1318 = vmatpush.bf16.msra.mxu0 0
      %1319 = vmatpush.bf16.msra.mxu0 0
      %1320 = vmatpush.bf16.msra.mxu0 0
      %1321 = vmatpush.bf16.msra.mxu0 %v1312
      %1322 = vmatmul.bf16.gmra.mxu0 %v1306
      %v1323 = vpop.f32.mrf.mxu0
      %v1324 = vadd.f32 0.0, %v1323
      %v1325 = vpop.f32.mrf.mxu0
      %v1326 = vadd.f32 0.0, %v1325
      %1327 = vmatmul.bf16.gmra.mxu0 %v1309
      %v1328 = vpop.f32.mrf.mxu0
      %v1329 = vadd.f32 0.0, %v1328
      %v1330 = vpop.f32.mrf.mxu0
      %v1331 = vadd.f32 0.0, %v1330
      %1332 = vdwg.mxu0
      %v1333 = vadd.f32 %v1149, %v1324
      %v1334 = vadd.f32 %v1150, %v1326
      %v1335 = vadd.f32 %v1151, %v1329
      %v1336 = vadd.f32 %v1152, %v1331
      %v1337 = vadd.f32 %v461, %v1333
      %v1338 = vadd.f32 %v462, %v1334
      %v1339 = vadd.f32 %v463, %v1335
      %v1340 = vadd.f32 %v464, %v1336
      %v1341 = vmul.f32 %v1337, %v1337
      %v1342 = vmul.f32 %v1338, %v1338
      %v1343 = vmul.f32 %v1339, %v1339
      %v1344 = vmul.f32 %v1340, %v1340
      %v1345 = vsel %vm469, %v1341, 0.0
      %1346 = vadd.xlane.f32.xlu0 %v1345
      %v1347 = vpop.xlane.xlu0 %1346
      %v1348 = vsel %vm469, %v1342, 0.0
      %1349 = vadd.xlane.f32.xlu0 %v1348
      %v1350 = vpop.xlane.xlu0 %1349
      %v1351 = vsel %vm469, %v1343, 0.0
      %1352 = vadd.xlane.f32.xlu0 %v1351
      %v1353 = vpop.xlane.xlu0 %1352
      %v1354 = vsel %vm469, %v1344, 0.0
      %1355 = vadd.xlane.f32.xlu0 %v1354
      %v1356 = vpop.xlane.xlu0 %1355
      %v1357 = vmul.f32 %v1347, %v488
      %v1358 = vmul.f32 %v1350, %v488
      %v1359 = vmul.f32 %v1353, %v488
      %v1360 = vmul.f32 %v1356, %v488
      %v1361 = vadd.f32 %v1357, 1e-06
      %v1362 = vadd.f32 %v1358, 1e-06
      %v1363 = vadd.f32 %v1359, 1e-06
      %v1364 = vadd.f32 %v1360, 1e-06
      %v1365 = vrsqrt.pop %v1361
      %v1366 = vmul.f32 %v1365, %v1361
      %v1367 = vmul.f32 %v1366, %v1365
      %v1368 = vmul.f32 0.5, %v1367
      %v1369 = vsub.f32 1.5, %v1368
      %v1370 = vmul.f32 %v1365, %v1369
      %vm1371 = vweird.f32 %v1361
      %vm1372 = vweird.f32 %v1365
      %vm1373 = vmor %vm1371, %vm1372
      %v1374 = vsel %vm1373, %v1365, %v1370
      %v1375 = vrsqrt.pop %v1362
      %v1376 = vmul.f32 %v1375, %v1362
      %v1377 = vmul.f32 %v1376, %v1375
      %v1378 = vmul.f32 0.5, %v1377
      %v1379 = vsub.f32 1.5, %v1378
      %v1380 = vmul.f32 %v1375, %v1379
      %vm1381 = vweird.f32 %v1362
      %vm1382 = vweird.f32 %v1375
      %vm1383 = vmor %vm1381, %vm1382
      %v1384 = vsel %vm1383, %v1375, %v1380
      %v1385 = vrsqrt.pop %v1363
      %v1386 = vmul.f32 %v1385, %v1363
      %v1387 = vmul.f32 %v1386, %v1385
      %v1388 = vmul.f32 0.5, %v1387
      %v1389 = vsub.f32 1.5, %v1388
      %v1390 = vmul.f32 %v1385, %v1389
      %vm1391 = vweird.f32 %v1363
      %vm1392 = vweird.f32 %v1385
      %vm1393 = vmor %vm1391, %vm1392
      %v1394 = vsel %vm1393, %v1385, %v1390
      %v1395 = vrsqrt.pop %v1364
      %v1396 = vmul.f32 %v1395, %v1364
      %v1397 = vmul.f32 %v1396, %v1395
      %v1398 = vmul.f32 0.5, %v1397
      %v1399 = vsub.f32 1.5, %v1398
      %v1400 = vmul.f32 %v1395, %v1399
      %vm1401 = vweird.f32 %v1364
      %vm1402 = vweird.f32 %v1395
      %vm1403 = vmor %vm1401, %vm1402
      %v1404 = vsel %vm1403, %v1395, %v1400
      %v1405 = vmul.f32 %v1337, %v1374
      %v1406 = vmul.f32 %v1338, %v1384
      %v1407 = vmul.f32 %v1339, %v1394
      %v1408 = vmul.f32 %v1340, %v1404
      %v1409 = vld [vmem:[%s5] sm:$0x1]
      %v1411 = vperm.slane %v1409, 0
      %v1413 = vmul.f32 %v1405, %v1411
      %v1414 = vmul.f32 %v1406, %v1411
      %v1415 = vmul.f32 %v1407, %v1411
      %v1416 = vmul.f32 %v1408, %v1411
      %v1417 = vpack.c.bf16 %v1414, %v1413
      %v1418 = vpack.c.bf16 %v1416, %v1415
      %v1419 = vld [vmem:[%s6] sm:$0xf]
      %v1420 = vld [vmem:[%s6 + $0x4] sm:$0xf]
      %v1421 = vld [vmem:[%s6 + $0x8] sm:$0xf]
      %v1422 = vld [vmem:[%s6 + $0xc] sm:$0xf]
      %v1427 = vunpack.c.l.b16 %v1419
      %v1428 = vunpack.c.l.b16 %v1420
      %v1429 = vunpack.c.l.b16 %v1421
      %v1430 = vunpack.c.l.b16 %v1422
      %v1431 = vpack.c.b16 %v1428, %v1427
      %v1432 = vpack.c.b16 %v1430, %v1429
      %v1436 = vsel %vm469, %v1417, 0
      %v1439 = vsel %vm469, %v1418, 0
      %1441 = vmatpush.bf16.msra.mxu0 0
      %1442 = vmatpush.bf16.msra.mxu0 0
      %1443 = vmatpush.bf16.msra.mxu0 0
      %1444 = vmatpush.bf16.msra.mxu0 0
      %1445 = vmatpush.bf16.msra.mxu0 0
      %1446 = vmatpush.bf16.msra.mxu0 0
      %1447 = vmatpush.bf16.msra.mxu0 %v1432
      %1448 = vmatpush.bf16.msra.mxu0 %v1431
      %1449 = vmatmul.bf16.gmra.mxu0 %v1436
      %v1450 = vpop.f32.mrf.mxu0
      %v1451 = vadd.f32 0.0, %v1450
      %v1452 = vpop.f32.mrf.mxu0
      %v1453 = vadd.f32 0.0, %v1452
      %1454 = vmatmul.bf16.gmra.mxu0 %v1439
      %v1455 = vpop.f32.mrf.mxu0
      %v1456 = vadd.f32 0.0, %v1455
      %v1457 = vpop.f32.mrf.mxu0
      %v1458 = vadd.f32 0.0, %v1457
      %1459 = vdwg.mxu0
      %v1460 = vld [vmem:[%s7] sm:$0xf]
      %v1461 = vld [vmem:[%s7 + $0x4] sm:$0xf]
      %v1462 = vld [vmem:[%s7 + $0x8] sm:$0xf]
      %v1463 = vld [vmem:[%s7 + $0xc] sm:$0xf]
      %v1468 = vunpack.c.l.b16 %v1460
      %v1469 = vunpack.c.l.b16 %v1461
      %v1470 = vunpack.c.l.b16 %v1462
      %v1471 = vunpack.c.l.b16 %v1463
      %v1472 = vpack.c.b16 %v1469, %v1468
      %v1473 = vpack.c.b16 %v1471, %v1470
      %1476 = vmatpush.bf16.msra.mxu0 0
      %1477 = vmatpush.bf16.msra.mxu0 0
      %1478 = vmatpush.bf16.msra.mxu0 0
      %1479 = vmatpush.bf16.msra.mxu0 0
      %1480 = vmatpush.bf16.msra.mxu0 0
      %1481 = vmatpush.bf16.msra.mxu0 0
      %1482 = vmatpush.bf16.msra.mxu0 %v1473
      %1483 = vmatpush.bf16.msra.mxu0 %v1472
      %1484 = vmatmul.bf16.gmra.mxu0 %v1436
      %v1485 = vpop.f32.mrf.mxu0
      %v1486 = vadd.f32 0.0, %v1485
      %v1487 = vpop.f32.mrf.mxu0
      %v1488 = vadd.f32 0.0, %v1487
      %1489 = vmatmul.bf16.gmra.mxu0 %v1439
      %v1490 = vpop.f32.mrf.mxu0
      %v1491 = vadd.f32 0.0, %v1490
      %v1492 = vpop.f32.mrf.mxu0
      %v1493 = vadd.f32 0.0, %v1492
      %1494 = vdwg.mxu0
      %v1495 = vxor.u32 %v1451, 2147483648
      %v1496 = vxor.u32 %v1453, 2147483648
      %v1497 = vxor.u32 %v1456, 2147483648
      %v1498 = vxor.u32 %v1458, 2147483648
      %v1499 = vmul.f32 %v1495, 1.442695
      %v1500 = vpow.pop %v1499
      %v1501 = vmul.f32 %v1496, 1.442695
      %v1502 = vpow.pop %v1501
      %v1503 = vmul.f32 %v1497, 1.442695
      %v1504 = vpow.pop %v1503
      %v1505 = vmul.f32 %v1498, 1.442695
      %v1506 = vpow.pop %v1505
      %v1507 = vadd.f32 %v1500, 1.0
      %v1508 = vadd.f32 %v1502, 1.0
      %v1509 = vadd.f32 %v1504, 1.0
      %v1510 = vadd.f32 %v1506, 1.0
      %v1511 = vrcp.pop %v1507
      %v1512 = vmul.f32 %v1507, %v1511
      %v1513 = vsub.f32 1.0, %v1512
      %v1514 = vmul.f32 %v1511, %v1513
      %v1515 = vadd.f32 %v1511, %v1514
      %vm1516 = vweird.f32 %v1507
      %vm1517 = vweird.f32 %v1511
      %vm1518 = vmor %vm1516, %vm1517
      %v1519 = vsel %vm1518, %v1511, %v1515
      %v1520 = vand.u32 2147483647, %v1507
      %vm1521 = vcmp.eq.f32.partialorder %v1520, 8.507059e+37
      %v1522 = vand.u32 %v1507, 2147483648
      %v1523 = vor.u32 1.1754944e-38, %v1522
      %v1524 = vsel %vm1521, %v1523, %v1519
      %v1525 = vmul.f32 1.0, %v1524
      %v1526 = vrcp.pop %v1508
      %v1527 = vmul.f32 %v1508, %v1526
      %v1528 = vsub.f32 1.0, %v1527
      %v1529 = vmul.f32 %v1526, %v1528
      %v1530 = vadd.f32 %v1526, %v1529
      %vm1531 = vweird.f32 %v1508
      %vm1532 = vweird.f32 %v1526
      %vm1533 = vmor %vm1531, %vm1532
      %v1534 = vsel %vm1533, %v1526, %v1530
      %v1535 = vand.u32 2147483647, %v1508
      %vm1536 = vcmp.eq.f32.partialorder %v1535, 8.507059e+37
      %v1537 = vand.u32 %v1508, 2147483648
      %v1538 = vor.u32 1.1754944e-38, %v1537
      %v1539 = vsel %vm1536, %v1538, %v1534
      %v1540 = vmul.f32 1.0, %v1539
      %v1541 = vrcp.pop %v1509
      %v1542 = vmul.f32 %v1509, %v1541
      %v1543 = vsub.f32 1.0, %v1542
      %v1544 = vmul.f32 %v1541, %v1543
      %v1545 = vadd.f32 %v1541, %v1544
      %vm1546 = vweird.f32 %v1509
      %vm1547 = vweird.f32 %v1541
      %vm1548 = vmor %vm1546, %vm1547
      %v1549 = vsel %vm1548, %v1541, %v1545
      %v1550 = vand.u32 2147483647, %v1509
      %vm1551 = vcmp.eq.f32.partialorder %v1550, 8.507059e+37
      %v1552 = vand.u32 %v1509, 2147483648
      %v1553 = vor.u32 1.1754944e-38, %v1552
      %v1554 = vsel %vm1551, %v1553, %v1549
      %v1555 = vmul.f32 1.0, %v1554
      %v1556 = vrcp.pop %v1510
      %v1557 = vmul.f32 %v1510, %v1556
      %v1558 = vsub.f32 1.0, %v1557
      %v1559 = vmul.f32 %v1556, %v1558
      %v1560 = vadd.f32 %v1556, %v1559
      %vm1561 = vweird.f32 %v1510
      %vm1562 = vweird.f32 %v1556
      %vm1563 = vmor %vm1561, %vm1562
      %v1564 = vsel %vm1563, %v1556, %v1560
      %v1565 = vand.u32 2147483647, %v1510
      %vm1566 = vcmp.eq.f32.partialorder %v1565, 8.507059e+37
      %v1567 = vand.u32 %v1510, 2147483648
      %v1568 = vor.u32 1.1754944e-38, %v1567
      %v1569 = vsel %vm1566, %v1568, %v1564
      %v1570 = vmul.f32 1.0, %v1569
      %v1571 = vmul.f32 %v1451, %v1525
      %v1572 = vmul.f32 %v1453, %v1540
      %v1573 = vmul.f32 %v1456, %v1555
      %v1574 = vmul.f32 %v1458, %v1570
      %v1575 = vmul.f32 %v1571, %v1486
      %v1576 = vmul.f32 %v1572, %v1488
      %v1577 = vmul.f32 %v1573, %v1491
      %v1578 = vmul.f32 %v1574, %v1493
      %v1579 = vpack.c.bf16 %v1576, %v1575
      %v1580 = vpack.c.bf16 %v1578, %v1577
      %v1581 = vld [vmem:[%s8] sm:$0xf]
      %v1582 = vld [vmem:[%s8 + $0x4] sm:$0xf]
      %v1583 = vld [vmem:[%s8 + $0x8] sm:$0xf]
      %v1584 = vld [vmem:[%s8 + $0xc] sm:$0xf]
      %v1585 = vld [vmem:[%s8 + $0x10] sm:$0xf]
      %v1586 = vld [vmem:[%s8 + $0x14] sm:$0xf]
      %v1587 = vld [vmem:[%s8 + $0x18] sm:$0xf]
      %v1588 = vld [vmem:[%s8 + $0x1c] sm:$0xf]
      %v1589 = vld [vmem:[%s8 + $0x20] sm:$0xf]
      %v1590 = vld [vmem:[%s8 + $0x24] sm:$0xf]
      %v1591 = vld [vmem:[%s8 + $0x28] sm:$0xf]
      %v1592 = vld [vmem:[%s8 + $0x2c] sm:$0xf]
      %v1593 = vld [vmem:[%s8 + $0x30] sm:$0xf]
      %v1594 = vld [vmem:[%s8 + $0x34] sm:$0xf]
      %v1595 = vld [vmem:[%s8 + $0x38] sm:$0xf]
      %v1596 = vld [vmem:[%s8 + $0x3c] sm:$0xf]
      %v1613 = vunpack.c.l.b16 %v1581
      %v1614 = vunpack.c.l.b16 %v1582
      %v1615 = vunpack.c.l.b16 %v1583
      %v1616 = vunpack.c.l.b16 %v1584
      %v1617 = vunpack.c.l.b16 %v1585
      %v1618 = vunpack.c.l.b16 %v1586
      %v1619 = vunpack.c.l.b16 %v1587
      %v1620 = vunpack.c.l.b16 %v1588
      %v1621 = vunpack.c.l.b16 %v1589
      %v1622 = vunpack.c.l.b16 %v1590
      %v1623 = vunpack.c.l.b16 %v1591
      %v1624 = vunpack.c.l.b16 %v1592
      %v1625 = vunpack.c.l.b16 %v1593
      %v1626 = vunpack.c.l.b16 %v1594
      %v1627 = vunpack.c.l.b16 %v1595
      %v1628 = vunpack.c.l.b16 %v1596
      %v1629 = vpack.c.b16 %v1614, %v1613
      %v1630 = vpack.c.b16 %v1616, %v1615
      %v1631 = vpack.c.b16 %v1618, %v1617
      %v1632 = vpack.c.b16 %v1620, %v1619
      %v1633 = vpack.c.b16 %v1622, %v1621
      %v1634 = vpack.c.b16 %v1624, %v1623
      %v1635 = vpack.c.b16 %v1626, %v1625
      %v1636 = vpack.c.b16 %v1628, %v1627
      %1645 = vmatpush.bf16.msra.mxu0 %v1636
      %1646 = vmatpush.bf16.msra.mxu0 %v1635
      %1647 = vmatpush.bf16.msra.mxu0 %v1634
      %1648 = vmatpush.bf16.msra.mxu0 %v1633
      %1649 = vmatpush.bf16.msra.mxu0 %v1632
      %1650 = vmatpush.bf16.msra.mxu0 %v1631
      %1651 = vmatpush.bf16.msra.mxu0 %v1630
      %1652 = vmatpush.bf16.msra.mxu0 %v1629
      %1653 = vmatmul.bf16.gmra.mxu0 %v1579
      %v1654 = vpop.f32.mrf.mxu0
      %v1655 = vadd.f32 0.0, %v1654
      %v1656 = vpop.f32.mrf.mxu0
      %v1657 = vadd.f32 0.0, %v1656
      %1658 = vmatmul.bf16.gmra.mxu0 %v1580
      %v1659 = vpop.f32.mrf.mxu0
      %v1660 = vadd.f32 0.0, %v1659
      %v1661 = vpop.f32.mrf.mxu0
      %v1662 = vadd.f32 0.0, %v1661
      %1663 = vdwg.mxu0
      %v1664 = vadd.f32 %v1337, %v1655
      %v1665 = vadd.f32 %v1338, %v1657
      %v1666 = vadd.f32 %v1339, %v1660
      %v1667 = vadd.f32 %v1340, %v1662
      %1668 = vst.msk [vmem:[%s438] sm:$0xff] %vm469, %v1664
      %1669 = vst.msk [vmem:[%s438 + $0x8] sm:$0xff] %vm469, %v1665
      %1670 = vst.msk [vmem:[%s438 + $0x10] sm:$0xff] %vm469, %v1666
      %1671 = vst.msk [vmem:[%s438 + $0x18] sm:$0xff] %vm469, %v1667
      %v1672 = vmul.f32 %v1664, %v1664
      %v1673 = vmul.f32 %v1665, %v1665
      %v1674 = vmul.f32 %v1666, %v1666
      %v1675 = vmul.f32 %v1667, %v1667
      %v1676 = vsel %vm469, %v1672, 0.0
      %1677 = vadd.xlane.f32.xlu0 %v1676
      %v1678 = vpop.xlane.xlu0 %1677
      %v1679 = vsel %vm469, %v1673, 0.0
      %1680 = vadd.xlane.f32.xlu0 %v1679
      %v1681 = vpop.xlane.xlu0 %1680
      %v1682 = vsel %vm469, %v1674, 0.0
      %1683 = vadd.xlane.f32.xlu0 %v1682
      %v1684 = vpop.xlane.xlu0 %1683
      %v1685 = vsel %vm469, %v1675, 0.0
      %1686 = vadd.xlane.f32.xlu0 %v1685
      %v1687 = vpop.xlane.xlu0 %1686
      %v1688 = vadd.f32 %v1678, %v1681
      %v1689 = vrot.slane %v1688, 4
      %v1690 = vadd.f32 %v1688, %v1689
      %v1691 = vrot.slane %v1690, 2
      %v1692 = vadd.f32 %v1690, %v1691
      %v1693 = vrot.slane %v1692, 1
      %v1694 = vadd.f32 %v1692, %v1693
      %v1695 = vadd.f32 %v1684, %v1687
      %v1696 = vrot.slane %v1695, 4
      %v1697 = vadd.f32 %v1695, %v1696
      %v1698 = vrot.slane %v1697, 2
      %v1699 = vadd.f32 %v1697, %v1698
      %v1700 = vrot.slane %v1699, 1
      %v1701 = vadd.f32 %v1699, %v1700
      %vm1702 = vcmask 0
      %1703 = vst.msk [vmem:[%s445] sm:$0x1] %vm1702, %v1694
      %1704 = vst.msk [vmem:[%s445 + $0x1] sm:$0x1] %vm1702, %v1701
      %s1705 = sadd.s32 %s26, %s27
      %s1706 = smul.u32 2, %s1705
      %p1707 = scmp.lt.s32.totalorder %s1706, 3
      %s1708 = scalar_select %p1707, %s1706, 3
      %s1709 = smul.addr %s1708, 2
      %s1710 = smul.addr %s1709, 8
      %s1711 = scalar_lea.vmem %s9, %s1710
      %s1712 = sadd.s32 %s26, %s27
      %s1713 = smul.u32 2, %s1712
      %p1714 = scmp.lt.s32.totalorder %s1713, 3
      %s1715 = scalar_select %p1714, %s1713, 3
      %s1716 = scalar_lea.vmem %s10, %s1715
      // Predicated region
      $region57: #{_forward.1} parent=55 // pred_check
        %p1717 = pneg %p259
      $region58: #{_forward.1} parent=55 // pred_check_branch
        %1719 = sbr.rel (%p1717) target = $region60
      $region59: #{_forward.1} parent=55 // pred_region
        %s1720 = sadd.s32 %s26, %s27
        %s1721 = smul.u32 2, %s1720
      $region60: #{_forward.1} parent=55 // pred_fallthru
        _
      // Predicated region
      $region61: #{_forward.1} parent=55 // pred_check
        %p1722 = pneg %p287
      $region62: #{_forward.1} parent=55 // pred_check_branch
        %1724 = sbr.rel (%p1722) target = $region64
      $region63: #{_forward.1} parent=55 // pred_region
        %s1725 = sadd.s32 %s26, %s27
        %s1726 = smul.u32 2, %s1725
      $region64: #{_forward.1} parent=55 // pred_fallthru
        _
    $region56: #{_forward.1} parent=5 // pred_fallthru
      _
    %p1727 = scmp.le.s32.totalorder 2, %s17
    // Predicated region
    $region65: #{_forward.1} parent=5 // pred_check
      %p1728 = pneg %p1727
    $region66: #{_forward.1} parent=5 // pred_check_branch
      %1730 = sbr.rel (%p1728) target = $region68
    $region67: #{_forward.1} parent=5 // pred_region
      %s1731 = ssub.s32 %s17, 2
      // Predicated region
      $region69: #{_forward.1} parent=67 // pred_check
        %p1732 = pneg %p265
      $region70: #{_forward.1} parent=67 // pred_check_branch
        %1734 = sbr.rel (%p1732) target = $region72
      $region71: #{_forward.1} parent=67 // pred_region
        %s1735 = sadd.s32 %s28, %s29
        %s1736 = smul.u32 2, %s1735
        %p1737 = scmp.lt.s32.totalorder %s1736, 3
        %s1738 = scalar_select %p1737, %s1736, 3
        %s1739 = smul.addr %s1738, 2
        %s1740 = smul.addr %s1739, 8
        %s1741 = scalar_lea.vmem %s9, %s1740
      $region72: #{_forward.1} parent=67 // pred_fallthru
        _
      // Predicated region
      $region73: #{_forward.1} parent=67 // pred_check
        %p1742 = pneg %p293
      $region74: #{_forward.1} parent=67 // pred_check_branch
        %1744 = sbr.rel (%p1742) target = $region76
      $region75: #{_forward.1} parent=67 // pred_region
        %s1745 = sadd.s32 %s28, %s29
        %s1746 = smul.u32 2, %s1745
        %p1747 = scmp.lt.s32.totalorder %s1746, 3
        %s1748 = scalar_select %p1747, %s1746, 3
        %s1749 = scalar_lea.vmem %s10, %s1748
      $region76: #{_forward.1} parent=67 // pred_fallthru
        _
    $region68: #{_forward.1} parent=5 // pred_fallthru
      _
  $region6: #{_forward.1} parent=0 // loop_footer
    %s21 = sadd.s32 1, %s17
  $region7: #{_forward.1} parent=0 // loop_footer_branch
    %16 = sbr.rel target = $region3
  $region8: #{_forward.1} parent=0 // loop_exit
    _

</llo_original>
